<compile_context>
chip_gen: v7x
topology: tpu7x:2x2x1
jax: 0.10.0
libtpu: 0.0.40
codegen_flags: <defaults>
</compile_context>

<pallas_src>
import functools

import jax
import jax.numpy as jnp
from jax.experimental import pallas as pl
from jax.experimental.pallas import tpu as pltpu

LANE = 128
VMEM_LIMIT = 32 * 1024 * 1024  # comfortably under physical on v5e/v6e/v7x


def _round_up(n, m):
    return ((n + m - 1) // m) * m


def _tile_and_pad(n, cap, mult):
    """Pick a tile size (multiple of `mult`, <= cap) and the padded extent.

    Prefers an exact divisor of n (no padding); otherwise pads n up to a
    multiple of the cap.  Never returns the full (possibly huge) dimension.
    """
    cap = max(mult, (cap // mult) * mult)
    if n <= cap:
        t = _round_up(n, mult)
        return t, t
    best = 0
    t = mult
    while t <= cap:
        if n % t == 0:
            best = t
        t += mult
    if best >= mult and best * 4 >= cap:   # good-enough divisor -> no padding
        return best, n
    return cap, _round_up(n, cap)


# ----------------------------------------------------------------------------
# GEMM + affine (+ReLU) Pallas kernel: single K block, no accumulator scratch.
# ----------------------------------------------------------------------------
def _matmul_affine_kernel(a_ref, b_ref, scale_ref, shift_ref, o_ref, *, relu):
    y = jnp.dot(a_ref[...], b_ref[...], preferred_element_type=jnp.float32)
    y = y * scale_ref[...] + shift_ref[...]
    if relu:
        y = jnp.maximum(y, 0.0)
    o_ref[...] = y.astype(o_ref.dtype)


def matmul_affine(a, b, scale, shift, relu=False, out_dtype=jnp.float32,
                  tm_cap=256):
    """(M,K)@(K,N) on the MXU (bf16 inputs, f32 accumulate) with a fused
    per-output-channel scale/shift (+ optional ReLU) epilogue.

    The whole (K,N) weight is one resident VMEM block (fits easily here),
    so there is no K grid axis, no init/finish branches and no acc scratch.
    # TODO(synk): re-introduce a K grid axis if K ever grows past VMEM budget.
    """
    M, K = a.shape
    K2, N = b.shape
    assert K == K2 and N % LANE == 0
    tm, Mp = _tile_and_pad(M, tm_cap, 8)
    if Mp != M:
        a = jnp.pad(a, ((0, Mp - M), (0, 0)))
    grid = (Mp // tm,)
    out = pl.pallas_call(
        functools.partial(_matmul_affine_kernel, relu=relu),
        out_shape=jax.ShapeDtypeStruct((Mp, N), out_dtype),
        grid=grid,
        in_specs=[
            pl.BlockSpec((tm, K), lambda i: (i, 0)),
            pl.BlockSpec((K, N), lambda i: (0, 0)),
            pl.BlockSpec((1, N), lambda i: (0, 0)),
            pl.BlockSpec((1, N), lambda i: (0, 0)),
        ],
        out_specs=pl.BlockSpec((tm, N), lambda i: (i, 0)),
        compiler_params=pltpu.CompilerParams(
            dimension_semantics=("parallel",),
            vmem_limit_bytes=VMEM_LIMIT),
    )(a.astype(jnp.bfloat16), b.astype(jnp.bfloat16),
      scale.reshape(1, N).astype(jnp.float32),
      shift.reshape(1, N).astype(jnp.float32))
    return out[:M] if Mp != M else out


# ----------------------------------------------------------------------------
# Fused PAM kernel:
#   q = f @ Wq + bq ; k = xp @ Wk + bk ; attn = softmax(q k^T)
#   out = (f + gamma * attn @ xp) @ Wcls + bcls
# ----------------------------------------------------------------------------
def _pam_fused_kernel(gamma_ref, f_ref, xp_ref, wq_ref, bq_ref, wk_ref, bk_ref,
                      wc_ref, bc_ref, o_ref):
    f = f_ref[0]                        # (tq, Cp)  bf16
    xp = xp_ref[0]                      # (Np, Cp)  bf16  (value tensor)
    gamma = gamma_ref[0]                # scalar from SMEM

    q = (jnp.dot(f, wq_ref[...], preferred_element_type=jnp.float32)
         + bq_ref[...]).astype(jnp.bfloat16)               # (tq, KDp)
    k = (jnp.dot(xp, wk_ref[...], preferred_element_type=jnp.float32)
         + bk_ref[...]).astype(jnp.bfloat16)                # (Np, KDp)

    energy = jax.lax.dot_general(       # q @ k^T -> (tq, Np), no k transpose
        q, k, (((1,), (1,)), ((), ())), preferred_element_type=jnp.float32)
    m = jnp.max(energy, axis=-1, keepdims=True)
    p = jnp.exp(energy - m)
    inv = pl.reciprocal(jnp.sum(p, axis=-1, keepdims=True), approx=True)
    attn = (p * inv).astype(jnp.bfloat16)

    outv = jnp.dot(attn, xp, preferred_element_type=jnp.float32)   # (tq, Cp)
    res = f.astype(jnp.float32) + gamma * outv                     # residual

    y = (jnp.dot(res.astype(jnp.bfloat16), wc_ref[...],
                 preferred_element_type=jnp.float32) + bc_ref[...])
    o_ref[0] = y.astype(o_ref.dtype)


def pam_fused(f, xp, q_w, q_b, k_w, k_b, c_w, c_b, gamma, tq_cap=256):
    """f: (B, HW, Cp) bf16, xp: (B, Np, Cp) bf16.  Returns (B, HWp, NCp) f32
    where NCp = classifier out-channels padded to 128 (slice afterwards).
    # TODO(synk): for very large HW/Np, tile the Np axis with an online-softmax
    # (flash-style) accumulator to keep the (tq,Np) energy tile small on v7x.
    """
    B, HW, Cp = f.shape
    _, Np, _ = xp.shape
    kd, nc = q_w.shape[0], c_w.shape[0]
    KDp = _round_up(kd, LANE)
    NCp = _round_up(nc, LANE)

    def prep_w(w, cout, npad):
        cin = w.shape[1]
        m = w.reshape(cout, cin).T                          # (cin, cout)
        return jnp.pad(m, ((0, Cp - cin), (0, npad - cout))).astype(jnp.bfloat16)

    def prep_b(b, npad):
        return jnp.pad(b, (0, npad - b.shape[0])).reshape(1, npad).astype(jnp.float32)

    wq, bq = prep_w(q_w, kd, KDp), prep_b(q_b, KDp)
    wk, bk = prep_w(k_w, kd, KDp), prep_b(k_b, KDp)
    wc, bc = prep_w(c_w, nc, NCp), prep_b(c_b, NCp)

    tq, HWp = _tile_and_pad(HW, tq_cap, 8)
    if HWp != HW:
        f = jnp.pad(f, ((0, 0), (0, HWp - HW), (0, 0)))

    grid = (B, HWp // tq)
    return pl.pallas_call(
        _pam_fused_kernel,
        out_shape=jax.ShapeDtypeStruct((B, HWp, NCp), jnp.float32),
        grid=grid,
        in_specs=[
            pl.BlockSpec(memory_space=pltpu.MemorySpace.SMEM),       # gamma
            pl.BlockSpec((1, tq, Cp), lambda b, i: (b, i, 0)),       # f
            pl.BlockSpec((1, Np, Cp), lambda b, i: (b, 0, 0)),       # xp (k/v src)
            pl.BlockSpec((Cp, KDp), lambda b, i: (0, 0)),            # Wq
            pl.BlockSpec((1, KDp), lambda b, i: (0, 0)),             # bq
            pl.BlockSpec((Cp, KDp), lambda b, i: (0, 0)),            # Wk
            pl.BlockSpec((1, KDp), lambda b, i: (0, 0)),             # bk
            pl.BlockSpec((Cp, NCp), lambda b, i: (0, 0)),            # Wcls
            pl.BlockSpec((1, NCp), lambda b, i: (0, 0)),             # bcls
        ],
        out_specs=pl.BlockSpec((1, tq, NCp), lambda b, i: (b, i, 0)),
        compiler_params=pltpu.CompilerParams(
            dimension_semantics=("parallel", "parallel"),
            vmem_limit_bytes=VMEM_LIMIT),
    )(gamma.reshape(-1).astype(jnp.float32),
      f.astype(jnp.bfloat16), xp.astype(jnp.bfloat16),
      wq, bq, wk, bk, wc, bc)


# ----------------------------------------------------------------------------
# Conv helpers (channels-last / flattened pixels)
# ----------------------------------------------------------------------------
def _affine_from_bn(c_out, bias=None, bn=None):
    scale = jnp.ones((c_out,), jnp.float32)
    shift = jnp.zeros((c_out,), jnp.float32)
    if bias is not None:
        shift = shift + bias
    if bn is not None:
        g, beta, mean, var, eps = bn
        s = g / jnp.sqrt(var + eps)
        scale = scale * s
        shift = shift * s + (beta - mean * s)
    return scale, shift


def _pad_vec(v, n, value=0.0):
    return v if v.shape[0] == n else jnp.pad(v, (0, n - v.shape[0]),
                                             constant_values=value)


def _pad_cols(w, n):
    return w if w.shape[1] == n else jnp.pad(w, ((0, 0), (0, n - w.shape[1])))


def conv3x3_nhwc(x, w, bn=None, relu=False, out_dtype=jnp.float32):
    """x: (B,H,W,Cin) NHWC; w: (Cout,Cin,3,3), padding=1, no bias.
    Returns (B*H*W, Cout padded to 128) in `out_dtype`."""
    B, H, W, Cin = x.shape
    cout = w.shape[0]
    n_pad = _round_up(cout, LANE)
    # Patches are built directly in bf16 (the GEMM consumes bf16 anyway).
    # TODO(synk): at deployment H,W replace this im2col with an in-kernel 3x3
    # halo gather (shifted VMEM reads) to avoid the 9x patch matrix in HBM.
    xb = jnp.pad(x.astype(jnp.bfloat16), ((0, 0), (1, 1), (1, 1), (0, 0)))
    cols = [xb[:, kh:kh + H, kw:kw + W, :] for kh in range(3) for kw in range(3)]
    patches = jnp.concatenate(cols, axis=-1).reshape(B * H * W, 9 * Cin)
    wmat = _pad_cols(w.transpose(2, 3, 1, 0).reshape(9 * Cin, cout), n_pad)
    scale, shift = _affine_from_bn(cout, None, bn)
    return matmul_affine(patches, wmat,
                         _pad_vec(scale, n_pad, 1.0), _pad_vec(shift, n_pad, 0.0),
                         relu=relu, out_dtype=out_dtype)


# ----------------------------------------------------------------------------
# Pooling / upsampling / pyramid-pooling branches (plain JAX, NHWC)
# ----------------------------------------------------------------------------
def maxpool2x2_nhwc(x):
    B, H, W, C = x.shape
    return x.reshape(B, H // 2, 2, W // 2, 2, C).max(axis=(2, 4))


def adaptive_avg_pool_nhwc(x, s):
    B, H, W, C = x.shape
    return x.reshape(B, s, H // s, s, W // s, C).mean(axis=(2, 4))


def upsample_bilinear_align_nhwc(x, out_h, out_w):
    B, H, W, C = x.shape
    if H == 1 and W == 1:
        return jnp.broadcast_to(x, (B, out_h, out_w, C))

    def coords(out_s, in_s):
        if in_s == 1:
            z = jnp.zeros((out_s,), jnp.float32)
            return z, z.astype(jnp.int32), z.astype(jnp.int32)
        src = jnp.arange(out_s, dtype=jnp.float32) * (in_s - 1) / (out_s - 1)
        i0 = jnp.floor(src).astype(jnp.int32)
        i1 = jnp.minimum(i0 + 1, in_s - 1)
        return src - i0.astype(jnp.float32), i0, i1

    fy, y0, y1 = coords(out_h, H)
    fx, x0, x1 = coords(out_w, W)
    top, bot = x[:, y0, :, :], x[:, y1, :, :]
    v = top * (1.0 - fy)[None, :, None, None] + bot * fy[None, :, None, None]
    left, right = v[:, :, x0, :], v[:, :, x1, :]
    return left * (1.0 - fx)[None, None, :, None] + right * fx[None, None, :, None]


def pp_branch_nhwc(x, w, bn, size, out_h, out_w):
    """One pyramid-pooling branch: pool -> 1x1 conv+BN+ReLU -> upsample.
    GEMM is microscopic (M = B*size^2) so plain XLA einsum is used."""
    p = adaptive_avg_pool_nhwc(x, size)                        # (B, s, s, Cin)
    cout, cin = w.shape[0], w.shape[1]
    scale, shift = _affine_from_bn(cout, None, bn)
    y = jnp.einsum('bhwc,cd->bhwd', p, w.reshape(cout, cin).T)
    y = jnp.maximum(y * scale + shift, 0.0)
    return upsample_bilinear_align_nhwc(y, out_h, out_w)


# ----------------------------------------------------------------------------
# Full head forward
# ----------------------------------------------------------------------------
def psp_att_noguide_head(x, params):
    B, Cin, H, W = x.shape
    xh = x.transpose(0, 2, 3, 1)                               # single NCHW->NHWC

    # --- conv5[0]: PyramidPooling (concat input with 4 pooled branches) ---
    feats = [xh.astype(jnp.bfloat16)]
    for i, size in enumerate((1, 2, 3, 6)):
        br = pp_branch_nhwc(xh, params[f"pp_conv{i}_w"], params[f"pp_bn{i}"],
                            size, H, W)
        feats.append(br.astype(jnp.bfloat16))
    cat = jnp.concatenate(feats, axis=-1)                      # (B,H,W,2*Cin) bf16

    # --- conv5[1:]: 3x3 conv (no bias) + BN + ReLU -> bf16, channels pad 128 ---
    f_flat = conv3x3_nhwc(cat, params["conv5_w"], bn=params["conv5_bn"],
                          relu=True, out_dtype=jnp.bfloat16)   # (B*H*W, Cp)
    Cp = f_flat.shape[-1]
    HW = H * W

    # --- pam0 + block: fused q/k projection, attention, residual, classifier ---
    f_img = f_flat.reshape(B, H, W, Cp)
    xp = maxpool2x2_nhwc(f_img)                                # (B, H/2, W/2, Cp)
    Np = xp.shape[1] * xp.shape[2]

    # TODO(synk): training-mode Dropout2d(0.1) not implemented (eval identity).
    out_pad = pam_fused(f_flat.reshape(B, HW, Cp), xp.reshape(B, Np, Cp),
                        params["q_w"], params["q_b"],
                        params["k_w"], params["k_b"],
                        params["cls_w"], params["cls_b"],
                        params["gamma"])                       # (B, HWp, 128)

    nc = params["cls_w"].shape[0]
    out = out_pad[:, :HW, :nc].reshape(B, H, W, nc)
    return out.transpose(0, 3, 1, 2)                           # back to NCHW


# ----------------------------------------------------------------------------
# Deterministic parameter initialization (shapes per the PyTorch __init__)
# ----------------------------------------------------------------------------
def _bn_params(c, eps=1e-5):
    return (jnp.ones((c,), jnp.float32), jnp.zeros((c,), jnp.float32),
            jnp.zeros((c,), jnp.float32), jnp.ones((c,), jnp.float32), eps)


def init_params(key, in_channels, out_channels):
    inter = in_channels // 4
    key_dim = inter // 8
    pp_out = in_channels // 4
    ks = jax.random.split(key, 12)

    def w(k, shape):
        return 0.05 * jax.random.normal(k, shape, jnp.float32)

    params = {}
    for i in range(4):
        params[f"pp_conv{i}_w"] = w(ks[i], (pp_out, in_channels, 1, 1))
        params[f"pp_bn{i}"] = _bn_params(pp_out)
    params["conv5_w"] = w(ks[4], (inter, in_channels * 2, 3, 3))
    params["conv5_bn"] = _bn_params(inter)
    params["q_w"] = w(ks[5], (key_dim, inter, 1, 1))
    params["q_b"] = w(ks[6], (key_dim,))
    params["k_w"] = w(ks[7], (key_dim, inter, 1, 1))
    params["k_b"] = w(ks[8], (key_dim,))
    # PyTorch initialises gamma to zeros(1); the forward supports any gamma —
    # use a nonzero value so the attention path is exercised in this run.
    params["gamma"] = jnp.array([0.5], jnp.float32)
    params["cls_w"] = w(ks[9], (out_channels, inter, 1, 1))
    params["cls_b"] = w(ks[10], (out_channels,))
    return params


if __name__ == "__main__":
    # Shapes consistent with the module:
    #   in_channels=128 -> inter_channels=32, key_dim=4; H=W=12 (divisible by
    #   the pyramid pool sizes 1,2,3,6 and by 2 for the PAM maxpool).
    in_channels, out_channels = 128, 8
    B, H, W = 2, 12, 12

    key = jax.random.PRNGKey(0)
    kx, kp = jax.random.split(key)
    x = jax.random.normal(kx, (B, in_channels, H, W), jnp.float32)
    params = init_params(kp, in_channels, out_channels)

    fwd = jax.jit(psp_att_noguide_head)
    y = fwd(x, params)
    jax.block_until_ready(y)
    assert y.shape == (B, out_channels, H, W), y.shape
    assert bool(jnp.all(jnp.isfinite(y)))
    print("KERNEL_OK")
</pallas_src>

<mosaic_0001>
module attributes {stable_mosaic.version = 11 : i64} {
  func.func @_matmul_affine_kernel(%arg0: i32, %arg1: memref<144x2304xbf16, #tpu.memory_space<vmem>>, %arg2: memref<2304x128xbf16, #tpu.memory_space<vmem>>, %arg3: memref<1x128xf32, #tpu.memory_space<vmem>>, %arg4: memref<1x128xf32, #tpu.memory_space<vmem>>, %arg5: memref<144x128xbf16, #tpu.memory_space<vmem>>) attributes {dimension_semantics = [#tpu.dimension_semantics<parallel>], iteration_bounds = array<i64: 2>, scalar_prefetch = 0 : i64, scratch_operands = 0 : i64, tpu.core_type = #tpu.core_type<tc>, window_params = [{transform_indices = @transform_0, window_bounds = array<i64: 144, 2304>}, {pipeline_mode = #tpu.pipeline_mode<synchronous>, transform_indices = @transform_1, window_bounds = array<i64: 2304, 128>}, {pipeline_mode = #tpu.pipeline_mode<synchronous>, transform_indices = @transform_2, window_bounds = array<i64: 1, 128>}, {pipeline_mode = #tpu.pipeline_mode<synchronous>, transform_indices = @transform_3, window_bounds = array<i64: 1, 128>}, {transform_indices = @transform_4, window_bounds = array<i64: 144, 128>}]} {
    %c0 = arith.constant 0 : index
    %c0_0 = arith.constant 0 : index
    %0 = vector.load %arg1[%c0, %c0_0] : memref<144x2304xbf16, #tpu.memory_space<vmem>>, vector<144x2304xbf16>
    %c0_1 = arith.constant 0 : index
    %c0_2 = arith.constant 0 : index
    %1 = vector.load %arg2[%c0_1, %c0_2] : memref<2304x128xbf16, #tpu.memory_space<vmem>>, vector<2304x128xbf16>
    %cst = arith.constant dense<0.000000e+00> : vector<144x128xf32>
    %2 = tpu.matmul %0, %1, %cst {dimension_numbers = #tpu.dot_dimension_numbers<[1], [0], [0], [1], [0, 0, 1, 1], [], []>} : vector<144x2304xbf16>, vector<2304x128xbf16>, vector<144x128xf32> -> vector<144x128xf32>
    %c0_3 = arith.constant 0 : index
    %c0_4 = arith.constant 0 : index
    %3 = vector.load %arg3[%c0_3, %c0_4] : memref<1x128xf32, #tpu.memory_space<vmem>>, vector<1x128xf32>
    %4 = vector.broadcast %3 : vector<1x128xf32> to vector<144x128xf32>
    %5 = arith.mulf %2, %4 : vector<144x128xf32>
    %c0_5 = arith.constant 0 : index
    %c0_6 = arith.constant 0 : index
    %6 = vector.load %arg4[%c0_5, %c0_6] : memref<1x128xf32, #tpu.memory_space<vmem>>, vector<1x128xf32>
    %7 = vector.broadcast %6 : vector<1x128xf32> to vector<144x128xf32>
    %8 = arith.addf %5, %7 : vector<144x128xf32>
    %cst_7 = arith.constant 0.000000e+00 : f32
    %9 = vector.broadcast %cst_7 : f32 to vector<144x128xf32>
    %10 = arith.maximumf %8, %9 : vector<144x128xf32>
    %11 = arith.truncf %10 : vector<144x128xf32> to vector<144x128xbf16>
    %c0_8 = arith.constant 0 : index
    %c0_9 = arith.constant 0 : index
    %12 = vector.load %arg5[%c0_8, %c0_9] : memref<144x128xbf16, #tpu.memory_space<vmem>>, vector<144x128xbf16>
    tpu.vector_store %arg5[%c0_8, %c0_9], %11 {strides = array<i32>} : memref<144x128xbf16, #tpu.memory_space<vmem>>, vector<144x128xbf16>,
    return
  }
  func.func @transform_0(%arg0: i32) -> (i32, i32) {
    %c0_i32 = arith.constant 0 : i32
    %c0_i32_0 = arith.constant 0 : i32
    return %arg0, %c0_i32 : i32, i32
  }
  func.func @transform_1(%arg0: i32) -> (i32, i32) {
    %c0_i32 = arith.constant 0 : i32
    %c0_i32_0 = arith.constant 0 : i32
    %c0_i32_1 = arith.constant 0 : i32
    return %c0_i32, %c0_i32_0 : i32, i32
  }
  func.func @transform_2(%arg0: i32) -> (i32, i32) {
    %c0_i32 = arith.constant 0 : i32
    %c0_i32_0 = arith.constant 0 : i32
    %c0_i32_1 = arith.constant 0 : i32
    return %c0_i32, %c0_i32_0 : i32, i32
  }
  func.func @transform_3(%arg0: i32) -> (i32, i32) {
    %c0_i32 = arith.constant 0 : i32
    %c0_i32_0 = arith.constant 0 : i32
    %c0_i32_1 = arith.constant 0 : i32
    return %c0_i32, %c0_i32_0 : i32, i32
  }
  func.func @transform_4(%arg0: i32) -> (i32, i32) {
    %c0_i32 = arith.constant 0 : i32
    %c0_i32_0 = arith.constant 0 : i32
    return %arg0, %c0_i32 : i32, i32
  }
}

module attributes {stable_mosaic.version = 11 : i64} {
  func.func @_pam_fused_kernel(%arg0: i32, %arg1: i32, %arg2: memref<1xf32, #tpu.memory_space<smem>>, %arg3: memref<1x144x128xbf16, #tpu.memory_space<vmem>>, %arg4: memref<1x36x128xbf16, #tpu.memory_space<vmem>>, %arg5: memref<128x128xbf16, #tpu.memory_space<vmem>>, %arg6: memref<1x128xf32, #tpu.memory_space<vmem>>, %arg7: memref<128x128xbf16, #tpu.memory_space<vmem>>, %arg8: memref<1x128xf32, #tpu.memory_space<vmem>>, %arg9: memref<128x128xbf16, #tpu.memory_space<vmem>>, %arg10: memref<1x128xf32, #tpu.memory_space<vmem>>, %arg11: memref<1x144x128xf32, #tpu.memory_space<vmem>>) attributes {dimension_semantics = [#tpu.dimension_semantics<parallel>, #tpu.dimension_semantics<parallel>], iteration_bounds = array<i64: 2, 1>, scalar_prefetch = 0 : i64, scratch_operands = 0 : i64, tpu.core_type = #tpu.core_type<tc>, window_params = [{transform_indices = @transform_0, window_bounds = array<i64: 1>}, {transform_indices = @transform_1, window_bounds = array<i64: 1, 144, 128>}, {transform_indices = @transform_2, window_bounds = array<i64: 1, 36, 128>}, {pipeline_mode = #tpu.pipeline_mode<synchronous>, transform_indices = @transform_3, window_bounds = array<i64: 128, 128>}, {pipeline_mode = #tpu.pipeline_mode<synchronous>, transform_indices = @transform_4, window_bounds = array<i64: 1, 128>}, {pipeline_mode = #tpu.pipeline_mode<synchronous>, transform_indices = @transform_5, window_bounds = array<i64: 128, 128>}, {pipeline_mode = #tpu.pipeline_mode<synchronous>, transform_indices = @transform_6, window_bounds = array<i64: 1, 128>}, {pipeline_mode = #tpu.pipeline_mode<synchronous>, transform_indices = @transform_7, window_bounds = array<i64: 128, 128>}, {pipeline_mode = #tpu.pipeline_mode<synchronous>, transform_indices = @transform_8, window_bounds = array<i64: 1, 128>}, {transform_indices = @transform_9, window_bounds = array<i64: 1, 144, 128>}]} {
    %c0 = arith.constant 0 : index
    %c0_0 = arith.constant 0 : index
    %c0_1 = arith.constant 0 : index
    %0 = vector.load %arg3[%c0, %c0_0, %c0_1] : memref<1x144x128xbf16, #tpu.memory_space<vmem>>, vector<1x144x128xbf16>
    %1 = vector.shape_cast %0 : vector<1x144x128xbf16> to vector<144x128xbf16>
    %c0_2 = arith.constant 0 : index
    %c0_3 = arith.constant 0 : index
    %c0_4 = arith.constant 0 : index
    %2 = vector.load %arg4[%c0_2, %c0_3, %c0_4] : memref<1x36x128xbf16, #tpu.memory_space<vmem>>, vector<1x36x128xbf16>
    %3 = vector.shape_cast %2 : vector<1x36x128xbf16> to vector<36x128xbf16>
    %c0_5 = arith.constant 0 : index
    %4 = memref.load %arg2[%c0_5] : memref<1xf32, #tpu.memory_space<smem>>
    %c0_6 = arith.constant 0 : index
    %c0_7 = arith.constant 0 : index
    %5 = vector.load %arg5[%c0_6, %c0_7] : memref<128x128xbf16, #tpu.memory_space<vmem>>, vector<128x128xbf16>
    %cst = arith.constant dense<0.000000e+00> : vector<144x128xf32>
    %6 = tpu.matmul %1, %5, %cst {dimension_numbers = #tpu.dot_dimension_numbers<[1], [0], [0], [1], [0, 0, 1, 1], [], []>} : vector<144x128xbf16>, vector<128x128xbf16>, vector<144x128xf32> -> vector<144x128xf32>
    %c0_8 = arith.constant 0 : index
    %c0_9 = arith.constant 0 : index
    %7 = vector.load %arg6[%c0_8, %c0_9] : memref<1x128xf32, #tpu.memory_space<vmem>>, vector<1x128xf32>
    %8 = vector.broadcast %7 : vector<1x128xf32> to vector<144x128xf32>
    %9 = arith.addf %6, %8 : vector<144x128xf32>
    %10 = arith.truncf %9 : vector<144x128xf32> to vector<144x128xbf16>
    %c0_10 = arith.constant 0 : index
    %c0_11 = arith.constant 0 : index
    %11 = vector.load %arg7[%c0_10, %c0_11] : memref<128x128xbf16, #tpu.memory_space<vmem>>, vector<128x128xbf16>
    %cst_12 = arith.constant dense<0.000000e+00> : vector<36x128xf32>
    %12 = tpu.matmul %3, %11, %cst_12 {dimension_numbers = #tpu.dot_dimension_numbers<[1], [0], [0], [1], [0, 0, 1, 1], [], []>} : vector<36x128xbf16>, vector<128x128xbf16>, vector<36x128xf32> -> vector<36x128xf32>
    %c0_13 = arith.constant 0 : index
    %c0_14 = arith.constant 0 : index
    %13 = vector.load %arg8[%c0_13, %c0_14] : memref<1x128xf32, #tpu.memory_space<vmem>>, vector<1x128xf32>
    %14 = vector.broadcast %13 : vector<1x128xf32> to vector<36x128xf32>
    %15 = arith.addf %12, %14 : vector<36x128xf32>
    %16 = arith.truncf %15 : vector<36x128xf32> to vector<36x128xbf16>
    %cst_15 = arith.constant dense<0.000000e+00> : vector<144x36xf32>
    %17 = tpu.matmul %10, %16, %cst_15 {dimension_numbers = #tpu.dot_dimension_numbers<[1], [1], [0], [0], [0, 0, 1, 0], [], []>} : vector<144x128xbf16>, vector<36x128xbf16>, vector<144x36xf32> -> vector<144x36xf32>
    %cst_16 = arith.constant dense<0xFF800000> : vector<144xf32>
    %18 = vector.multi_reduction <maximumf>, %17, %cst_16 [1] : vector<144x36xf32> to vector<144xf32>
    %19 = vector.shape_cast %18 : vector<144xf32> to vector<144x1xf32>
    %20 = vector.broadcast %19 : vector<144x1xf32> to vector<144x36xf32>
    %21 = arith.subf %17, %20 : vector<144x36xf32>
    %22 = math.exp %21 : vector<144x36xf32>
    %cst_17 = arith.constant dense<0.000000e+00> : vector<144xf32>
    %23 = vector.multi_reduction <add>, %22, %cst_17 [1] : vector<144x36xf32> to vector<144xf32>
    %24 = vector.shape_cast %23 : vector<144xf32> to vector<144x1xf32>
    %25 = tpu.reciprocal %24 {approx = true} : vector<144x1xf32> -> vector<144x1xf32>
    %26 = vector.broadcast %25 : vector<144x1xf32> to vector<144x36xf32>
    %27 = arith.mulf %22, %26 : vector<144x36xf32>
    %28 = arith.truncf %27 : vector<144x36xf32> to vector<144x36xbf16>
    %cst_18 = arith.constant dense<0.000000e+00> : vector<144x128xf32>
    %29 = tpu.matmul %28, %3, %cst_18 {dimension_numbers = #tpu.dot_dimension_numbers<[1], [0], [0], [1], [0, 0, 1, 1], [], []>} : vector<144x36xbf16>, vector<36x128xbf16>, vector<144x128xf32> -> vector<144x128xf32>
    %30 = arith.extf %1 : vector<144x128xbf16> to vector<144x128xf32>
    %31 = vector.broadcast %4 : f32 to vector<144x128xf32>
    %32 = arith.mulf %31, %29 : vector<144x128xf32>
    %33 = arith.addf %30, %32 : vector<144x128xf32>
    %34 = arith.truncf %33 : vector<144x128xf32> to vector<144x128xbf16>
    %c0_19 = arith.constant 0 : index
    %c0_20 = arith.constant 0 : index
    %35 = vector.load %arg9[%c0_19, %c0_20] : memref<128x128xbf16, #tpu.memory_space<vmem>>, vector<128x128xbf16>
    %cst_21 = arith.constant dense<0.000000e+00> : vector<144x128xf32>
    %36 = tpu.matmul %34, %35, %cst_21 {dimension_numbers = #tpu.dot_dimension_numbers<[1], [0], [0], [1], [0, 0, 1, 1], [], []>} : vector<144x128xbf16>, vector<128x128xbf16>, vector<144x128xf32> -> vector<144x128xf32>
    %c0_22 = arith.constant 0 : index
    %c0_23 = arith.constant 0 : index
    %37 = vector.load %arg10[%c0_22, %c0_23] : memref<1x128xf32, #tpu.memory_space<vmem>>, vector<1x128xf32>
    %38 = vector.broadcast %37 : vector<1x128xf32> to vector<144x128xf32>
    %39 = arith.addf %36, %38 : vector<144x128xf32>
    %c0_24 = arith.constant 0 : index
    %c0_25 = arith.constant 0 : index
    %c0_26 = arith.constant 0 : index
    %40 = vector.load %arg11[%c0_24, %c0_25, %c0_26] : memref<1x144x128xf32, #tpu.memory_space<vmem>>, vector<1x144x128xf32>
    %41 = vector.shape_cast %40 : vector<1x144x128xf32> to vector<144x128xf32>
    %42 = vector.shape_cast %39 : vector<144x128xf32> to vector<1x144x128xf32>
    tpu.vector_store %arg11[%c0_24, %c0_25, %c0_26], %42 {strides = array<i32>} : memref<1x144x128xf32, #tpu.memory_space<vmem>>, vector<1x144x128xf32>,
    return
  }
  func.func @transform_0(%arg0: i32, %arg1: i32) -> i32 {
    %c0_i32 = arith.constant 0 : i32
    %c0_i32_0 = arith.constant 0 : i32
    return %c0_i32 : i32
  }
  func.func @transform_1(%arg0: i32, %arg1: i32) -> (i32, i32, i32) {
    %c0_i32 = arith.constant 0 : i32
    %c0_i32_0 = arith.constant 0 : i32
    return %arg0, %arg1, %c0_i32 : i32, i32, i32
  }
  func.func @transform_2(%arg0: i32, %arg1: i32) -> (i32, i32, i32) {
    %c0_i32 = arith.constant 0 : i32
    %c0_i32_0 = arith.constant 0 : i32
    %c0_i32_1 = arith.constant 0 : i32
    return %arg0, %c0_i32, %c0_i32_0 : i32, i32, i32
  }
  func.func @transform_3(%arg0: i32, %arg1: i32) -> (i32, i32) {
    %c0_i32 = arith.constant 0 : i32
    %c0_i32_0 = arith.constant 0 : i32
    %c0_i32_1 = arith.constant 0 : i32
    return %c0_i32, %c0_i32_0 : i32, i32
  }
  func.func @transform_4(%arg0: i32, %arg1: i32) -> (i32, i32) {
    %c0_i32 = arith.constant 0 : i32
    %c0_i32_0 = arith.constant 0 : i32
    %c0_i32_1 = arith.constant 0 : i32
    return %c0_i32, %c0_i32_0 : i32, i32
  }
  func.func @transform_5(%arg0: i32, %arg1: i32) -> (i32, i32) {
    %c0_i32 = arith.constant 0 : i32
    %c0_i32_0 = arith.constant 0 : i32
    %c0_i32_1 = arith.constant 0 : i32
    return %c0_i32, %c0_i32_0 : i32, i32
  }
  func.func @transform_6(%arg0: i32, %arg1: i32) -> (i32, i32) {
    %c0_i32 = arith.constant 0 : i32
    %c0_i32_0 = arith.constant 0 : i32
    %c0_i32_1 = arith.constant 0 : i32
    return %c0_i32, %c0_i32_0 : i32, i32
  }
  func.func @transform_7(%arg0: i32, %arg1: i32) -> (i32, i32) {
    %c0_i32 = arith.constant 0 : i32
    %c0_i32_0 = arith.constant 0 : i32
    %c0_i32_1 = arith.constant 0 : i32
    return %c0_i32, %c0_i32_0 : i32, i32
  }
  func.func @transform_8(%arg0: i32, %arg1: i32) -> (i32, i32) {
    %c0_i32 = arith.constant 0 : i32
    %c0_i32_0 = arith.constant 0 : i32
    %c0_i32_1 = arith.constant 0 : i32
    return %c0_i32, %c0_i32_0 : i32, i32
  }
  func.func @transform_9(%arg0: i32, %arg1: i32) -> (i32, i32, i32) {
    %c0_i32 = arith.constant 0 : i32
    %c0_i32_0 = arith.constant 0 : i32
    return %arg0, %arg1, %c0_i32 : i32, i32, i32
  }
}

</mosaic_0001>

<llo_original>
// kernel: psp_att_noguide_head.3
$region0: #{psp_att_noguide_head.3}
  #allocation0 [shape = 'u32[]', space=smem, size = 0x4, offset = 0x4, fixed_abs, tag = 'smem constant byte address 0x4 - core index']
  #allocation1 [shape = 'u32[144,128]{1,0:T(1,128)}', space=vmem, size = 0x12000, scoped, tag = 'internal scratch']
  #allocation2 [shape = 'f32[1]{0:T(128)S(6)}', space=smem, size = 0x200, scoped, tag = 'scoped memory for psp_att_noguide_head.3']
  %s0 = inlined_call_operand.<no memory space> [shape: f32[1], index: 0, kind: input, shape index: {}]
  %s1 = inlined_call_operand.vmem [shape: bf16[2,144,128], index: 1, kind: input, shape index: {}]
  %s2 = inlined_call_operand.vmem [shape: bf16[2,36,128], index: 2, kind: input, shape index: {}]
  %s3 = inlined_call_operand.vmem [shape: bf16[128,128], index: 3, kind: input, shape index: {}]
  %s4 = inlined_call_operand.vmem [shape: f32[1,128], index: 4, kind: input, shape index: {}]
  %s5 = inlined_call_operand.vmem [shape: bf16[128,128], index: 5, kind: input, shape index: {}]
  %s6 = inlined_call_operand.vmem [shape: f32[1,128], index: 6, kind: input, shape index: {}]
  %s7 = inlined_call_operand.vmem [shape: bf16[128,128], index: 7, kind: input, shape index: {}]
  %s8 = inlined_call_operand.vmem [shape: f32[1,128], index: 8, kind: input, shape index: {}]
  %s9 = inlined_call_operand.vmem [shape: f32[2,144,128], index: 9, kind: output, shape index: {}]
  %s10 = sld [smem:[#allocation0]]
  $region69: #{psp_att_noguide_head.3} parent=0
    _
  %s12 = ssub.s32 1, %s10
  %s13 = scalar_select 0, %s12, %s10
  %14 = sst [smem:[#allocation2]] %s0
  loop: start=0, step=1, limit=4
  $region2: #{psp_att_noguide_head.3} parent=0 // loop_pre_header
    _
  $region3: #{psp_att_noguide_head.3} parent=0 // loop_header
    %s16 = sphi 0, %s20
    %p17 = scmp.ge.s32.totalorder %s16, 4
    %s23 = sphi 0, %s35
    %s24 = sphi 0, %s31
    %s25 = sphi 0, %s23
    %s26 = sphi 0, %s24
    %s27 = sphi 0, %s25
    %s28 = sphi 0, %s26
    %s36 = sphi 0, %s36
    %s38 = sphi 0, %s36
    %s39 = sphi 0, %s38
    %s53 = sphi 0, %s39
    %s61 = sphi 0, %s63
    %s64 = sphi 0, %s61
    %s65 = sphi 0, %s64
    %s81 = sphi 0, %s65
    %s87 = sphi 0, %s89
    %s90 = sphi 0, %s87
    %s91 = sphi 0, %s90
    %s107 = sphi 0, %s91
    %s111 = sphi 0, %s111
    %s113 = sphi 0, %s111
    %s114 = sphi 0, %s113
    %s128 = sphi 0, %s114
    %s132 = sphi 0, %s132
    %s134 = sphi 0, %s132
    %s135 = sphi 0, %s134
    %s149 = sphi 0, %s135
    %s153 = sphi 0, %s153
    %s155 = sphi 0, %s153
    %s156 = sphi 0, %s155
    %s170 = sphi 0, %s156
    %s174 = sphi 0, %s174
    %s176 = sphi 0, %s174
    %s177 = sphi 0, %s176
    %s191 = sphi 0, %s177
    %s195 = sphi 0, %s195
    %s197 = sphi 0, %s195
    %s198 = sphi 0, %s197
    %s212 = sphi 0, %s198
    %s216 = sphi 0, %s216
    %s218 = sphi 0, %s216
    %s219 = sphi 0, %s218
    %s233 = sphi 0, %s219
    %s241 = sphi 0, %s243
    %s244 = sphi 0, %s241
    %s245 = sphi 0, %s244
    %s261 = sphi 0, %s245
  $region4: #{psp_att_noguide_head.3} parent=0 // loop_header_branch
    %19 = sbr.rel (%p17) target = $region8
  $region5: #{psp_att_noguide_head.3} parent=0 // loop_body
    %s21 = ssub.s32 %s16, 1
    %s22 = ssub.s32 %s16, 2
    %s29 = sadd.s32 1, %s24
    %p30 = scmp.ge.s32.totalorder %s29, 1
    %s31 = scalar_select %p30, 0, %s29
    %s32 = sadd.s32 1, %s23
    %s33 = scalar_select %p30, %s32, %s23
    %p34 = scmp.ge.s32.totalorder %s33, 2
    %s35 = scalar_select %p34, 0, %s33
    %s37 = sadd.s32 %s36, 1
    %p40 = scmp.eq.s32.totalorder %s16, 1
    %p41 = scmp.ne.s32.totalorder %s36, %s38
    %p42 = scmp.eq.s32.totalorder %s16, 0
    %p43 = por %p41, %p42
    %p44 = scmp.ne.s32.totalorder %s36, %s38
    %p45 = scmp.eq.s32.totalorder %s21, 1
    %p46 = por %p44, %p45
    %p47 = scmp.ne.s32.totalorder %s38, %s39
    %p48 = scmp.eq.s32.totalorder %s21, 0
    %p49 = por %p47, %p48
    %p50 = scmp.ne.s32.totalorder %s38, %s39
    %p51 = scmp.eq.s32.totalorder %s22, 1
    %p52 = por %p50, %p51
    %p54 = scmp.ne.s32.totalorder %s39, %s53
    %p55 = scmp.eq.s32.totalorder %s22, 0
    %p56 = por %p54, %p55
    %s57 = ssub.s32 %s23, %s35
    %s58 = ssub.s32 %s24, %s31
    %s59 = sor.u32 %s57, %s58
    %p60 = scmp.eq.s32.totalorder %s59, 0
    %s62 = sadd.s32 %s61, 1
    %s63 = scalar_select %p60, %s61, %s62
    %p66 = pneg %p60
    %p67 = scmp.eq.s32.totalorder %s16, 1
    %p68 = por %p66, %p67
    %p69 = scmp.ne.s32.totalorder %s61, %s64
    %p70 = scmp.eq.s32.totalorder %s16, 0
    %p71 = por %p69, %p70
    %p72 = scmp.ne.s32.totalorder %s61, %s64
    %p73 = scmp.eq.s32.totalorder %s21, 1
    %p74 = por %p72, %p73
    %p75 = scmp.ne.s32.totalorder %s64, %s65
    %p76 = scmp.eq.s32.totalorder %s21, 0
    %p77 = por %p75, %p76
    %p78 = scmp.ne.s32.totalorder %s64, %s65
    %p79 = scmp.eq.s32.totalorder %s22, 1
    %p80 = por %p78, %p79
    %p82 = scmp.ne.s32.totalorder %s65, %s81
    %p83 = scmp.eq.s32.totalorder %s22, 0
    %p84 = por %p82, %p83
    %s85 = ssub.s32 %s23, %s35
    %p86 = scmp.eq.s32.totalorder %s85, 0
    %s88 = sadd.s32 %s87, 1
    %s89 = scalar_select %p86, %s87, %s88
    %p92 = pneg %p86
    %p93 = scmp.eq.s32.totalorder %s16, 1
    %p94 = por %p92, %p93
    %p95 = scmp.ne.s32.totalorder %s87, %s90
    %p96 = scmp.eq.s32.totalorder %s16, 0
    %p97 = por %p95, %p96
    %p98 = scmp.ne.s32.totalorder %s87, %s90
    %p99 = scmp.eq.s32.totalorder %s21, 1
    %p100 = por %p98, %p99
    %p101 = scmp.ne.s32.totalorder %s90, %s91
    %p102 = scmp.eq.s32.totalorder %s21, 0
    %p103 = por %p101, %p102
    %p104 = scmp.ne.s32.totalorder %s90, %s91
    %p105 = scmp.eq.s32.totalorder %s22, 1
    %p106 = por %p104, %p105
    %p108 = scmp.ne.s32.totalorder %s91, %s107
    %p109 = scmp.eq.s32.totalorder %s22, 0
    %p110 = por %p108, %p109
    %s112 = sadd.s32 %s111, 1
    %p115 = scmp.eq.s32.totalorder %s16, 1
    %p116 = scmp.ne.s32.totalorder %s111, %s113
    %p117 = scmp.eq.s32.totalorder %s16, 0
    %p118 = por %p116, %p117
    %p119 = scmp.ne.s32.totalorder %s111, %s113
    %p120 = scmp.eq.s32.totalorder %s21, 1
    %p121 = por %p119, %p120
    %p122 = scmp.ne.s32.totalorder %s113, %s114
    %p123 = scmp.eq.s32.totalorder %s21, 0
    %p124 = por %p122, %p123
    %p125 = scmp.ne.s32.totalorder %s113, %s114
    %p126 = scmp.eq.s32.totalorder %s22, 1
    %p127 = por %p125, %p126
    %p129 = scmp.ne.s32.totalorder %s114, %s128
    %p130 = scmp.eq.s32.totalorder %s22, 0
    %p131 = por %p129, %p130
    %s133 = sadd.s32 %s132, 1
    %p136 = scmp.eq.s32.totalorder %s16, 1
    %p137 = scmp.ne.s32.totalorder %s132, %s134
    %p138 = scmp.eq.s32.totalorder %s16, 0
    %p139 = por %p137, %p138
    %p140 = scmp.ne.s32.totalorder %s132, %s134
    %p141 = scmp.eq.s32.totalorder %s21, 1
    %p142 = por %p140, %p141
    %p143 = scmp.ne.s32.totalorder %s134, %s135
    %p144 = scmp.eq.s32.totalorder %s21, 0
    %p145 = por %p143, %p144
    %p146 = scmp.ne.s32.totalorder %s134, %s135
    %p147 = scmp.eq.s32.totalorder %s22, 1
    %p148 = por %p146, %p147
    %p150 = scmp.ne.s32.totalorder %s135, %s149
    %p151 = scmp.eq.s32.totalorder %s22, 0
    %p152 = por %p150, %p151
    %s154 = sadd.s32 %s153, 1
    %p157 = scmp.eq.s32.totalorder %s16, 1
    %p158 = scmp.ne.s32.totalorder %s153, %s155
    %p159 = scmp.eq.s32.totalorder %s16, 0
    %p160 = por %p158, %p159
    %p161 = scmp.ne.s32.totalorder %s153, %s155
    %p162 = scmp.eq.s32.totalorder %s21, 1
    %p163 = por %p161, %p162
    %p164 = scmp.ne.s32.totalorder %s155, %s156
    %p165 = scmp.eq.s32.totalorder %s21, 0
    %p166 = por %p164, %p165
    %p167 = scmp.ne.s32.totalorder %s155, %s156
    %p168 = scmp.eq.s32.totalorder %s22, 1
    %p169 = por %p167, %p168
    %p171 = scmp.ne.s32.totalorder %s156, %s170
    %p172 = scmp.eq.s32.totalorder %s22, 0
    %p173 = por %p171, %p172
    %s175 = sadd.s32 %s174, 1
    %p178 = scmp.eq.s32.totalorder %s16, 1
    %p179 = scmp.ne.s32.totalorder %s174, %s176
    %p180 = scmp.eq.s32.totalorder %s16, 0
    %p181 = por %p179, %p180
    %p182 = scmp.ne.s32.totalorder %s174, %s176
    %p183 = scmp.eq.s32.totalorder %s21, 1
    %p184 = por %p182, %p183
    %p185 = scmp.ne.s32.totalorder %s176, %s177
    %p186 = scmp.eq.s32.totalorder %s21, 0
    %p187 = por %p185, %p186
    %p188 = scmp.ne.s32.totalorder %s176, %s177
    %p189 = scmp.eq.s32.totalorder %s22, 1
    %p190 = por %p188, %p189
    %p192 = scmp.ne.s32.totalorder %s177, %s191
    %p193 = scmp.eq.s32.totalorder %s22, 0
    %p194 = por %p192, %p193
    %s196 = sadd.s32 %s195, 1
    %p199 = scmp.eq.s32.totalorder %s16, 1
    %p200 = scmp.ne.s32.totalorder %s195, %s197
    %p201 = scmp.eq.s32.totalorder %s16, 0
    %p202 = por %p200, %p201
    %p203 = scmp.ne.s32.totalorder %s195, %s197
    %p204 = scmp.eq.s32.totalorder %s21, 1
    %p205 = por %p203, %p204
    %p206 = scmp.ne.s32.totalorder %s197, %s198
    %p207 = scmp.eq.s32.totalorder %s21, 0
    %p208 = por %p206, %p207
    %p209 = scmp.ne.s32.totalorder %s197, %s198
    %p210 = scmp.eq.s32.totalorder %s22, 1
    %p211 = por %p209, %p210
    %p213 = scmp.ne.s32.totalorder %s198, %s212
    %p214 = scmp.eq.s32.totalorder %s22, 0
    %p215 = por %p213, %p214
    %s217 = sadd.s32 %s216, 1
    %p220 = scmp.eq.s32.totalorder %s16, 1
    %p221 = scmp.ne.s32.totalorder %s216, %s218
    %p222 = scmp.eq.s32.totalorder %s16, 0
    %p223 = por %p221, %p222
    %p224 = scmp.ne.s32.totalorder %s216, %s218
    %p225 = scmp.eq.s32.totalorder %s21, 1
    %p226 = por %p224, %p225
    %p227 = scmp.ne.s32.totalorder %s218, %s219
    %p228 = scmp.eq.s32.totalorder %s21, 0
    %p229 = por %p227, %p228
    %p230 = scmp.ne.s32.totalorder %s218, %s219
    %p231 = scmp.eq.s32.totalorder %s22, 1
    %p232 = por %p230, %p231
    %p234 = scmp.ne.s32.totalorder %s219, %s233
    %p235 = scmp.eq.s32.totalorder %s22, 0
    %p236 = por %p234, %p235
    %s237 = ssub.s32 %s23, %s35
    %s238 = ssub.s32 %s24, %s31
    %s239 = sor.u32 %s237, %s238
    %p240 = scmp.eq.s32.totalorder %s239, 0
    %s242 = sadd.s32 %s241, 1
    %s243 = scalar_select %p240, %s241, %s242
    %p246 = pneg %p240
    %p247 = scmp.eq.s32.totalorder %s16, 1
    %p248 = por %p246, %p247
    %p249 = scmp.ne.s32.totalorder %s241, %s244
    %p250 = scmp.eq.s32.totalorder %s16, 0
    %p251 = por %p249, %p250
    %p252 = scmp.ne.s32.totalorder %s241, %s244
    %p253 = scmp.eq.s32.totalorder %s21, 1
    %p254 = por %p252, %p253
    %p255 = scmp.ne.s32.totalorder %s244, %s245
    %p256 = scmp.eq.s32.totalorder %s21, 0
    %p257 = por %p255, %p256
    %p258 = scmp.ne.s32.totalorder %s244, %s245
    %p259 = scmp.eq.s32.totalorder %s22, 1
    %p260 = por %p258, %p259
    %p262 = scmp.ne.s32.totalorder %s245, %s261
    %p263 = scmp.eq.s32.totalorder %s22, 0
    %p264 = por %p262, %p263
    %p265 = scmp.le.s32.totalorder 1, %s16
    %p266 = scmp.lt.s32.totalorder %s16, 3
    %p267 = pnand %p265, %p266
    %p268 = pneg %p267
    // Predicated region
    $region9: #{psp_att_noguide_head.3} parent=5 // pred_check
      _
    $region10: #{psp_att_noguide_head.3} parent=5 // pred_check_branch
      %270 = sbr.rel (%p267) target = $region12
    $region11: #{psp_att_noguide_head.3} parent=5 // pred_region
      %s271 = ssub.s32 %s16, 1
      // Predicated region
      $region13: #{psp_att_noguide_head.3} parent=11 // pred_check
        %p272 = pneg %p49
      $region14: #{psp_att_noguide_head.3} parent=11 // pred_check_branch
        %274 = sbr.rel (%p272) target = $region16
      $region15: #{psp_att_noguide_head.3} parent=11 // pred_region
        _
      $region16: #{psp_att_noguide_head.3} parent=11 // pred_fallthru
        _
      // Predicated region
      $region17: #{psp_att_noguide_head.3} parent=11 // pred_check
        %p275 = pneg %p124
      $region18: #{psp_att_noguide_head.3} parent=11 // pred_check_branch
        %277 = sbr.rel (%p275) target = $region20
      $region19: #{psp_att_noguide_head.3} parent=11 // pred_region
        _
      $region20: #{psp_att_noguide_head.3} parent=11 // pred_fallthru
        _
      // Predicated region
      $region21: #{psp_att_noguide_head.3} parent=11 // pred_check
        %p278 = pneg %p145
      $region22: #{psp_att_noguide_head.3} parent=11 // pred_check_branch
        %280 = sbr.rel (%p278) target = $region24
      $region23: #{psp_att_noguide_head.3} parent=11 // pred_region
        _
      $region24: #{psp_att_noguide_head.3} parent=11 // pred_fallthru
        _
      // Predicated region
      $region25: #{psp_att_noguide_head.3} parent=11 // pred_check
        %p281 = pneg %p166
      $region26: #{psp_att_noguide_head.3} parent=11 // pred_check_branch
        %283 = sbr.rel (%p281) target = $region28
      $region27: #{psp_att_noguide_head.3} parent=11 // pred_region
        _
      $region28: #{psp_att_noguide_head.3} parent=11 // pred_fallthru
        _
      // Predicated region
      $region29: #{psp_att_noguide_head.3} parent=11 // pred_check
        %p284 = pneg %p187
      $region30: #{psp_att_noguide_head.3} parent=11 // pred_check_branch
        %286 = sbr.rel (%p284) target = $region32
      $region31: #{psp_att_noguide_head.3} parent=11 // pred_region
        _
      $region32: #{psp_att_noguide_head.3} parent=11 // pred_fallthru
        _
      // Predicated region
      $region33: #{psp_att_noguide_head.3} parent=11 // pred_check
        %p287 = pneg %p208
      $region34: #{psp_att_noguide_head.3} parent=11 // pred_check_branch
        %289 = sbr.rel (%p287) target = $region36
      $region35: #{psp_att_noguide_head.3} parent=11 // pred_region
        _
      $region36: #{psp_att_noguide_head.3} parent=11 // pred_fallthru
        _
      // Predicated region
      $region37: #{psp_att_noguide_head.3} parent=11 // pred_check
        %p290 = pneg %p229
      $region38: #{psp_att_noguide_head.3} parent=11 // pred_check_branch
        %292 = sbr.rel (%p290) target = $region40
      $region39: #{psp_att_noguide_head.3} parent=11 // pred_region
        _
      $region40: #{psp_att_noguide_head.3} parent=11 // pred_fallthru
        _
    $region12: #{psp_att_noguide_head.3} parent=5 // pred_fallthru
      _
    %p293 = scmp.lt.s32.totalorder %s16, 2
    // Predicated region
    $region41: #{psp_att_noguide_head.3} parent=5 // pred_check
      %p294 = pneg %p293
    $region42: #{psp_att_noguide_head.3} parent=5 // pred_check_branch
      %296 = sbr.rel (%p294) target = $region44
    $region43: #{psp_att_noguide_head.3} parent=5 // pred_region
      // Predicated region
      $region45: #{psp_att_noguide_head.3} parent=43 // pred_check
        %p297 = pneg %p71
      $region46: #{psp_att_noguide_head.3} parent=43 // pred_check_branch
        %299 = sbr.rel (%p297) target = $region48
      $region47: #{psp_att_noguide_head.3} parent=43 // pred_region
        %s300 = smul.u32 18, %s24
        %p301 = scmp.lt.s32.totalorder %s23, 1
        %s302 = scalar_select %p301, %s23, 1
        %p303 = scmp.lt.s32.totalorder %s300, 17
        %s304 = scalar_select %p303, %s300, 17
        %s305 = smul.addr %s302, 18
        %s306 = sadd.s32 %s304, %s305
        %s307 = smul.addr %s306, 4
        %s308 = scalar_lea.vmem %s1, %s307
        %s309 = smul.u32 18, %s24
      $region48: #{psp_att_noguide_head.3} parent=43 // pred_fallthru
        _
      // Predicated region
      $region49: #{psp_att_noguide_head.3} parent=43 // pred_check
        %p310 = pneg %p97
      $region50: #{psp_att_noguide_head.3} parent=43 // pred_check_branch
        %312 = sbr.rel (%p310) target = $region52
      $region51: #{psp_att_noguide_head.3} parent=43 // pred_region
        %p313 = scmp.lt.s32.totalorder %s23, 1
        %s314 = scalar_select %p313, %s23, 1
        %s315 = smul.addr %s314, 5
        %s316 = smul.addr %s315, 4
        %s317 = scalar_lea.vmem %s2, %s316
      $region52: #{psp_att_noguide_head.3} parent=43 // pred_fallthru
        _
    $region44: #{psp_att_noguide_head.3} parent=5 // pred_fallthru
      _
    %p318 = scmp.le.s32.totalorder 1, %s16
    %p319 = scmp.lt.s32.totalorder %s16, 3
    %p320 = pnand %p318, %p319
    %p321 = pneg %p320
    // Predicated region
    $region53: #{psp_att_noguide_head.3} parent=5 // pred_check
      _
    $region54: #{psp_att_noguide_head.3} parent=5 // pred_check_branch
      %323 = sbr.rel (%p320) target = $region56
    $region55: #{psp_att_noguide_head.3} parent=5 // pred_region
      %s324 = ssub.s32 %s16, 1
      %p325 = pneg %p49
      %p326 = pneg %p46
      %s327 = smul.u32 18, %s26
      %p328 = scmp.lt.s32.totalorder %s25, 1
      %s329 = scalar_select %p328, %s25, 1
      %p330 = scmp.lt.s32.totalorder %s327, 17
      %s331 = scalar_select %p330, %s327, 17
      %s332 = smul.addr %s329, 18
      %s333 = sadd.s32 %s331, %s332
      %s334 = smul.addr %s333, 4
      %s335 = scalar_lea.vmem %s1, %s334
      %p336 = pneg %p77
      %p337 = pneg %p74
      %p338 = scmp.lt.s32.totalorder %s25, 1
      %s339 = scalar_select %p338, %s25, 1
      %s340 = smul.addr %s339, 5
      %s341 = smul.addr %s340, 4
      %s342 = scalar_lea.vmem %s2, %s341
      %p343 = pneg %p103
      %p344 = pneg %p100
      %p345 = pneg %p124
      %p346 = pneg %p121
      %p347 = pneg %p145
      %p348 = pneg %p142
      %p349 = pneg %p166
      %p350 = pneg %p163
      %p351 = pneg %p187
      %p352 = pneg %p184
      %p353 = pneg %p208
      %p354 = pneg %p205
      %p355 = pneg %p229
      %p356 = pneg %p226
      %p357 = pneg %p257
      %p358 = pneg %p254
      %s359 = smul.u32 18, %s26
      %p360 = scmp.lt.s32.totalorder %s25, 1
      %s361 = scalar_select %p360, %s25, 1
      %p362 = scmp.lt.s32.totalorder %s359, 17
      %s363 = scalar_select %p362, %s359, 17
      %s364 = smul.addr %s361, 18
      %s365 = sadd.s32 %s363, %s364
      %s366 = smul.addr %s365, 8
      %s367 = scalar_lea.vmem %s9, %s366
      %s368 = smul.u32 18, %s26
      %p369 = scmp.lt.s32.totalorder %s25, 1
      %s370 = scalar_select %p369, %s25, 1
      %p371 = scmp.lt.s32.totalorder %s368, 17
      %s372 = scalar_select %p371, %s368, 17
      %s373 = smul.addr %s370, 18
      %s374 = sadd.s32 %s372, %s373
      %s375 = smul.addr %s374, 4
      %s376 = scalar_lea.vmem %s1, %s375
      %s377 = smul.u32 18, %s26
      %p378 = scmp.lt.s32.totalorder %s25, 1
      %s379 = scalar_select %p378, %s25, 1
      %s380 = smul.addr %s379, 5
      %s381 = smul.addr %s380, 4
      %s382 = scalar_lea.vmem %s2, %s381
      %s383 = smul.u32 18, %s26
      %p384 = scmp.lt.s32.totalorder %s25, 1
      %s385 = scalar_select %p384, %s25, 1
      %p386 = scmp.lt.s32.totalorder %s383, 17
      %s387 = scalar_select %p386, %s383, 17
      %s388 = smul.addr %s385, 18
      %s389 = sadd.s32 %s387, %s388
      %s390 = smul.addr %s389, 8
      %s391 = scalar_lea.vmem %s9, %s390
      %s392 = smul.u32 18, %s26
      %v394 = vld [vmem:[%s376] sm:$0xf]
      %v395 = vld [vmem:[%s376 + $0x4] sm:$0xf]
      %v396 = vld [vmem:[%s376 + $0x8] sm:$0xf]
      %v397 = vld [vmem:[%s376 + $0xc] sm:$0xf]
      %v398 = vld [vmem:[%s376 + $0x10] sm:$0xf]
      %v399 = vld [vmem:[%s376 + $0x14] sm:$0xf]
      %v400 = vld [vmem:[%s376 + $0x18] sm:$0xf]
      %v401 = vld [vmem:[%s376 + $0x1c] sm:$0xf]
      %v402 = vld [vmem:[%s376 + $0x20] sm:$0xf]
      %v403 = vld [vmem:[%s376 + $0x24] sm:$0xf]
      %v404 = vld [vmem:[%s376 + $0x28] sm:$0xf]
      %v405 = vld [vmem:[%s376 + $0x2c] sm:$0xf]
      %v406 = vld [vmem:[%s376 + $0x30] sm:$0xf]
      %v407 = vld [vmem:[%s376 + $0x34] sm:$0xf]
      %v408 = vld [vmem:[%s376 + $0x38] sm:$0xf]
      %v409 = vld [vmem:[%s376 + $0x3c] sm:$0xf]
      %v410 = vld [vmem:[%s376 + $0x40] sm:$0xf]
      %v411 = vld [vmem:[%s376 + $0x44] sm:$0xf]
      %v412 = vld [vmem:[%s382] sm:$0xf]
      %v413 = vld [vmem:[%s382 + $0x4] sm:$0xf]
      %v414 = vld [vmem:[%s382 + $0x8] sm:$0xf]
      %v415 = vld [vmem:[%s382 + $0xc] sm:$0xf]
      %v416 = vld [vmem:[%s382 + $0x10] sm:$0x3]
      %s417 = sld [smem:[#allocation2]]
      %v418 = vld [vmem:[%s3] sm:$0xf]
      %v419 = vld [vmem:[%s3 + $0x4] sm:$0xf]
      %v420 = vld [vmem:[%s3 + $0x8] sm:$0xf]
      %v421 = vld [vmem:[%s3 + $0xc] sm:$0xf]
      %v422 = vld [vmem:[%s3 + $0x10] sm:$0xf]
      %v423 = vld [vmem:[%s3 + $0x14] sm:$0xf]
      %v424 = vld [vmem:[%s3 + $0x18] sm:$0xf]
      %v425 = vld [vmem:[%s3 + $0x1c] sm:$0xf]
      %v426 = vld [vmem:[%s3 + $0x20] sm:$0xf]
      %v427 = vld [vmem:[%s3 + $0x24] sm:$0xf]
      %v428 = vld [vmem:[%s3 + $0x28] sm:$0xf]
      %v429 = vld [vmem:[%s3 + $0x2c] sm:$0xf]
      %v430 = vld [vmem:[%s3 + $0x30] sm:$0xf]
      %v431 = vld [vmem:[%s3 + $0x34] sm:$0xf]
      %v432 = vld [vmem:[%s3 + $0x38] sm:$0xf]
      %v433 = vld [vmem:[%s3 + $0x3c] sm:$0xf]
      %v434 = vld [vmem:[%s4] sm:$0x1]
      %v436 = vlaneseq
      %v437 = vshrl.u32 %v436, 7
      %v438 = vsub.s32 0, %v437
      %v439 = vrot.slane %v434, %v438
      %v459 = vunpack.c.l.b16 %v394
      %v460 = vunpack.c.l.b16 %v395
      %v461 = vunpack.c.l.b16 %v396
      %v462 = vunpack.c.l.b16 %v397
      %v463 = vunpack.c.l.b16 %v398
      %v464 = vunpack.c.l.b16 %v399
      %v465 = vunpack.c.l.b16 %v400
      %v466 = vunpack.c.l.b16 %v401
      %v467 = vunpack.c.l.b16 %v402
      %v468 = vunpack.c.l.b16 %v403
      %v469 = vunpack.c.l.b16 %v404
      %v470 = vunpack.c.l.b16 %v405
      %v471 = vunpack.c.l.b16 %v406
      %v472 = vunpack.c.l.b16 %v407
      %v473 = vunpack.c.l.b16 %v408
      %v474 = vunpack.c.l.b16 %v409
      %v475 = vunpack.c.l.b16 %v410
      %v476 = vunpack.c.l.b16 %v411
      %v477 = vpack.c.b16 %v460, %v459
      %v478 = vpack.c.b16 %v462, %v461
      %v479 = vpack.c.b16 %v464, %v463
      %v480 = vpack.c.b16 %v466, %v465
      %v481 = vpack.c.b16 %v468, %v467
      %v482 = vpack.c.b16 %v470, %v469
      %v483 = vpack.c.b16 %v472, %v471
      %v484 = vpack.c.b16 %v474, %v473
      %v485 = vpack.c.b16 %v476, %v475
      %v511 = vunpack.c.l.b16 %v418
      %v512 = vunpack.c.l.b16 %v419
      %v513 = vunpack.c.l.b16 %v420
      %v514 = vunpack.c.l.b16 %v421
      %v515 = vunpack.c.l.b16 %v422
      %v516 = vunpack.c.l.b16 %v423
      %v517 = vunpack.c.l.b16 %v424
      %v518 = vunpack.c.l.b16 %v425
      %v519 = vunpack.c.l.b16 %v426
      %v520 = vunpack.c.l.b16 %v427
      %v521 = vunpack.c.l.b16 %v428
      %v522 = vunpack.c.l.b16 %v429
      %v523 = vunpack.c.l.b16 %v430
      %v524 = vunpack.c.l.b16 %v431
      %v525 = vunpack.c.l.b16 %v432
      %v526 = vunpack.c.l.b16 %v433
      %v527 = vpack.c.b16 %v512, %v511
      %v528 = vpack.c.b16 %v514, %v513
      %v529 = vpack.c.b16 %v516, %v515
      %v530 = vpack.c.b16 %v518, %v517
      %v531 = vpack.c.b16 %v520, %v519
      %v532 = vpack.c.b16 %v522, %v521
      %v533 = vpack.c.b16 %v524, %v523
      %v534 = vpack.c.b16 %v526, %v525
      %543 = vmatprep.subr.bf16.mxu0 0
      %544 = vmatpush1.bf16.msra.mxu0 %v527
      %545 = vmatprep.subr.bf16.mxu0 0
      %546 = vmatpush1.bf16.msra.mxu0 %v528
      %547 = vmatprep.subr.bf16.mxu0 0
      %548 = vmatpush1.bf16.msra.mxu0 %v529
      %549 = vmatprep.subr.bf16.mxu0 0
      %550 = vmatpush1.bf16.msra.mxu0 %v530
      %551 = vmatprep.subr.bf16.mxu0 0
      %552 = vmatpush1.bf16.msra.mxu0 %v531
      %553 = vmatprep.subr.bf16.mxu0 0
      %554 = vmatpush1.bf16.msra.mxu0 %v532
      %555 = vmatprep.subr.bf16.mxu0 0
      %556 = vmatpush1.bf16.msra.mxu0 %v533
      %557 = vmatprep.subr.bf16.mxu0 0
      %558 = vmatpush1.bf16.msra.mxu0 %v534
      %559 = vmatprep.subr.bf16.mxu0 0
      %560 = vmatpush1.bf16.msra.mxu0 0
      %561 = vmatprep.subr.bf16.mxu0 0
      %562 = vmatpush1.bf16.msra.mxu0 0
      %563 = vmatprep.subr.bf16.mxu0 0
      %564 = vmatpush1.bf16.msra.mxu0 0
      %565 = vmatprep.subr.bf16.mxu0 0
      %566 = vmatpush1.bf16.msra.mxu0 0
      %567 = vmatprep.subr.bf16.mxu0 0
      %568 = vmatpush1.bf16.msra.mxu0 0
      %569 = vmatprep.subr.bf16.mxu0 0
      %570 = vmatpush1.bf16.msra.mxu0 0
      %571 = vmatprep.subr.bf16.mxu0 0
      %572 = vmatpush1.bf16.msra.mxu0 0
      %573 = vmatprep.subr.bf16.mxu0 0
      %574 = vmatpush1.bf16.msra.mxu0 0
      %575 = vmatprep.mubr.bf16.mxu0 0
      %576 = vmatmul.mubr.bf16.gmra.mrb[0].mxu0 %v477
      %v577 = vpop.f32.mrb[0].mxu0
      %v578 = vadd.f32 %v439, %v577
      %v579 = vpop.f32.mrb[0].mxu0
      %v580 = vpop.f32.mrb[0].mxu0
      %v581 = vadd.f32 %v439, %v580
      %v582 = vpop.f32.mrb[0].mxu0
      %583 = vmatprep.mubr.bf16.mxu0 0
      %584 = vmatmul.mubr.bf16.gmra.mrb[0].mxu0 %v478
      %v585 = vpop.f32.mrb[0].mxu0
      %v586 = vadd.f32 %v439, %v585
      %v587 = vpop.f32.mrb[0].mxu0
      %v588 = vpop.f32.mrb[0].mxu0
      %v589 = vadd.f32 %v439, %v588
      %v590 = vpop.f32.mrb[0].mxu0
      %591 = vmatprep.mubr.bf16.mxu0 0
      %592 = vmatmul.mubr.bf16.gmra.mrb[0].mxu0 %v479
      %v593 = vpop.f32.mrb[0].mxu0
      %v594 = vadd.f32 %v439, %v593
      %v595 = vpop.f32.mrb[0].mxu0
      %v596 = vpop.f32.mrb[0].mxu0
      %v597 = vadd.f32 %v439, %v596
      %v598 = vpop.f32.mrb[0].mxu0
      %599 = vmatprep.mubr.bf16.mxu0 0
      %600 = vmatmul.mubr.bf16.gmra.mrb[0].mxu0 %v480
      %v601 = vpop.f32.mrb[0].mxu0
      %v602 = vadd.f32 %v439, %v601
      %v603 = vpop.f32.mrb[0].mxu0
      %v604 = vpop.f32.mrb[0].mxu0
      %v605 = vadd.f32 %v439, %v604
      %v606 = vpop.f32.mrb[0].mxu0
      %607 = vmatprep.mubr.bf16.mxu0 0
      %608 = vmatmul.mubr.bf16.gmra.mrb[0].mxu0 %v481
      %v609 = vpop.f32.mrb[0].mxu0
      %v610 = vadd.f32 %v439, %v609
      %v611 = vpop.f32.mrb[0].mxu0
      %v612 = vpop.f32.mrb[0].mxu0
      %v613 = vadd.f32 %v439, %v612
      %v614 = vpop.f32.mrb[0].mxu0
      %615 = vmatprep.mubr.bf16.mxu0 0
      %616 = vmatmul.mubr.bf16.gmra.mrb[0].mxu0 %v482
      %v617 = vpop.f32.mrb[0].mxu0
      %v618 = vadd.f32 %v439, %v617
      %v619 = vpop.f32.mrb[0].mxu0
      %v620 = vpop.f32.mrb[0].mxu0
      %v621 = vadd.f32 %v439, %v620
      %v622 = vpop.f32.mrb[0].mxu0
      %623 = vmatprep.mubr.bf16.mxu0 0
      %624 = vmatmul.mubr.bf16.gmra.mrb[0].mxu0 %v483
      %v625 = vpop.f32.mrb[0].mxu0
      %v626 = vadd.f32 %v439, %v625
      %v627 = vpop.f32.mrb[0].mxu0
      %v628 = vpop.f32.mrb[0].mxu0
      %v629 = vadd.f32 %v439, %v628
      %v630 = vpop.f32.mrb[0].mxu0
      %631 = vmatprep.mubr.bf16.mxu0 0
      %632 = vmatmul.mubr.bf16.gmra.mrb[0].mxu0 %v484
      %v633 = vpop.f32.mrb[0].mxu0
      %v634 = vadd.f32 %v439, %v633
      %v635 = vpop.f32.mrb[0].mxu0
      %v636 = vpop.f32.mrb[0].mxu0
      %v637 = vadd.f32 %v439, %v636
      %v638 = vpop.f32.mrb[0].mxu0
      %639 = vmatprep.mubr.bf16.mxu0 0
      %640 = vmatmul.mubr.bf16.gmra.mrb[0].mxu0 %v485
      %v641 = vpop.f32.mrb[0].mxu0
      %v642 = vadd.f32 %v439, %v641
      %v643 = vpop.f32.mrb[0].mxu0
      %v644 = vpop.f32.mrb[0].mxu0
      %v645 = vadd.f32 %v439, %v644
      %v646 = vpop.f32.mrb[0].mxu0
      %647 = vdwg.mxu0
      %v648 = vpack.c.bf16 %v581, %v578
      %v649 = vpack.c.bf16 %v589, %v586
      %v650 = vpack.c.bf16 %v597, %v594
      %v651 = vpack.c.bf16 %v605, %v602
      %v652 = vpack.c.bf16 %v613, %v610
      %v653 = vpack.c.bf16 %v621, %v618
      %v654 = vpack.c.bf16 %v629, %v626
      %v655 = vpack.c.bf16 %v637, %v634
      %v656 = vpack.c.bf16 %v645, %v642
      %v657 = vld [vmem:[%s5] sm:$0xf]
      %v658 = vld [vmem:[%s5 + $0x4] sm:$0xf]
      %v659 = vld [vmem:[%s5 + $0x8] sm:$0xf]
      %v660 = vld [vmem:[%s5 + $0xc] sm:$0xf]
      %v661 = vld [vmem:[%s5 + $0x10] sm:$0xf]
      %v662 = vld [vmem:[%s5 + $0x14] sm:$0xf]
      %v663 = vld [vmem:[%s5 + $0x18] sm:$0xf]
      %v664 = vld [vmem:[%s5 + $0x1c] sm:$0xf]
      %v665 = vld [vmem:[%s5 + $0x20] sm:$0xf]
      %v666 = vld [vmem:[%s5 + $0x24] sm:$0xf]
      %v667 = vld [vmem:[%s5 + $0x28] sm:$0xf]
      %v668 = vld [vmem:[%s5 + $0x2c] sm:$0xf]
      %v669 = vld [vmem:[%s5 + $0x30] sm:$0xf]
      %v670 = vld [vmem:[%s5 + $0x34] sm:$0xf]
      %v671 = vld [vmem:[%s5 + $0x38] sm:$0xf]
      %v672 = vld [vmem:[%s5 + $0x3c] sm:$0xf]
      %v673 = vld [vmem:[%s6] sm:$0x1]
      %v675 = vlaneseq
      %v676 = vshrl.u32 %v675, 7
      %v677 = vsub.s32 0, %v676
      %v678 = vrot.slane %v673, %v677
      %v685 = vunpack.c.l.b16 %v412
      %v686 = vunpack.c.l.b16 %v413
      %v687 = vunpack.c.l.b16 %v414
      %v688 = vunpack.c.l.b16 %v415
      %v689 = vunpack.c.l.b16 %v416
      %v690 = vpack.c.b16 %v686, %v685
      %v691 = vpack.c.b16 %v688, %v687
      %v692 = vpack.c.b16 %v689, %v689
      %v712 = vunpack.c.l.b16 %v657
      %v713 = vunpack.c.l.b16 %v658
      %v714 = vunpack.c.l.b16 %v659
      %v715 = vunpack.c.l.b16 %v660
      %v716 = vunpack.c.l.b16 %v661
      %v717 = vunpack.c.l.b16 %v662
      %v718 = vunpack.c.l.b16 %v663
      %v719 = vunpack.c.l.b16 %v664
      %v720 = vunpack.c.l.b16 %v665
      %v721 = vunpack.c.l.b16 %v666
      %v722 = vunpack.c.l.b16 %v667
      %v723 = vunpack.c.l.b16 %v668
      %v724 = vunpack.c.l.b16 %v669
      %v725 = vunpack.c.l.b16 %v670
      %v726 = vunpack.c.l.b16 %v671
      %v727 = vunpack.c.l.b16 %v672
      %v728 = vpack.c.b16 %v713, %v712
      %v729 = vpack.c.b16 %v715, %v714
      %v730 = vpack.c.b16 %v717, %v716
      %v731 = vpack.c.b16 %v719, %v718
      %v732 = vpack.c.b16 %v721, %v720
      %v733 = vpack.c.b16 %v723, %v722
      %v734 = vpack.c.b16 %v725, %v724
      %v735 = vpack.c.b16 %v727, %v726
      %744 = vmatprep.subr.bf16.mxu0 0
      %745 = vmatpush1.bf16.msra.mxu0 %v728
      %746 = vmatprep.subr.bf16.mxu0 0
      %747 = vmatpush1.bf16.msra.mxu0 %v729
      %748 = vmatprep.subr.bf16.mxu0 0
      %749 = vmatpush1.bf16.msra.mxu0 %v730
      %750 = vmatprep.subr.bf16.mxu0 0
      %751 = vmatpush1.bf16.msra.mxu0 %v731
      %752 = vmatprep.subr.bf16.mxu0 0
      %753 = vmatpush1.bf16.msra.mxu0 %v732
      %754 = vmatprep.subr.bf16.mxu0 0
      %755 = vmatpush1.bf16.msra.mxu0 %v733
      %756 = vmatprep.subr.bf16.mxu0 0
      %757 = vmatpush1.bf16.msra.mxu0 %v734
      %758 = vmatprep.subr.bf16.mxu0 0
      %759 = vmatpush1.bf16.msra.mxu0 %v735
      %760 = vmatprep.subr.bf16.mxu0 0
      %761 = vmatpush1.bf16.msra.mxu0 0
      %762 = vmatprep.subr.bf16.mxu0 0
      %763 = vmatpush1.bf16.msra.mxu0 0
      %764 = vmatprep.subr.bf16.mxu0 0
      %765 = vmatpush1.bf16.msra.mxu0 0
      %766 = vmatprep.subr.bf16.mxu0 0
      %767 = vmatpush1.bf16.msra.mxu0 0
      %768 = vmatprep.subr.bf16.mxu0 0
      %769 = vmatpush1.bf16.msra.mxu0 0
      %770 = vmatprep.subr.bf16.mxu0 0
      %771 = vmatpush1.bf16.msra.mxu0 0
      %772 = vmatprep.subr.bf16.mxu0 0
      %773 = vmatpush1.bf16.msra.mxu0 0
      %774 = vmatprep.subr.bf16.mxu0 0
      %775 = vmatpush1.bf16.msra.mxu0 0
      %776 = vmatprep.mubr.bf16.mxu0 0
      %777 = vmatmul.mubr.bf16.gmra.mrb[0].mxu0 %v690
      %v778 = vpop.f32.mrb[0].mxu0
      %v779 = vadd.f32 %v678, %v778
      %v780 = vpop.f32.mrb[0].mxu0
      %v781 = vpop.f32.mrb[0].mxu0
      %v782 = vadd.f32 %v678, %v781
      %v783 = vpop.f32.mrb[0].mxu0
      %784 = vmatprep.mubr.bf16.mxu0 0
      %785 = vmatmul.mubr.bf16.gmra.mrb[0].mxu0 %v691
      %v786 = vpop.f32.mrb[0].mxu0
      %v787 = vadd.f32 %v678, %v786
      %v788 = vpop.f32.mrb[0].mxu0
      %v789 = vpop.f32.mrb[0].mxu0
      %v790 = vadd.f32 %v678, %v789
      %v791 = vpop.f32.mrb[0].mxu0
      %792 = vmatprep.mubr.bf16.mxu0 0
      %793 = vmatmul.mubr.bf16.gmra.mrb[0].mxu0 %v692
      %v794 = vpop.f32.mrb[0].mxu0
      %v795 = vadd.f32 %v678, %v794
      %v796 = vpop.f32.mrb[0].mxu0
      %v797 = vpop.f32.mrb[0].mxu0
      %v798 = vpop.f32.mrb[0].mxu0
      %799 = vdwg.mxu0
      %v800 = vpack.c.bf16 %v782, %v779
      %v801 = vpack.c.bf16 %v790, %v787
      %v802 = vpack.c.bf16 %v795, %v795
      %803 = vmatprep.subr.bf16.mxu0 0
      %804 = vmatpush1.bf16.xpose.msra.mxu0 %v800
      %805 = vmatprep.subr.bf16.mxu0 0
      %806 = vmatpush1.bf16.xpose.msra.mxu0 %v801
      %807 = vmatprep.subr.bf16.mxu0 0
      %808 = vmatpush1.bf16.xpose.msra.mxu0 %v802
      %809 = vmatprep.subr.bf16.mxu0 0
      %810 = vmatpush1.bf16.xpose.msra.mxu0 0
      %811 = vmatprep.subr.bf16.mxu0 0
      %812 = vmatpush1.bf16.xpose.msra.mxu0 0
      %813 = vmatprep.subr.bf16.mxu0 0
      %814 = vmatpush1.bf16.xpose.msra.mxu0 0
      %815 = vmatprep.subr.bf16.mxu0 0
      %816 = vmatpush1.bf16.xpose.msra.mxu0 0
      %817 = vmatprep.subr.bf16.mxu0 0
      %818 = vmatpush1.bf16.xpose.msra.mxu0 0
      %819 = vmatprep.subr.bf16.mxu0 0
      %820 = vmatpush1.bf16.xpose.msra.mxu0 0
      %821 = vmatprep.subr.bf16.mxu0 0
      %822 = vmatpush1.bf16.xpose.msra.mxu0 0
      %823 = vmatprep.subr.bf16.mxu0 0
      %824 = vmatpush1.bf16.xpose.msra.mxu0 0
      %825 = vmatprep.subr.bf16.mxu0 0
      %826 = vmatpush1.bf16.xpose.msra.mxu0 0
      %827 = vmatprep.subr.bf16.mxu0 0
      %828 = vmatpush1.bf16.xpose.msra.mxu0 0
      %829 = vmatprep.subr.bf16.mxu0 0
      %830 = vmatpush1.bf16.xpose.msra.mxu0 0
      %831 = vmatprep.subr.bf16.mxu0 0
      %832 = vmatpush1.bf16.xpose.msra.mxu0 0
      %833 = vmatprep.subr.bf16.mxu0 0
      %834 = vmatpush1.bf16.xpose.msra.mxu0 0
      %835 = vmatprep.mubr.bf16.mxu0 0
      %836 = vmatmul.mubr.bf16.gmra.mrb[0].mxu0 %v648
      %v837 = vpop.f32.mrb[0].mxu0
      %v838 = vadd.f32 0.0, %v837
      %v839 = vpop.f32.mrb[0].mxu0
      %v840 = vpop.f32.mrb[0].mxu0
      %v841 = vadd.f32 0.0, %v840
      %v842 = vpop.f32.mrb[0].mxu0
      %843 = vmatprep.mubr.bf16.mxu0 0
      %844 = vmatmul.mubr.bf16.gmra.mrb[0].mxu0 %v649
      %v845 = vpop.f32.mrb[0].mxu0
      %v846 = vadd.f32 0.0, %v845
      %v847 = vpop.f32.mrb[0].mxu0
      %v848 = vpop.f32.mrb[0].mxu0
      %v849 = vadd.f32 0.0, %v848
      %v850 = vpop.f32.mrb[0].mxu0
      %851 = vmatprep.mubr.bf16.mxu0 0
      %852 = vmatmul.mubr.bf16.gmra.mrb[0].mxu0 %v650
      %v853 = vpop.f32.mrb[0].mxu0
      %v854 = vadd.f32 0.0, %v853
      %v855 = vpop.f32.mrb[0].mxu0
      %v856 = vpop.f32.mrb[0].mxu0
      %v857 = vadd.f32 0.0, %v856
      %v858 = vpop.f32.mrb[0].mxu0
      %859 = vmatprep.mubr.bf16.mxu0 0
      %860 = vmatmul.mubr.bf16.gmra.mrb[0].mxu0 %v651
      %v861 = vpop.f32.mrb[0].mxu0
      %v862 = vadd.f32 0.0, %v861
      %v863 = vpop.f32.mrb[0].mxu0
      %v864 = vpop.f32.mrb[0].mxu0
      %v865 = vadd.f32 0.0, %v864
      %v866 = vpop.f32.mrb[0].mxu0
      %867 = vmatprep.mubr.bf16.mxu0 0
      %868 = vmatmul.mubr.bf16.gmra.mrb[0].mxu0 %v652
      %v869 = vpop.f32.mrb[0].mxu0
      %v870 = vadd.f32 0.0, %v869
      %v871 = vpop.f32.mrb[0].mxu0
      %v872 = vpop.f32.mrb[0].mxu0
      %v873 = vadd.f32 0.0, %v872
      %v874 = vpop.f32.mrb[0].mxu0
      %875 = vmatprep.mubr.bf16.mxu0 0
      %876 = vmatmul.mubr.bf16.gmra.mrb[0].mxu0 %v653
      %v877 = vpop.f32.mrb[0].mxu0
      %v878 = vadd.f32 0.0, %v877
      %v879 = vpop.f32.mrb[0].mxu0
      %v880 = vpop.f32.mrb[0].mxu0
      %v881 = vadd.f32 0.0, %v880
      %v882 = vpop.f32.mrb[0].mxu0
      %883 = vmatprep.mubr.bf16.mxu0 0
      %884 = vmatmul.mubr.bf16.gmra.mrb[0].mxu0 %v654
      %v885 = vpop.f32.mrb[0].mxu0
      %v886 = vadd.f32 0.0, %v885
      %v887 = vpop.f32.mrb[0].mxu0
      %v888 = vpop.f32.mrb[0].mxu0
      %v889 = vadd.f32 0.0, %v888
      %v890 = vpop.f32.mrb[0].mxu0
      %891 = vmatprep.mubr.bf16.mxu0 0
      %892 = vmatmul.mubr.bf16.gmra.mrb[0].mxu0 %v655
      %v893 = vpop.f32.mrb[0].mxu0
      %v894 = vadd.f32 0.0, %v893
      %v895 = vpop.f32.mrb[0].mxu0
      %v896 = vpop.f32.mrb[0].mxu0
      %v897 = vadd.f32 0.0, %v896
      %v898 = vpop.f32.mrb[0].mxu0
      %899 = vmatprep.mubr.bf16.mxu0 0
      %900 = vmatmul.mubr.bf16.gmra.mrb[0].mxu0 %v656
      %v901 = vpop.f32.mrb[0].mxu0
      %v902 = vadd.f32 0.0, %v901
      %v903 = vpop.f32.mrb[0].mxu0
      %v904 = vpop.f32.mrb[0].mxu0
      %v905 = vadd.f32 0.0, %v904
      %v906 = vpop.f32.mrb[0].mxu0
      %907 = vdwg.mxu0
      %vm908 = vcmask 293888
      %v909 = vsel %vm908, %v838, -inf
      %910 = vmax.xlane.f32.xlu0 %v909
      %v911 = vpop.xlane.xlu0 %910
      %v912 = vsel %vm908, %v841, -inf
      %913 = vmax.xlane.f32.xlu0 %v912
      %v914 = vpop.xlane.xlu0 %913
      %v915 = vsel %vm908, %v846, -inf
      %916 = vmax.xlane.f32.xlu0 %v915
      %v917 = vpop.xlane.xlu0 %916
      %v918 = vsel %vm908, %v849, -inf
      %919 = vmax.xlane.f32.xlu0 %v918
      %v920 = vpop.xlane.xlu0 %919
      %v921 = vsel %vm908, %v854, -inf
      %922 = vmax.xlane.f32.xlu0 %v921
      %v923 = vpop.xlane.xlu0 %922
      %v924 = vsel %vm908, %v857, -inf
      %925 = vmax.xlane.f32.xlu0 %v924
      %v926 = vpop.xlane.xlu0 %925
      %v927 = vsel %vm908, %v862, -inf
      %928 = vmax.xlane.f32.xlu0 %v927
      %v929 = vpop.xlane.xlu0 %928
      %v930 = vsel %vm908, %v865, -inf
      %931 = vmax.xlane.f32.xlu0 %v930
      %v932 = vpop.xlane.xlu0 %931
      %v933 = vsel %vm908, %v870, -inf
      %934 = vmax.xlane.f32.xlu0 %v933
      %v935 = vpop.xlane.xlu0 %934
      %v936 = vsel %vm908, %v873, -inf
      %937 = vmax.xlane.f32.xlu0 %v936
      %v938 = vpop.xlane.xlu0 %937
      %v939 = vsel %vm908, %v878, -inf
      %940 = vmax.xlane.f32.xlu0 %v939
      %v941 = vpop.xlane.xlu0 %940
      %v942 = vsel %vm908, %v881, -inf
      %943 = vmax.xlane.f32.xlu0 %v942
      %v944 = vpop.xlane.xlu0 %943
      %v945 = vsel %vm908, %v886, -inf
      %946 = vmax.xlane.f32.xlu0 %v945
      %v947 = vpop.xlane.xlu0 %946
      %v948 = vsel %vm908, %v889, -inf
      %949 = vmax.xlane.f32.xlu0 %v948
      %v950 = vpop.xlane.xlu0 %949
      %v951 = vsel %vm908, %v894, -inf
      %952 = vmax.xlane.f32.xlu0 %v951
      %v953 = vpop.xlane.xlu0 %952
      %v954 = vsel %vm908, %v897, -inf
      %955 = vmax.xlane.f32.xlu0 %v954
      %v956 = vpop.xlane.xlu0 %955
      %v957 = vsel %vm908, %v902, -inf
      %958 = vmax.xlane.f32.xlu0 %v957
      %v959 = vpop.xlane.xlu0 %958
      %v960 = vsel %vm908, %v905, -inf
      %961 = vmax.xlane.f32.xlu0 %v960
      %v962 = vpop.xlane.xlu0 %961
      %v963 = vsub.f32 %v838, %v911
      %v964 = vsub.f32 %v841, %v914
      %v965 = vsub.f32 %v846, %v917
      %v966 = vsub.f32 %v849, %v920
      %v967 = vsub.f32 %v854, %v923
      %v968 = vsub.f32 %v857, %v926
      %v969 = vsub.f32 %v862, %v929
      %v970 = vsub.f32 %v865, %v932
      %v971 = vsub.f32 %v870, %v935
      %v972 = vsub.f32 %v873, %v938
      %v973 = vsub.f32 %v878, %v941
      %v974 = vsub.f32 %v881, %v944
      %v975 = vsub.f32 %v886, %v947
      %v976 = vsub.f32 %v889, %v950
      %v977 = vsub.f32 %v894, %v953
      %v978 = vsub.f32 %v897, %v956
      %v979 = vsub.f32 %v902, %v959
      %v980 = vsub.f32 %v905, %v962
      %v981 = vmul.f32 %v963, 1.442695
      %v982 = vpow.pop %v981
      %v983 = vmul.f32 %v964, 1.442695
      %v984 = vpow.pop %v983
      %v985 = vmul.f32 %v965, 1.442695
      %v986 = vpow.pop %v985
      %v987 = vmul.f32 %v966, 1.442695
      %v988 = vpow.pop %v987
      %v989 = vmul.f32 %v967, 1.442695
      %v990 = vpow.pop %v989
      %v991 = vmul.f32 %v968, 1.442695
      %v992 = vpow.pop %v991
      %v993 = vmul.f32 %v969, 1.442695
      %v994 = vpow.pop %v993
      %v995 = vmul.f32 %v970, 1.442695
      %v996 = vpow.pop %v995
      %v997 = vmul.f32 %v971, 1.442695
      %v998 = vpow.pop %v997
      %v999 = vmul.f32 %v972, 1.442695
      %v1000 = vpow.pop %v999
      %v1001 = vmul.f32 %v973, 1.442695
      %v1002 = vpow.pop %v1001
      %v1003 = vmul.f32 %v974, 1.442695
      %v1004 = vpow.pop %v1003
      %v1005 = vmul.f32 %v975, 1.442695
      %v1006 = vpow.pop %v1005
      %v1007 = vmul.f32 %v976, 1.442695
      %v1008 = vpow.pop %v1007
      %v1009 = vmul.f32 %v977, 1.442695
      %v1010 = vpow.pop %v1009
      %v1011 = vmul.f32 %v978, 1.442695
      %v1012 = vpow.pop %v1011
      %v1013 = vmul.f32 %v979, 1.442695
      %v1014 = vpow.pop %v1013
      %v1015 = vmul.f32 %v980, 1.442695
      %v1016 = vpow.pop %v1015
      %v1017 = vsel %vm908, %v982, 0.0
      %1018 = vadd.xlane.f32.xlu0 %v1017
      %v1019 = vpop.xlane.xlu0 %1018
      %v1020 = vsel %vm908, %v984, 0.0
      %1021 = vadd.xlane.f32.xlu0 %v1020
      %v1022 = vpop.xlane.xlu0 %1021
      %v1023 = vsel %vm908, %v986, 0.0
      %1024 = vadd.xlane.f32.xlu0 %v1023
      %v1025 = vpop.xlane.xlu0 %1024
      %v1026 = vsel %vm908, %v988, 0.0
      %1027 = vadd.xlane.f32.xlu0 %v1026
      %v1028 = vpop.xlane.xlu0 %1027
      %v1029 = vsel %vm908, %v990, 0.0
      %1030 = vadd.xlane.f32.xlu0 %v1029
      %v1031 = vpop.xlane.xlu0 %1030
      %v1032 = vsel %vm908, %v992, 0.0
      %1033 = vadd.xlane.f32.xlu0 %v1032
      %v1034 = vpop.xlane.xlu0 %1033
      %v1035 = vsel %vm908, %v994, 0.0
      %1036 = vadd.xlane.f32.xlu0 %v1035
      %v1037 = vpop.xlane.xlu0 %1036
      %v1038 = vsel %vm908, %v996, 0.0
      %1039 = vadd.xlane.f32.xlu0 %v1038
      %v1040 = vpop.xlane.xlu0 %1039
      %v1041 = vsel %vm908, %v998, 0.0
      %1042 = vadd.xlane.f32.xlu0 %v1041
      %v1043 = vpop.xlane.xlu0 %1042
      %v1044 = vsel %vm908, %v1000, 0.0
      %1045 = vadd.xlane.f32.xlu0 %v1044
      %v1046 = vpop.xlane.xlu0 %1045
      %v1047 = vsel %vm908, %v1002, 0.0
      %1048 = vadd.xlane.f32.xlu0 %v1047
      %v1049 = vpop.xlane.xlu0 %1048
      %v1050 = vsel %vm908, %v1004, 0.0
      %1051 = vadd.xlane.f32.xlu0 %v1050
      %v1052 = vpop.xlane.xlu0 %1051
      %v1053 = vsel %vm908, %v1006, 0.0
      %1054 = vadd.xlane.f32.xlu0 %v1053
      %v1055 = vpop.xlane.xlu0 %1054
      %v1056 = vsel %vm908, %v1008, 0.0
      %1057 = vadd.xlane.f32.xlu0 %v1056
      %v1058 = vpop.xlane.xlu0 %1057
      %v1059 = vsel %vm908, %v1010, 0.0
      %1060 = vadd.xlane.f32.xlu0 %v1059
      %v1061 = vpop.xlane.xlu0 %1060
      %v1062 = vsel %vm908, %v1012, 0.0
      %1063 = vadd.xlane.f32.xlu0 %v1062
      %v1064 = vpop.xlane.xlu0 %1063
      %v1065 = vsel %vm908, %v1014, 0.0
      %1066 = vadd.xlane.f32.xlu0 %v1065
      %v1067 = vpop.xlane.xlu0 %1066
      %v1068 = vsel %vm908, %v1016, 0.0
      %1069 = vadd.xlane.f32.xlu0 %v1068
      %v1070 = vpop.xlane.xlu0 %1069
      %v1071 = vrcp.pop %v1019
      %v1072 = vrcp.pop %v1022
      %v1073 = vrcp.pop %v1025
      %v1074 = vrcp.pop %v1028
      %v1075 = vrcp.pop %v1031
      %v1076 = vrcp.pop %v1034
      %v1077 = vrcp.pop %v1037
      %v1078 = vrcp.pop %v1040
      %v1079 = vrcp.pop %v1043
      %v1080 = vrcp.pop %v1046
      %v1081 = vrcp.pop %v1049
      %v1082 = vrcp.pop %v1052
      %v1083 = vrcp.pop %v1055
      %v1084 = vrcp.pop %v1058
      %v1085 = vrcp.pop %v1061
      %v1086 = vrcp.pop %v1064
      %v1087 = vrcp.pop %v1067
      %v1088 = vrcp.pop %v1070
      %v1089 = vmul.f32 %v982, %v1071
      %v1090 = vmul.f32 %v984, %v1072
      %v1091 = vmul.f32 %v986, %v1073
      %v1092 = vmul.f32 %v988, %v1074
      %v1093 = vmul.f32 %v990, %v1075
      %v1094 = vmul.f32 %v992, %v1076
      %v1095 = vmul.f32 %v994, %v1077
      %v1096 = vmul.f32 %v996, %v1078
      %v1097 = vmul.f32 %v998, %v1079
      %v1098 = vmul.f32 %v1000, %v1080
      %v1099 = vmul.f32 %v1002, %v1081
      %v1100 = vmul.f32 %v1004, %v1082
      %v1101 = vmul.f32 %v1006, %v1083
      %v1102 = vmul.f32 %v1008, %v1084
      %v1103 = vmul.f32 %v1010, %v1085
      %v1104 = vmul.f32 %v1012, %v1086
      %v1105 = vmul.f32 %v1014, %v1087
      %v1106 = vmul.f32 %v1016, %v1088
      %v1107 = vpack.c.bf16 %v1090, %v1089
      %v1108 = vpack.c.bf16 %v1092, %v1091
      %v1109 = vpack.c.bf16 %v1094, %v1093
      %v1110 = vpack.c.bf16 %v1096, %v1095
      %v1111 = vpack.c.bf16 %v1098, %v1097
      %v1112 = vpack.c.bf16 %v1100, %v1099
      %v1113 = vpack.c.bf16 %v1102, %v1101
      %v1114 = vpack.c.bf16 %v1104, %v1103
      %v1115 = vpack.c.bf16 %v1106, %v1105
      %v1117 = vsel %vm908, %v1107, 0
      %v1120 = vsel %vm908, %v1108, 0
      %v1123 = vsel %vm908, %v1109, 0
      %v1126 = vsel %vm908, %v1110, 0
      %v1129 = vsel %vm908, %v1111, 0
      %v1132 = vsel %vm908, %v1112, 0
      %v1135 = vsel %vm908, %v1113, 0
      %v1138 = vsel %vm908, %v1114, 0
      %v1141 = vsel %vm908, %v1115, 0
      %vm1143 = vcmask 1041408
      %v1145 = vsel %vm1143, %v692, 0
      %1147 = vmatprep.subr.bf16.mxu0 0
      %1148 = vmatpush1.bf16.msra.mxu0 %v690
      %1149 = vmatprep.subr.bf16.mxu0 0
      %1150 = vmatpush1.bf16.msra.mxu0 %v691
      %1151 = vmatprep.subr.bf16.mxu0 0
      %1152 = vmatpush1.bf16.msra.mxu0 %v1145
      %1153 = vmatprep.subr.bf16.mxu0 0
      %1154 = vmatpush1.bf16.msra.mxu0 0
      %1155 = vmatprep.subr.bf16.mxu0 0
      %1156 = vmatpush1.bf16.msra.mxu0 0
      %1157 = vmatprep.subr.bf16.mxu0 0
      %1158 = vmatpush1.bf16.msra.mxu0 0
      %1159 = vmatprep.subr.bf16.mxu0 0
      %1160 = vmatpush1.bf16.msra.mxu0 0
      %1161 = vmatprep.subr.bf16.mxu0 0
      %1162 = vmatpush1.bf16.msra.mxu0 0
      %1163 = vmatprep.subr.bf16.mxu0 0
      %1164 = vmatpush1.bf16.msra.mxu0 0
      %1165 = vmatprep.subr.bf16.mxu0 0
      %1166 = vmatpush1.bf16.msra.mxu0 0
      %1167 = vmatprep.subr.bf16.mxu0 0
      %1168 = vmatpush1.bf16.msra.mxu0 0
      %1169 = vmatprep.subr.bf16.mxu0 0
      %1170 = vmatpush1.bf16.msra.mxu0 0
      %1171 = vmatprep.subr.bf16.mxu0 0
      %1172 = vmatpush1.bf16.msra.mxu0 0
      %1173 = vmatprep.subr.bf16.mxu0 0
      %1174 = vmatpush1.bf16.msra.mxu0 0
      %1175 = vmatprep.subr.bf16.mxu0 0
      %1176 = vmatpush1.bf16.msra.mxu0 0
      %1177 = vmatprep.subr.bf16.mxu0 0
      %1178 = vmatpush1.bf16.msra.mxu0 0
      %1179 = vmatprep.mubr.bf16.mxu0 0
      %1180 = vmatmul.mubr.bf16.gmra.mrb[0].mxu0 %v1117
      %v1181 = vpop.f32.mrb[0].mxu0
      %v1182 = vadd.f32 0.0, %v1181
      %v1183 = vpop.f32.mrb[0].mxu0
      %v1184 = vpop.f32.mrb[0].mxu0
      %v1185 = vadd.f32 0.0, %v1184
      %v1186 = vpop.f32.mrb[0].mxu0
      %1187 = vmatprep.mubr.bf16.mxu0 0
      %1188 = vmatmul.mubr.bf16.gmra.mrb[0].mxu0 %v1120
      %v1189 = vpop.f32.mrb[0].mxu0
      %v1190 = vadd.f32 0.0, %v1189
      %v1191 = vpop.f32.mrb[0].mxu0
      %v1192 = vpop.f32.mrb[0].mxu0
      %v1193 = vadd.f32 0.0, %v1192
      %v1194 = vpop.f32.mrb[0].mxu0
      %1195 = vmatprep.mubr.bf16.mxu0 0
      %1196 = vmatmul.mubr.bf16.gmra.mrb[0].mxu0 %v1123
      %v1197 = vpop.f32.mrb[0].mxu0
      %v1198 = vadd.f32 0.0, %v1197
      %v1199 = vpop.f32.mrb[0].mxu0
      %v1200 = vpop.f32.mrb[0].mxu0
      %v1201 = vadd.f32 0.0, %v1200
      %v1202 = vpop.f32.mrb[0].mxu0
      %1203 = vmatprep.mubr.bf16.mxu0 0
      %1204 = vmatmul.mubr.bf16.gmra.mrb[0].mxu0 %v1126
      %v1205 = vpop.f32.mrb[0].mxu0
      %v1206 = vadd.f32 0.0, %v1205
      %v1207 = vpop.f32.mrb[0].mxu0
      %v1208 = vpop.f32.mrb[0].mxu0
      %v1209 = vadd.f32 0.0, %v1208
      %v1210 = vpop.f32.mrb[0].mxu0
      %1211 = vmatprep.mubr.bf16.mxu0 0
      %1212 = vmatmul.mubr.bf16.gmra.mrb[0].mxu0 %v1129
      %v1213 = vpop.f32.mrb[0].mxu0
      %v1214 = vadd.f32 0.0, %v1213
      %v1215 = vpop.f32.mrb[0].mxu0
      %v1216 = vpop.f32.mrb[0].mxu0
      %v1217 = vadd.f32 0.0, %v1216
      %v1218 = vpop.f32.mrb[0].mxu0
      %1219 = vmatprep.mubr.bf16.mxu0 0
      %1220 = vmatmul.mubr.bf16.gmra.mrb[0].mxu0 %v1132
      %v1221 = vpop.f32.mrb[0].mxu0
      %v1222 = vadd.f32 0.0, %v1221
      %v1223 = vpop.f32.mrb[0].mxu0
      %v1224 = vpop.f32.mrb[0].mxu0
      %v1225 = vadd.f32 0.0, %v1224
      %v1226 = vpop.f32.mrb[0].mxu0
      %1227 = vmatprep.mubr.bf16.mxu0 0
      %1228 = vmatmul.mubr.bf16.gmra.mrb[0].mxu0 %v1135
      %v1229 = vpop.f32.mrb[0].mxu0
      %v1230 = vadd.f32 0.0, %v1229
      %v1231 = vpop.f32.mrb[0].mxu0
      %v1232 = vpop.f32.mrb[0].mxu0
      %v1233 = vadd.f32 0.0, %v1232
      %v1234 = vpop.f32.mrb[0].mxu0
      %1235 = vmatprep.mubr.bf16.mxu0 0
      %1236 = vmatmul.mubr.bf16.gmra.mrb[0].mxu0 %v1138
      %v1237 = vpop.f32.mrb[0].mxu0
      %v1238 = vadd.f32 0.0, %v1237
      %v1239 = vpop.f32.mrb[0].mxu0
      %v1240 = vpop.f32.mrb[0].mxu0
      %v1241 = vadd.f32 0.0, %v1240
      %v1242 = vpop.f32.mrb[0].mxu0
      %1243 = vmatprep.mubr.bf16.mxu0 0
      %1244 = vmatmul.mubr.bf16.gmra.mrb[0].mxu0 %v1141
      %v1245 = vpop.f32.mrb[0].mxu0
      %v1246 = vadd.f32 0.0, %v1245
      %v1247 = vpop.f32.mrb[0].mxu0
      %v1248 = vpop.f32.mrb[0].mxu0
      %v1249 = vadd.f32 0.0, %v1248
      %v1250 = vpop.f32.mrb[0].mxu0
      %1251 = vdwg.mxu0
      %v1252 = vunpack.c.l.bf16 %v394
      %v1253 = vunpack.c.l.bf16 %v395
      %v1254 = vunpack.c.l.bf16 %v396
      %v1255 = vunpack.c.l.bf16 %v397
      %v1256 = vunpack.c.l.bf16 %v398
      %v1257 = vunpack.c.l.bf16 %v399
      %v1258 = vunpack.c.l.bf16 %v400
      %v1259 = vunpack.c.l.bf16 %v401
      %v1260 = vunpack.c.l.bf16 %v402
      %v1261 = vunpack.c.l.bf16 %v403
      %v1262 = vunpack.c.l.bf16 %v404
      %v1263 = vunpack.c.l.bf16 %v405
      %v1264 = vunpack.c.l.bf16 %v406
      %v1265 = vunpack.c.l.bf16 %v407
      %v1266 = vunpack.c.l.bf16 %v408
      %v1267 = vunpack.c.l.bf16 %v409
      %v1268 = vunpack.c.l.bf16 %v410
      %v1269 = vunpack.c.l.bf16 %v411
      %v1270 = vstv %s417
      %v1271 = vmul.f32 %v1270, %v1182
      %v1272 = vmul.f32 %v1270, %v1185
      %v1273 = vmul.f32 %v1270, %v1190
      %v1274 = vmul.f32 %v1270, %v1193
      %v1275 = vmul.f32 %v1270, %v1198
      %v1276 = vmul.f32 %v1270, %v1201
      %v1277 = vmul.f32 %v1270, %v1206
      %v1278 = vmul.f32 %v1270, %v1209
      %v1279 = vmul.f32 %v1270, %v1214
      %v1280 = vmul.f32 %v1270, %v1217
      %v1281 = vmul.f32 %v1270, %v1222
      %v1282 = vmul.f32 %v1270, %v1225
      %v1283 = vmul.f32 %v1270, %v1230
      %v1284 = vmul.f32 %v1270, %v1233
      %v1285 = vmul.f32 %v1270, %v1238
      %v1286 = vmul.f32 %v1270, %v1241
      %v1287 = vmul.f32 %v1270, %v1246
      %v1288 = vmul.f32 %v1270, %v1249
      %v1289 = vadd.f32 %v1252, %v1271
      %v1290 = vadd.f32 %v1253, %v1272
      %v1291 = vadd.f32 %v1254, %v1273
      %v1292 = vadd.f32 %v1255, %v1274
      %v1293 = vadd.f32 %v1256, %v1275
      %v1294 = vadd.f32 %v1257, %v1276
      %v1295 = vadd.f32 %v1258, %v1277
      %v1296 = vadd.f32 %v1259, %v1278
      %v1297 = vadd.f32 %v1260, %v1279
      %v1298 = vadd.f32 %v1261, %v1280
      %v1299 = vadd.f32 %v1262, %v1281
      %v1300 = vadd.f32 %v1263, %v1282
      %v1301 = vadd.f32 %v1264, %v1283
      %v1302 = vadd.f32 %v1265, %v1284
      %v1303 = vadd.f32 %v1266, %v1285
      %v1304 = vadd.f32 %v1267, %v1286
      %v1305 = vadd.f32 %v1268, %v1287
      %v1306 = vadd.f32 %v1269, %v1288
      %v1307 = vpack.c.bf16 %v1290, %v1289
      %v1308 = vpack.c.bf16 %v1292, %v1291
      %v1309 = vpack.c.bf16 %v1294, %v1293
      %v1310 = vpack.c.bf16 %v1296, %v1295
      %v1311 = vpack.c.bf16 %v1298, %v1297
      %v1312 = vpack.c.bf16 %v1300, %v1299
      %v1313 = vpack.c.bf16 %v1302, %v1301
      %v1314 = vpack.c.bf16 %v1304, %v1303
      %v1315 = vpack.c.bf16 %v1306, %v1305
      %v1316 = vld [vmem:[%s7] sm:$0xf]
      %v1317 = vld [vmem:[%s7 + $0x4] sm:$0xf]
      %v1318 = vld [vmem:[%s7 + $0x8] sm:$0xf]
      %v1319 = vld [vmem:[%s7 + $0xc] sm:$0xf]
      %v1320 = vld [vmem:[%s7 + $0x10] sm:$0xf]
      %v1321 = vld [vmem:[%s7 + $0x14] sm:$0xf]
      %v1322 = vld [vmem:[%s7 + $0x18] sm:$0xf]
      %v1323 = vld [vmem:[%s7 + $0x1c] sm:$0xf]
      %v1324 = vld [vmem:[%s7 + $0x20] sm:$0xf]
      %v1325 = vld [vmem:[%s7 + $0x24] sm:$0xf]
      %v1326 = vld [vmem:[%s7 + $0x28] sm:$0xf]
      %v1327 = vld [vmem:[%s7 + $0x2c] sm:$0xf]
      %v1328 = vld [vmem:[%s7 + $0x30] sm:$0xf]
      %v1329 = vld [vmem:[%s7 + $0x34] sm:$0xf]
      %v1330 = vld [vmem:[%s7 + $0x38] sm:$0xf]
      %v1331 = vld [vmem:[%s7 + $0x3c] sm:$0xf]
      %v1332 = vld [vmem:[%s8] sm:$0x1]
      %v1334 = vlaneseq
      %v1335 = vshrl.u32 %v1334, 7
      %v1336 = vsub.s32 0, %v1335
      %v1337 = vrot.slane %v1332, %v1336
      %v1355 = vunpack.c.l.b16 %v1316
      %v1356 = vunpack.c.l.b16 %v1317
      %v1357 = vunpack.c.l.b16 %v1318
      %v1358 = vunpack.c.l.b16 %v1319
      %v1359 = vunpack.c.l.b16 %v1320
      %v1360 = vunpack.c.l.b16 %v1321
      %v1361 = vunpack.c.l.b16 %v1322
      %v1362 = vunpack.c.l.b16 %v1323
      %v1363 = vunpack.c.l.b16 %v1324
      %v1364 = vunpack.c.l.b16 %v1325
      %v1365 = vunpack.c.l.b16 %v1326
      %v1366 = vunpack.c.l.b16 %v1327
      %v1367 = vunpack.c.l.b16 %v1328
      %v1368 = vunpack.c.l.b16 %v1329
      %v1369 = vunpack.c.l.b16 %v1330
      %v1370 = vunpack.c.l.b16 %v1331
      %v1371 = vpack.c.b16 %v1356, %v1355
      %v1372 = vpack.c.b16 %v1358, %v1357
      %v1373 = vpack.c.b16 %v1360, %v1359
      %v1374 = vpack.c.b16 %v1362, %v1361
      %v1375 = vpack.c.b16 %v1364, %v1363
      %v1376 = vpack.c.b16 %v1366, %v1365
      %v1377 = vpack.c.b16 %v1368, %v1367
      %v1378 = vpack.c.b16 %v1370, %v1369
      %1387 = vmatprep.subr.bf16.mxu0 0
      %1388 = vmatpush1.bf16.msra.mxu0 %v1371
      %1389 = vmatprep.subr.bf16.mxu0 0
      %1390 = vmatpush1.bf16.msra.mxu0 %v1372
      %1391 = vmatprep.subr.bf16.mxu0 0
      %1392 = vmatpush1.bf16.msra.mxu0 %v1373
      %1393 = vmatprep.subr.bf16.mxu0 0
      %1394 = vmatpush1.bf16.msra.mxu0 %v1374
      %1395 = vmatprep.subr.bf16.mxu0 0
      %1396 = vmatpush1.bf16.msra.mxu0 %v1375
      %1397 = vmatprep.subr.bf16.mxu0 0
      %1398 = vmatpush1.bf16.msra.mxu0 %v1376
      %1399 = vmatprep.subr.bf16.mxu0 0
      %1400 = vmatpush1.bf16.msra.mxu0 %v1377
      %1401 = vmatprep.subr.bf16.mxu0 0
      %1402 = vmatpush1.bf16.msra.mxu0 %v1378
      %1403 = vmatprep.subr.bf16.mxu0 0
      %1404 = vmatpush1.bf16.msra.mxu0 0
      %1405 = vmatprep.subr.bf16.mxu0 0
      %1406 = vmatpush1.bf16.msra.mxu0 0
      %1407 = vmatprep.subr.bf16.mxu0 0
      %1408 = vmatpush1.bf16.msra.mxu0 0
      %1409 = vmatprep.subr.bf16.mxu0 0
      %1410 = vmatpush1.bf16.msra.mxu0 0
      %1411 = vmatprep.subr.bf16.mxu0 0
      %1412 = vmatpush1.bf16.msra.mxu0 0
      %1413 = vmatprep.subr.bf16.mxu0 0
      %1414 = vmatpush1.bf16.msra.mxu0 0
      %1415 = vmatprep.subr.bf16.mxu0 0
      %1416 = vmatpush1.bf16.msra.mxu0 0
      %1417 = vmatprep.subr.bf16.mxu0 0
      %1418 = vmatpush1.bf16.msra.mxu0 0
      %1419 = vmatprep.mubr.bf16.mxu0 0
      %1420 = vmatmul.mubr.bf16.gmra.mrb[0].mxu0 %v1307
      %v1421 = vpop.f32.mrb[0].mxu0
      %v1422 = vadd.f32 %v1337, %v1421
      %v1423 = vpop.f32.mrb[0].mxu0
      %v1424 = vpop.f32.mrb[0].mxu0
      %v1425 = vadd.f32 %v1337, %v1424
      %v1426 = vpop.f32.mrb[0].mxu0
      %1427 = vmatprep.mubr.bf16.mxu0 0
      %1428 = vmatmul.mubr.bf16.gmra.mrb[0].mxu0 %v1308
      %v1429 = vpop.f32.mrb[0].mxu0
      %v1430 = vadd.f32 %v1337, %v1429
      %v1431 = vpop.f32.mrb[0].mxu0
      %v1432 = vpop.f32.mrb[0].mxu0
      %v1433 = vadd.f32 %v1337, %v1432
      %v1434 = vpop.f32.mrb[0].mxu0
      %1435 = vmatprep.mubr.bf16.mxu0 0
      %1436 = vmatmul.mubr.bf16.gmra.mrb[0].mxu0 %v1309
      %v1437 = vpop.f32.mrb[0].mxu0
      %v1438 = vadd.f32 %v1337, %v1437
      %v1439 = vpop.f32.mrb[0].mxu0
      %v1440 = vpop.f32.mrb[0].mxu0
      %v1441 = vadd.f32 %v1337, %v1440
      %v1442 = vpop.f32.mrb[0].mxu0
      %1443 = vmatprep.mubr.bf16.mxu0 0
      %1444 = vmatmul.mubr.bf16.gmra.mrb[0].mxu0 %v1310
      %v1445 = vpop.f32.mrb[0].mxu0
      %v1446 = vadd.f32 %v1337, %v1445
      %v1447 = vpop.f32.mrb[0].mxu0
      %v1448 = vpop.f32.mrb[0].mxu0
      %v1449 = vadd.f32 %v1337, %v1448
      %v1450 = vpop.f32.mrb[0].mxu0
      %1451 = vmatprep.mubr.bf16.mxu0 0
      %1452 = vmatmul.mubr.bf16.gmra.mrb[0].mxu0 %v1311
      %v1453 = vpop.f32.mrb[0].mxu0
      %v1454 = vadd.f32 %v1337, %v1453
      %v1455 = vpop.f32.mrb[0].mxu0
      %v1456 = vpop.f32.mrb[0].mxu0
      %v1457 = vadd.f32 %v1337, %v1456
      %v1458 = vpop.f32.mrb[0].mxu0
      %1459 = vmatprep.mubr.bf16.mxu0 0
      %1460 = vmatmul.mubr.bf16.gmra.mrb[0].mxu0 %v1312
      %v1461 = vpop.f32.mrb[0].mxu0
      %v1462 = vadd.f32 %v1337, %v1461
      %v1463 = vpop.f32.mrb[0].mxu0
      %v1464 = vpop.f32.mrb[0].mxu0
      %v1465 = vadd.f32 %v1337, %v1464
      %v1466 = vpop.f32.mrb[0].mxu0
      %1467 = vmatprep.mubr.bf16.mxu0 0
      %1468 = vmatmul.mubr.bf16.gmra.mrb[0].mxu0 %v1313
      %v1469 = vpop.f32.mrb[0].mxu0
      %v1470 = vadd.f32 %v1337, %v1469
      %v1471 = vpop.f32.mrb[0].mxu0
      %v1472 = vpop.f32.mrb[0].mxu0
      %v1473 = vadd.f32 %v1337, %v1472
      %v1474 = vpop.f32.mrb[0].mxu0
      %1475 = vmatprep.mubr.bf16.mxu0 0
      %1476 = vmatmul.mubr.bf16.gmra.mrb[0].mxu0 %v1314
      %v1477 = vpop.f32.mrb[0].mxu0
      %v1478 = vadd.f32 %v1337, %v1477
      %v1479 = vpop.f32.mrb[0].mxu0
      %v1480 = vpop.f32.mrb[0].mxu0
      %v1481 = vadd.f32 %v1337, %v1480
      %v1482 = vpop.f32.mrb[0].mxu0
      %1483 = vmatprep.mubr.bf16.mxu0 0
      %1484 = vmatmul.mubr.bf16.gmra.mrb[0].mxu0 %v1315
      %v1485 = vpop.f32.mrb[0].mxu0
      %v1486 = vadd.f32 %v1337, %v1485
      %v1487 = vpop.f32.mrb[0].mxu0
      %v1488 = vpop.f32.mrb[0].mxu0
      %v1489 = vadd.f32 %v1337, %v1488
      %v1490 = vpop.f32.mrb[0].mxu0
      %1491 = vdwg.mxu0
      %1492 = vst [vmem:[%s391] sm:$0xff] %v1422
      %1493 = vst [vmem:[%s391 + $0x8] sm:$0xff] %v1425
      %1494 = vst [vmem:[%s391 + $0x10] sm:$0xff] %v1430
      %1495 = vst [vmem:[%s391 + $0x18] sm:$0xff] %v1433
      %1496 = vst [vmem:[%s391 + $0x20] sm:$0xff] %v1438
      %1497 = vst [vmem:[%s391 + $0x28] sm:$0xff] %v1441
      %1498 = vst [vmem:[%s391 + $0x30] sm:$0xff] %v1446
      %1499 = vst [vmem:[%s391 + $0x38] sm:$0xff] %v1449
      %1500 = vst [vmem:[%s391 + $0x40] sm:$0xff] %v1454
      %1501 = vst [vmem:[%s391 + $0x48] sm:$0xff] %v1457
      %1502 = vst [vmem:[%s391 + $0x50] sm:$0xff] %v1462
      %1503 = vst [vmem:[%s391 + $0x58] sm:$0xff] %v1465
      %1504 = vst [vmem:[%s391 + $0x60] sm:$0xff] %v1470
      %1505 = vst [vmem:[%s391 + $0x68] sm:$0xff] %v1473
      %1506 = vst [vmem:[%s391 + $0x70] sm:$0xff] %v1478
      %1507 = vst [vmem:[%s391 + $0x78] sm:$0xff] %v1481
      %1508 = vst [vmem:[%s391 + $0x80] sm:$0xff] %v1486
      %1509 = vst [vmem:[%s391 + $0x88] sm:$0xff] %v1489
      %s1510 = smul.u32 18, %s26
      %p1511 = scmp.lt.s32.totalorder %s25, 1
      %s1512 = scalar_select %p1511, %s25, 1
      %p1513 = scmp.lt.s32.totalorder %s1510, 17
      %s1514 = scalar_select %p1513, %s1510, 17
      %s1515 = smul.addr %s1512, 18
      %s1516 = sadd.s32 %s1514, %s1515
      %s1517 = smul.addr %s1516, 8
      %s1518 = scalar_lea.vmem %s9, %s1517
      // Predicated region
      $region57: #{psp_att_noguide_head.3} parent=55 // pred_check
        %p1519 = pneg %p254
      $region58: #{psp_att_noguide_head.3} parent=55 // pred_check_branch
        %1521 = sbr.rel (%p1519) target = $region60
      $region59: #{psp_att_noguide_head.3} parent=55 // pred_region
        %s1522 = smul.u32 18, %s26
      $region60: #{psp_att_noguide_head.3} parent=55 // pred_fallthru
        _
    $region56: #{psp_att_noguide_head.3} parent=5 // pred_fallthru
      _
    %p1523 = scmp.le.s32.totalorder 2, %s16
    // Predicated region
    $region61: #{psp_att_noguide_head.3} parent=5 // pred_check
      %p1524 = pneg %p1523
    $region62: #{psp_att_noguide_head.3} parent=5 // pred_check_branch
      %1526 = sbr.rel (%p1524) target = $region64
    $region63: #{psp_att_noguide_head.3} parent=5 // pred_region
      %s1527 = ssub.s32 %s16, 2
      // Predicated region
      $region65: #{psp_att_noguide_head.3} parent=63 // pred_check
        %p1528 = pneg %p260
      $region66: #{psp_att_noguide_head.3} parent=63 // pred_check_branch
        %1530 = sbr.rel (%p1528) target = $region68
      $region67: #{psp_att_noguide_head.3} parent=63 // pred_region
        %s1531 = smul.u32 18, %s28
        %p1532 = scmp.lt.s32.totalorder %s27, 1
        %s1533 = scalar_select %p1532, %s27, 1
        %p1534 = scmp.lt.s32.totalorder %s1531, 17
        %s1535 = scalar_select %p1534, %s1531, 17
        %s1536 = smul.addr %s1533, 18
        %s1537 = sadd.s32 %s1535, %s1536
        %s1538 = smul.addr %s1537, 8
        %s1539 = scalar_lea.vmem %s9, %s1538
      $region68: #{psp_att_noguide_head.3} parent=63 // pred_fallthru
        _
    $region64: #{psp_att_noguide_head.3} parent=5 // pred_fallthru
      _
  $region6: #{psp_att_noguide_head.3} parent=0 // loop_footer
    %s20 = sadd.s32 1, %s16
  $region7: #{psp_att_noguide_head.3} parent=0 // loop_footer_branch
    %15 = sbr.rel target = $region3
  $region8: #{psp_att_noguide_head.3} parent=0 // loop_exit
    _

// kernel: psp_att_noguide_head.2
$region0: #{psp_att_noguide_head.2}
  #allocation0 [shape = 'u32[]', space=smem, size = 0x4, offset = 0x4, fixed_abs, tag = 'smem constant byte address 0x4 - core index']
  #allocation1 [shape = 'u32[144,128]{1,0:T(1,128)}', space=vmem, size = 0x12000, scoped, tag = 'internal scratch']
  %s0 = inlined_call_operand.vmem [shape: bf16[288,2304], index: 0, kind: input, shape index: {}]
  %s1 = inlined_call_operand.vmem [shape: bf16[2304,128], index: 1, kind: input, shape index: {}]
  %s2 = inlined_call_operand.vmem [shape: f32[1,128], index: 2, kind: input, shape index: {}]
  %s3 = inlined_call_operand.vmem [shape: f32[1,128], index: 3, kind: input, shape index: {}]
  %s4 = inlined_call_operand.vmem [shape: bf16[288,128], index: 4, kind: output, shape index: {}]
  %s5 = sld [smem:[#allocation0]]
  $region49: #{psp_att_noguide_head.2} parent=0
    _
  %s7 = ssub.s32 1, %s5
  %s8 = scalar_select 0, %s7, %s5
  loop: start=0, step=1, limit=4
  $region2: #{psp_att_noguide_head.2} parent=0 // loop_pre_header
    _
  $region3: #{psp_att_noguide_head.2} parent=0 // loop_header
    %s10 = sphi 0, %s14
    %p11 = scmp.ge.s32.totalorder %s10, 4
    %s20 = sphi 0, %s22
    %s23 = sphi 0, %s20
    %s24 = sphi 0, %s23
    %s40 = sphi 0, %s24
    %s44 = sphi 0, %s44
    %s46 = sphi 0, %s44
    %s47 = sphi 0, %s46
    %s61 = sphi 0, %s47
    %s65 = sphi 0, %s65
    %s67 = sphi 0, %s65
    %s68 = sphi 0, %s67
    %s82 = sphi 0, %s68
    %s86 = sphi 0, %s86
    %s88 = sphi 0, %s86
    %s89 = sphi 0, %s88
    %s103 = sphi 0, %s89
    %s109 = sphi 0, %s111
    %s112 = sphi 0, %s109
    %s113 = sphi 0, %s112
    %s129 = sphi 0, %s113
  $region4: #{psp_att_noguide_head.2} parent=0 // loop_header_branch
    %13 = sbr.rel (%p11) target = $region8
  $region5: #{psp_att_noguide_head.2} parent=0 // loop_body
    %s15 = ssub.s32 %s10, 1
    %s16 = ssub.s32 %s10, 2
    %s17 = sadd.s32 %s10, 1
    %s18 = ssub.s32 %s10, %s17
    %p19 = scmp.eq.s32.totalorder %s18, 0
    %s21 = sadd.s32 %s20, 1
    %s22 = scalar_select %p19, %s20, %s21
    %p25 = pneg %p19
    %p26 = scmp.eq.s32.totalorder %s10, 1
    %p27 = por %p25, %p26
    %p28 = scmp.ne.s32.totalorder %s20, %s23
    %p29 = scmp.eq.s32.totalorder %s10, 0
    %p30 = por %p28, %p29
    %p31 = scmp.ne.s32.totalorder %s20, %s23
    %p32 = scmp.eq.s32.totalorder %s15, 1
    %p33 = por %p31, %p32
    %p34 = scmp.ne.s32.totalorder %s23, %s24
    %p35 = scmp.eq.s32.totalorder %s15, 0
    %p36 = por %p34, %p35
    %p37 = scmp.ne.s32.totalorder %s23, %s24
    %p38 = scmp.eq.s32.totalorder %s16, 1
    %p39 = por %p37, %p38
    %p41 = scmp.ne.s32.totalorder %s24, %s40
    %p42 = scmp.eq.s32.totalorder %s16, 0
    %p43 = por %p41, %p42
    %s45 = sadd.s32 %s44, 1
    %p48 = scmp.eq.s32.totalorder %s10, 1
    %p49 = scmp.ne.s32.totalorder %s44, %s46
    %p50 = scmp.eq.s32.totalorder %s10, 0
    %p51 = por %p49, %p50
    %p52 = scmp.ne.s32.totalorder %s44, %s46
    %p53 = scmp.eq.s32.totalorder %s15, 1
    %p54 = por %p52, %p53
    %p55 = scmp.ne.s32.totalorder %s46, %s47
    %p56 = scmp.eq.s32.totalorder %s15, 0
    %p57 = por %p55, %p56
    %p58 = scmp.ne.s32.totalorder %s46, %s47
    %p59 = scmp.eq.s32.totalorder %s16, 1
    %p60 = por %p58, %p59
    %p62 = scmp.ne.s32.totalorder %s47, %s61
    %p63 = scmp.eq.s32.totalorder %s16, 0
    %p64 = por %p62, %p63
    %s66 = sadd.s32 %s65, 1
    %p69 = scmp.eq.s32.totalorder %s10, 1
    %p70 = scmp.ne.s32.totalorder %s65, %s67
    %p71 = scmp.eq.s32.totalorder %s10, 0
    %p72 = por %p70, %p71
    %p73 = scmp.ne.s32.totalorder %s65, %s67
    %p74 = scmp.eq.s32.totalorder %s15, 1
    %p75 = por %p73, %p74
    %p76 = scmp.ne.s32.totalorder %s67, %s68
    %p77 = scmp.eq.s32.totalorder %s15, 0
    %p78 = por %p76, %p77
    %p79 = scmp.ne.s32.totalorder %s67, %s68
    %p80 = scmp.eq.s32.totalorder %s16, 1
    %p81 = por %p79, %p80
    %p83 = scmp.ne.s32.totalorder %s68, %s82
    %p84 = scmp.eq.s32.totalorder %s16, 0
    %p85 = por %p83, %p84
    %s87 = sadd.s32 %s86, 1
    %p90 = scmp.eq.s32.totalorder %s10, 1
    %p91 = scmp.ne.s32.totalorder %s86, %s88
    %p92 = scmp.eq.s32.totalorder %s10, 0
    %p93 = por %p91, %p92
    %p94 = scmp.ne.s32.totalorder %s86, %s88
    %p95 = scmp.eq.s32.totalorder %s15, 1
    %p96 = por %p94, %p95
    %p97 = scmp.ne.s32.totalorder %s88, %s89
    %p98 = scmp.eq.s32.totalorder %s15, 0
    %p99 = por %p97, %p98
    %p100 = scmp.ne.s32.totalorder %s88, %s89
    %p101 = scmp.eq.s32.totalorder %s16, 1
    %p102 = por %p100, %p101
    %p104 = scmp.ne.s32.totalorder %s89, %s103
    %p105 = scmp.eq.s32.totalorder %s16, 0
    %p106 = por %p104, %p105
    %s107 = ssub.s32 %s10, %s17
    %p108 = scmp.eq.s32.totalorder %s107, 0
    %s110 = sadd.s32 %s109, 1
    %s111 = scalar_select %p108, %s109, %s110
    %p114 = pneg %p108
    %p115 = scmp.eq.s32.totalorder %s10, 1
    %p116 = por %p114, %p115
    %p117 = scmp.ne.s32.totalorder %s109, %s112
    %p118 = scmp.eq.s32.totalorder %s10, 0
    %p119 = por %p117, %p118
    %p120 = scmp.ne.s32.totalorder %s109, %s112
    %p121 = scmp.eq.s32.totalorder %s15, 1
    %p122 = por %p120, %p121
    %p123 = scmp.ne.s32.totalorder %s112, %s113
    %p124 = scmp.eq.s32.totalorder %s15, 0
    %p125 = por %p123, %p124
    %p126 = scmp.ne.s32.totalorder %s112, %s113
    %p127 = scmp.eq.s32.totalorder %s16, 1
    %p128 = por %p126, %p127
    %p130 = scmp.ne.s32.totalorder %s113, %s129
    %p131 = scmp.eq.s32.totalorder %s16, 0
    %p132 = por %p130, %p131
    %p133 = scmp.le.s32.totalorder 1, %s10
    %p134 = scmp.lt.s32.totalorder %s10, 3
    %p135 = pnand %p133, %p134
    %p136 = pneg %p135
    // Predicated region
    $region9: #{psp_att_noguide_head.2} parent=5 // pred_check
      _
    $region10: #{psp_att_noguide_head.2} parent=5 // pred_check_branch
      %138 = sbr.rel (%p135) target = $region12
    $region11: #{psp_att_noguide_head.2} parent=5 // pred_region
      %s139 = ssub.s32 %s10, 1
      // Predicated region
      $region13: #{psp_att_noguide_head.2} parent=11 // pred_check
        %p140 = pneg %p57
      $region14: #{psp_att_noguide_head.2} parent=11 // pred_check_branch
        %142 = sbr.rel (%p140) target = $region16
      $region15: #{psp_att_noguide_head.2} parent=11 // pred_region
        _
      $region16: #{psp_att_noguide_head.2} parent=11 // pred_fallthru
        _
      // Predicated region
      $region17: #{psp_att_noguide_head.2} parent=11 // pred_check
        %p143 = pneg %p78
      $region18: #{psp_att_noguide_head.2} parent=11 // pred_check_branch
        %145 = sbr.rel (%p143) target = $region20
      $region19: #{psp_att_noguide_head.2} parent=11 // pred_region
        _
      $region20: #{psp_att_noguide_head.2} parent=11 // pred_fallthru
        _
      // Predicated region
      $region21: #{psp_att_noguide_head.2} parent=11 // pred_check
        %p146 = pneg %p99
      $region22: #{psp_att_noguide_head.2} parent=11 // pred_check_branch
        %148 = sbr.rel (%p146) target = $region24
      $region23: #{psp_att_noguide_head.2} parent=11 // pred_region
        _
      $region24: #{psp_att_noguide_head.2} parent=11 // pred_fallthru
        _
    $region12: #{psp_att_noguide_head.2} parent=5 // pred_fallthru
      _
    %p149 = scmp.lt.s32.totalorder %s10, 2
    // Predicated region
    $region25: #{psp_att_noguide_head.2} parent=5 // pred_check
      %p150 = pneg %p149
    $region26: #{psp_att_noguide_head.2} parent=5 // pred_check_branch
      %152 = sbr.rel (%p150) target = $region28
    $region27: #{psp_att_noguide_head.2} parent=5 // pred_region
      // Predicated region
      $region29: #{psp_att_noguide_head.2} parent=27 // pred_check
        %p153 = pneg %p30
      $region30: #{psp_att_noguide_head.2} parent=27 // pred_check_branch
        %155 = sbr.rel (%p153) target = $region32
      $region31: #{psp_att_noguide_head.2} parent=27 // pred_region
        %s156 = smul.u32 18, %s10
        %p157 = scmp.lt.s32.totalorder %s156, 35
        %s158 = scalar_select %p157, %s156, 35
        %s159 = smul.addr %s158, 18
        %s160 = smul.addr %s159, 4
        %s161 = scalar_lea.vmem %s0, %s160
        %s162 = smul.u32 18, %s10
      $region32: #{psp_att_noguide_head.2} parent=27 // pred_fallthru
        _
    $region28: #{psp_att_noguide_head.2} parent=5 // pred_fallthru
      _
    %p163 = scmp.le.s32.totalorder 1, %s10
    %p164 = scmp.lt.s32.totalorder %s10, 3
    %p165 = pnand %p163, %p164
    %p166 = pneg %p165
    // Predicated region
    $region33: #{psp_att_noguide_head.2} parent=5 // pred_check
      _
    $region34: #{psp_att_noguide_head.2} parent=5 // pred_check_branch
      %168 = sbr.rel (%p165) target = $region36
    $region35: #{psp_att_noguide_head.2} parent=5 // pred_region
      %s169 = ssub.s32 %s10, 1
      %s170 = smul.u32 18, %s15
      %p171 = scmp.lt.s32.totalorder %s170, 35
      %s172 = scalar_select %p171, %s170, 35
      %s173 = smul.addr %s172, 18
      %s174 = smul.addr %s173, 4
      %s175 = scalar_lea.vmem %s0, %s174
      %p176 = pneg %p36
      %p177 = pneg %p33
      %p178 = pneg %p57
      %p179 = pneg %p54
      %p180 = pneg %p78
      %p181 = pneg %p75
      %p182 = pneg %p99
      %p183 = pneg %p96
      %p184 = pneg %p125
      %p185 = pneg %p122
      %s186 = smul.u32 18, %s15
      %p187 = scmp.lt.s32.totalorder %s186, 35
      %s188 = scalar_select %p187, %s186, 35
      %s189 = smul.addr %s188, 4
      %s190 = scalar_lea.vmem %s4, %s189
      %s191 = smul.u32 18, %s15
      %p192 = scmp.lt.s32.totalorder %s191, 35
      %s193 = scalar_select %p192, %s191, 35
      %s194 = smul.addr %s193, 18
      %s195 = smul.addr %s194, 4
      %s196 = scalar_lea.vmem %s0, %s195
      %s197 = smul.u32 18, %s15
      %s198 = smul.u32 18, %s15
      %p199 = scmp.lt.s32.totalorder %s198, 35
      %s200 = scalar_select %p199, %s198, 35
      %s201 = smul.addr %s200, 4
      %s202 = scalar_lea.vmem %s4, %s201
      %s203 = smul.u32 18, %s15
      %v205 = vld [vmem:[%s196] sm:$0xff]
      %v206 = vld [vmem:[%s196 + $0x8] sm:$0xff]
      %v207 = vld [vmem:[%s196 + $0x10] sm:$0xff]
      %v208 = vld [vmem:[%s196 + $0x18] sm:$0xff]
      %v209 = vld [vmem:[%s196 + $0x20] sm:$0xff]
      %v210 = vld [vmem:[%s196 + $0x28] sm:$0xff]
      %v211 = vld [vmem:[%s196 + $0x30] sm:$0xff]
      %v212 = vld [vmem:[%s196 + $0x38] sm:$0xff]
      %v213 = vld [vmem:[%s196 + $0x40] sm:$0xff]
      %v214 = vld [vmem:[%s196 + $0x48] sm:$0xff]
      %v215 = vld [vmem:[%s196 + $0x50] sm:$0xff]
      %v216 = vld [vmem:[%s196 + $0x58] sm:$0xff]
      %v217 = vld [vmem:[%s196 + $0x60] sm:$0xff]
      %v218 = vld [vmem:[%s196 + $0x68] sm:$0xff]
      %v219 = vld [vmem:[%s196 + $0x70] sm:$0xff]
      %v220 = vld [vmem:[%s196 + $0x78] sm:$0xff]
      %v221 = vld [vmem:[%s196 + $0x80] sm:$0xff]
      %v222 = vld [vmem:[%s196 + $0x88] sm:$0xff]
      %v223 = vld [vmem:[%s196 + $0x90] sm:$0xff]
      %v224 = vld [vmem:[%s196 + $0x98] sm:$0xff]
      %v225 = vld [vmem:[%s196 + $0xa0] sm:$0xff]
      %v226 = vld [vmem:[%s196 + $0xa8] sm:$0xff]
      %v227 = vld [vmem:[%s196 + $0xb0] sm:$0xff]
      %v228 = vld [vmem:[%s196 + $0xb8] sm:$0xff]
      %v229 = vld [vmem:[%s196 + $0xc0] sm:$0xff]
      %v230 = vld [vmem:[%s196 + $0xc8] sm:$0xff]
      %v231 = vld [vmem:[%s196 + $0xd0] sm:$0xff]
      %v232 = vld [vmem:[%s196 + $0xd8] sm:$0xff]
      %v233 = vld [vmem:[%s196 + $0xe0] sm:$0xff]
      %v234 = vld [vmem:[%s196 + $0xe8] sm:$0xff]
      %v235 = vld [vmem:[%s196 + $0xf0] sm:$0xff]
      %v236 = vld [vmem:[%s196 + $0xf8] sm:$0xff]
      %v237 = vld [vmem:[%s196 + $0x100] sm:$0xff]
      %v238 = vld [vmem:[%s196 + $0x108] sm:$0xff]
      %v239 = vld [vmem:[%s196 + $0x110] sm:$0xff]
      %v240 = vld [vmem:[%s196 + $0x118] sm:$0xff]
      %v241 = vld [vmem:[%s196 + $0x120] sm:$0xff]
      %v242 = vld [vmem:[%s196 + $0x128] sm:$0xff]
      %v243 = vld [vmem:[%s196 + $0x130] sm:$0xff]
      %v244 = vld [vmem:[%s196 + $0x138] sm:$0xff]
      %v245 = vld [vmem:[%s196 + $0x140] sm:$0xff]
      %v246 = vld [vmem:[%s196 + $0x148] sm:$0xff]
      %v247 = vld [vmem:[%s196 + $0x150] sm:$0xff]
      %v248 = vld [vmem:[%s196 + $0x158] sm:$0xff]
      %v249 = vld [vmem:[%s196 + $0x160] sm:$0xff]
      %v250 = vld [vmem:[%s196 + $0x168] sm:$0xff]
      %v251 = vld [vmem:[%s196 + $0x170] sm:$0xff]
      %v252 = vld [vmem:[%s196 + $0x178] sm:$0xff]
      %v253 = vld [vmem:[%s196 + $0x180] sm:$0xff]
      %v254 = vld [vmem:[%s196 + $0x188] sm:$0xff]
      %v255 = vld [vmem:[%s196 + $0x190] sm:$0xff]
      %v256 = vld [vmem:[%s196 + $0x198] sm:$0xff]
      %v257 = vld [vmem:[%s196 + $0x1a0] sm:$0xff]
      %v258 = vld [vmem:[%s196 + $0x1a8] sm:$0xff]
      %v259 = vld [vmem:[%s196 + $0x1b0] sm:$0xff]
      %v260 = vld [vmem:[%s196 + $0x1b8] sm:$0xff]
      %v261 = vld [vmem:[%s196 + $0x1c0] sm:$0xff]
      %v262 = vld [vmem:[%s196 + $0x1c8] sm:$0xff]
      %v263 = vld [vmem:[%s196 + $0x1d0] sm:$0xff]
      %v264 = vld [vmem:[%s196 + $0x1d8] sm:$0xff]
      %v265 = vld [vmem:[%s196 + $0x1e0] sm:$0xff]
      %v266 = vld [vmem:[%s196 + $0x1e8] sm:$0xff]
      %v267 = vld [vmem:[%s196 + $0x1f0] sm:$0xff]
      %v268 = vld [vmem:[%s196 + $0x1f8] sm:$0xff]
      %v269 = vld [vmem:[%s196 + $0x200] sm:$0xff]
      %v270 = vld [vmem:[%s196 + $0x208] sm:$0xff]
      %v271 = vld [vmem:[%s196 + $0x210] sm:$0xff]
      %v272 = vld [vmem:[%s196 + $0x218] sm:$0xff]
      %v273 = vld [vmem:[%s196 + $0x220] sm:$0xff]
      %v274 = vld [vmem:[%s196 + $0x228] sm:$0xff]
      %v275 = vld [vmem:[%s196 + $0x230] sm:$0xff]
      %v276 = vld [vmem:[%s196 + $0x238] sm:$0xff]
      %v277 = vld [vmem:[%s196 + $0x240] sm:$0xff]
      %v278 = vld [vmem:[%s196 + $0x248] sm:$0xff]
      %v279 = vld [vmem:[%s196 + $0x250] sm:$0xff]
      %v280 = vld [vmem:[%s196 + $0x258] sm:$0xff]
      %v281 = vld [vmem:[%s196 + $0x260] sm:$0xff]
      %v282 = vld [vmem:[%s196 + $0x268] sm:$0xff]
      %v283 = vld [vmem:[%s196 + $0x270] sm:$0xff]
      %v284 = vld [vmem:[%s196 + $0x278] sm:$0xff]
      %v285 = vld [vmem:[%s196 + $0x280] sm:$0xff]
      %v286 = vld [vmem:[%s196 + $0x288] sm:$0xff]
      %v287 = vld [vmem:[%s196 + $0x290] sm:$0xff]
      %v288 = vld [vmem:[%s196 + $0x298] sm:$0xff]
      %v289 = vld [vmem:[%s196 + $0x2a0] sm:$0xff]
      %v290 = vld [vmem:[%s196 + $0x2a8] sm:$0xff]
      %v291 = vld [vmem:[%s196 + $0x2b0] sm:$0xff]
      %v292 = vld [vmem:[%s196 + $0x2b8] sm:$0xff]
      %v293 = vld [vmem:[%s196 + $0x2c0] sm:$0xff]
      %v294 = vld [vmem:[%s196 + $0x2c8] sm:$0xff]
      %v295 = vld [vmem:[%s196 + $0x2d0] sm:$0xff]
      %v296 = vld [vmem:[%s196 + $0x2d8] sm:$0xff]
      %v297 = vld [vmem:[%s196 + $0x2e0] sm:$0xff]
      %v298 = vld [vmem:[%s196 + $0x2e8] sm:$0xff]
      %v299 = vld [vmem:[%s196 + $0x2f0] sm:$0xff]
      %v300 = vld [vmem:[%s196 + $0x2f8] sm:$0xff]
      %v301 = vld [vmem:[%s196 + $0x300] sm:$0xff]
      %v302 = vld [vmem:[%s196 + $0x308] sm:$0xff]
      %v303 = vld [vmem:[%s196 + $0x310] sm:$0xff]
      %v304 = vld [vmem:[%s196 + $0x318] sm:$0xff]
      %v305 = vld [vmem:[%s196 + $0x320] sm:$0xff]
      %v306 = vld [vmem:[%s196 + $0x328] sm:$0xff]
      %v307 = vld [vmem:[%s196 + $0x330] sm:$0xff]
      %v308 = vld [vmem:[%s196 + $0x338] sm:$0xff]
      %v309 = vld [vmem:[%s196 + $0x340] sm:$0xff]
      %v310 = vld [vmem:[%s196 + $0x348] sm:$0xff]
      %v311 = vld [vmem:[%s196 + $0x350] sm:$0xff]
      %v312 = vld [vmem:[%s196 + $0x358] sm:$0xff]
      %v313 = vld [vmem:[%s196 + $0x360] sm:$0xff]
      %v314 = vld [vmem:[%s196 + $0x368] sm:$0xff]
      %v315 = vld [vmem:[%s196 + $0x370] sm:$0xff]
      %v316 = vld [vmem:[%s196 + $0x378] sm:$0xff]
      %v317 = vld [vmem:[%s196 + $0x380] sm:$0xff]
      %v318 = vld [vmem:[%s196 + $0x388] sm:$0xff]
      %v319 = vld [vmem:[%s196 + $0x390] sm:$0xff]
      %v320 = vld [vmem:[%s196 + $0x398] sm:$0xff]
      %v321 = vld [vmem:[%s196 + $0x3a0] sm:$0xff]
      %v322 = vld [vmem:[%s196 + $0x3a8] sm:$0xff]
      %v323 = vld [vmem:[%s196 + $0x3b0] sm:$0xff]
      %v324 = vld [vmem:[%s196 + $0x3b8] sm:$0xff]
      %v325 = vld [vmem:[%s196 + $0x3c0] sm:$0xff]
      %v326 = vld [vmem:[%s196 + $0x3c8] sm:$0xff]
      %v327 = vld [vmem:[%s196 + $0x3d0] sm:$0xff]
      %v328 = vld [vmem:[%s196 + $0x3d8] sm:$0xff]
      %v329 = vld [vmem:[%s196 + $0x3e0] sm:$0xff]
      %v330 = vld [vmem:[%s196 + $0x3e8] sm:$0xff]
      %v331 = vld [vmem:[%s196 + $0x3f0] sm:$0xff]
      %v332 = vld [vmem:[%s196 + $0x3f8] sm:$0xff]
      %v333 = vld [vmem:[%s196 + $0x400] sm:$0xff]
      %v334 = vld [vmem:[%s196 + $0x408] sm:$0xff]
      %v335 = vld [vmem:[%s196 + $0x410] sm:$0xff]
      %v336 = vld [vmem:[%s196 + $0x418] sm:$0xff]
      %v337 = vld [vmem:[%s196 + $0x420] sm:$0xff]
      %v338 = vld [vmem:[%s196 + $0x428] sm:$0xff]
      %v339 = vld [vmem:[%s196 + $0x430] sm:$0xff]
      %v340 = vld [vmem:[%s196 + $0x438] sm:$0xff]
      %v341 = vld [vmem:[%s196 + $0x440] sm:$0xff]
      %v342 = vld [vmem:[%s196 + $0x448] sm:$0xff]
      %v343 = vld [vmem:[%s196 + $0x450] sm:$0xff]
      %v344 = vld [vmem:[%s196 + $0x458] sm:$0xff]
      %v345 = vld [vmem:[%s196 + $0x460] sm:$0xff]
      %v346 = vld [vmem:[%s196 + $0x468] sm:$0xff]
      %v347 = vld [vmem:[%s196 + $0x470] sm:$0xff]
      %v348 = vld [vmem:[%s196 + $0x478] sm:$0xff]
      %v349 = vld [vmem:[%s196 + $0x480] sm:$0xff]
      %v350 = vld [vmem:[%s196 + $0x488] sm:$0xff]
      %v351 = vld [vmem:[%s196 + $0x490] sm:$0xff]
      %v352 = vld [vmem:[%s196 + $0x498] sm:$0xff]
      %v353 = vld [vmem:[%s196 + $0x4a0] sm:$0xff]
      %v354 = vld [vmem:[%s196 + $0x4a8] sm:$0xff]
      %v355 = vld [vmem:[%s196 + $0x4b0] sm:$0xff]
      %v356 = vld [vmem:[%s196 + $0x4b8] sm:$0xff]
      %v357 = vld [vmem:[%s196 + $0x4c0] sm:$0xff]
      %v358 = vld [vmem:[%s196 + $0x4c8] sm:$0xff]
      %v359 = vld [vmem:[%s196 + $0x4d0] sm:$0xff]
      %v360 = vld [vmem:[%s196 + $0x4d8] sm:$0xff]
      %v361 = vld [vmem:[%s196 + $0x4e0] sm:$0xff]
      %v362 = vld [vmem:[%s196 + $0x4e8] sm:$0xff]
      %v363 = vld [vmem:[%s196 + $0x4f0] sm:$0xff]
      %v364 = vld [vmem:[%s196 + $0x4f8] sm:$0xff]
      %v365 = vld [vmem:[%s196 + $0x500] sm:$0xff]
      %v366 = vld [vmem:[%s196 + $0x508] sm:$0xff]
      %v367 = vld [vmem:[%s1] sm:$0xf]
      %v368 = vld [vmem:[%s1 + $0x4] sm:$0xf]
      %v369 = vld [vmem:[%s1 + $0x8] sm:$0xf]
      %v370 = vld [vmem:[%s1 + $0xc] sm:$0xf]
      %v371 = vld [vmem:[%s1 + $0x10] sm:$0xf]
      %v372 = vld [vmem:[%s1 + $0x14] sm:$0xf]
      %v373 = vld [vmem:[%s1 + $0x18] sm:$0xf]
      %v374 = vld [vmem:[%s1 + $0x1c] sm:$0xf]
      %v375 = vld [vmem:[%s1 + $0x20] sm:$0xf]
      %v376 = vld [vmem:[%s1 + $0x24] sm:$0xf]
      %v377 = vld [vmem:[%s1 + $0x28] sm:$0xf]
      %v378 = vld [vmem:[%s1 + $0x2c] sm:$0xf]
      %v379 = vld [vmem:[%s1 + $0x30] sm:$0xf]
      %v380 = vld [vmem:[%s1 + $0x34] sm:$0xf]
      %v381 = vld [vmem:[%s1 + $0x38] sm:$0xf]
      %v382 = vld [vmem:[%s1 + $0x3c] sm:$0xf]
      %v383 = vld [vmem:[%s1 + $0x40] sm:$0xf]
      %v384 = vld [vmem:[%s1 + $0x44] sm:$0xf]
      %v385 = vld [vmem:[%s1 + $0x48] sm:$0xf]
      %v386 = vld [vmem:[%s1 + $0x4c] sm:$0xf]
      %v387 = vld [vmem:[%s1 + $0x50] sm:$0xf]
      %v388 = vld [vmem:[%s1 + $0x54] sm:$0xf]
      %v389 = vld [vmem:[%s1 + $0x58] sm:$0xf]
      %v390 = vld [vmem:[%s1 + $0x5c] sm:$0xf]
      %v391 = vld [vmem:[%s1 + $0x60] sm:$0xf]
      %v392 = vld [vmem:[%s1 + $0x64] sm:$0xf]
      %v393 = vld [vmem:[%s1 + $0x68] sm:$0xf]
      %v394 = vld [vmem:[%s1 + $0x6c] sm:$0xf]
      %v395 = vld [vmem:[%s1 + $0x70] sm:$0xf]
      %v396 = vld [vmem:[%s1 + $0x74] sm:$0xf]
      %v397 = vld [vmem:[%s1 + $0x78] sm:$0xf]
      %v398 = vld [vmem:[%s1 + $0x7c] sm:$0xf]
      %v399 = vld [vmem:[%s1 + $0x80] sm:$0xf]
      %v400 = vld [vmem:[%s1 + $0x84] sm:$0xf]
      %v401 = vld [vmem:[%s1 + $0x88] sm:$0xf]
      %v402 = vld [vmem:[%s1 + $0x8c] sm:$0xf]
      %v403 = vld [vmem:[%s1 + $0x90] sm:$0xf]
      %v404 = vld [vmem:[%s1 + $0x94] sm:$0xf]
      %v405 = vld [vmem:[%s1 + $0x98] sm:$0xf]
      %v406 = vld [vmem:[%s1 + $0x9c] sm:$0xf]
      %v407 = vld [vmem:[%s1 + $0xa0] sm:$0xf]
      %v408 = vld [vmem:[%s1 + $0xa4] sm:$0xf]
      %v409 = vld [vmem:[%s1 + $0xa8] sm:$0xf]
      %v410 = vld [vmem:[%s1 + $0xac] sm:$0xf]
      %v411 = vld [vmem:[%s1 + $0xb0] sm:$0xf]
      %v412 = vld [vmem:[%s1 + $0xb4] sm:$0xf]
      %v413 = vld [vmem:[%s1 + $0xb8] sm:$0xf]
      %v414 = vld [vmem:[%s1 + $0xbc] sm:$0xf]
      %v415 = vld [vmem:[%s1 + $0xc0] sm:$0xf]
      %v416 = vld [vmem:[%s1 + $0xc4] sm:$0xf]
      %v417 = vld [vmem:[%s1 + $0xc8] sm:$0xf]
      %v418 = vld [vmem:[%s1 + $0xcc] sm:$0xf]
      %v419 = vld [vmem:[%s1 + $0xd0] sm:$0xf]
      %v420 = vld [vmem:[%s1 + $0xd4] sm:$0xf]
      %v421 = vld [vmem:[%s1 + $0xd8] sm:$0xf]
      %v422 = vld [vmem:[%s1 + $0xdc] sm:$0xf]
      %v423 = vld [vmem:[%s1 + $0xe0] sm:$0xf]
      %v424 = vld [vmem:[%s1 + $0xe4] sm:$0xf]
      %v425 = vld [vmem:[%s1 + $0xe8] sm:$0xf]
      %v426 = vld [vmem:[%s1 + $0xec] sm:$0xf]
      %v427 = vld [vmem:[%s1 + $0xf0] sm:$0xf]
      %v428 = vld [vmem:[%s1 + $0xf4] sm:$0xf]
      %v429 = vld [vmem:[%s1 + $0xf8] sm:$0xf]
      %v430 = vld [vmem:[%s1 + $0xfc] sm:$0xf]
      %v431 = vld [vmem:[%s1 + $0x100] sm:$0xf]
      %v432 = vld [vmem:[%s1 + $0x104] sm:$0xf]
      %v433 = vld [vmem:[%s1 + $0x108] sm:$0xf]
      %v434 = vld [vmem:[%s1 + $0x10c] sm:$0xf]
      %v435 = vld [vmem:[%s1 + $0x110] sm:$0xf]
      %v436 = vld [vmem:[%s1 + $0x114] sm:$0xf]
      %v437 = vld [vmem:[%s1 + $0x118] sm:$0xf]
      %v438 = vld [vmem:[%s1 + $0x11c] sm:$0xf]
      %v439 = vld [vmem:[%s1 + $0x120] sm:$0xf]
      %v440 = vld [vmem:[%s1 + $0x124] sm:$0xf]
      %v441 = vld [vmem:[%s1 + $0x128] sm:$0xf]
      %v442 = vld [vmem:[%s1 + $0x12c] sm:$0xf]
      %v443 = vld [vmem:[%s1 + $0x130] sm:$0xf]
      %v444 = vld [vmem:[%s1 + $0x134] sm:$0xf]
      %v445 = vld [vmem:[%s1 + $0x138] sm:$0xf]
      %v446 = vld [vmem:[%s1 + $0x13c] sm:$0xf]
      %v447 = vld [vmem:[%s1 + $0x140] sm:$0xf]
      %v448 = vld [vmem:[%s1 + $0x144] sm:$0xf]
      %v449 = vld [vmem:[%s1 + $0x148] sm:$0xf]
      %v450 = vld [vmem:[%s1 + $0x14c] sm:$0xf]
      %v451 = vld [vmem:[%s1 + $0x150] sm:$0xf]
      %v452 = vld [vmem:[%s1 + $0x154] sm:$0xf]
      %v453 = vld [vmem:[%s1 + $0x158] sm:$0xf]
      %v454 = vld [vmem:[%s1 + $0x15c] sm:$0xf]
      %v455 = vld [vmem:[%s1 + $0x160] sm:$0xf]
      %v456 = vld [vmem:[%s1 + $0x164] sm:$0xf]
      %v457 = vld [vmem:[%s1 + $0x168] sm:$0xf]
      %v458 = vld [vmem:[%s1 + $0x16c] sm:$0xf]
      %v459 = vld [vmem:[%s1 + $0x170] sm:$0xf]
      %v460 = vld [vmem:[%s1 + $0x174] sm:$0xf]
      %v461 = vld [vmem:[%s1 + $0x178] sm:$0xf]
      %v462 = vld [vmem:[%s1 + $0x17c] sm:$0xf]
      %v463 = vld [vmem:[%s1 + $0x180] sm:$0xf]
      %v464 = vld [vmem:[%s1 + $0x184] sm:$0xf]
      %v465 = vld [vmem:[%s1 + $0x188] sm:$0xf]
      %v466 = vld [vmem:[%s1 + $0x18c] sm:$0xf]
      %v467 = vld [vmem:[%s1 + $0x190] sm:$0xf]
      %v468 = vld [vmem:[%s1 + $0x194] sm:$0xf]
      %v469 = vld [vmem:[%s1 + $0x198] sm:$0xf]
      %v470 = vld [vmem:[%s1 + $0x19c] sm:$0xf]
      %v471 = vld [vmem:[%s1 + $0x1a0] sm:$0xf]
      %v472 = vld [vmem:[%s1 + $0x1a4] sm:$0xf]
      %v473 = vld [vmem:[%s1 + $0x1a8] sm:$0xf]
      %v474 = vld [vmem:[%s1 + $0x1ac] sm:$0xf]
      %v475 = vld [vmem:[%s1 + $0x1b0] sm:$0xf]
      %v476 = vld [vmem:[%s1 + $0x1b4] sm:$0xf]
      %v477 = vld [vmem:[%s1 + $0x1b8] sm:$0xf]
      %v478 = vld [vmem:[%s1 + $0x1bc] sm:$0xf]
      %v479 = vld [vmem:[%s1 + $0x1c0] sm:$0xf]
      %v480 = vld [vmem:[%s1 + $0x1c4] sm:$0xf]
      %v481 = vld [vmem:[%s1 + $0x1c8] sm:$0xf]
      %v482 = vld [vmem:[%s1 + $0x1cc] sm:$0xf]
      %v483 = vld [vmem:[%s1 + $0x1d0] sm:$0xf]
      %v484 = vld [vmem:[%s1 + $0x1d4] sm:$0xf]
      %v485 = vld [vmem:[%s1 + $0x1d8] sm:$0xf]
      %v486 = vld [vmem:[%s1 + $0x1dc] sm:$0xf]
      %v487 = vld [vmem:[%s1 + $0x1e0] sm:$0xf]
      %v488 = vld [vmem:[%s1 + $0x1e4] sm:$0xf]
      %v489 = vld [vmem:[%s1 + $0x1e8] sm:$0xf]
      %v490 = vld [vmem:[%s1 + $0x1ec] sm:$0xf]
      %v491 = vld [vmem:[%s1 + $0x1f0] sm:$0xf]
      %v492 = vld [vmem:[%s1 + $0x1f4] sm:$0xf]
      %v493 = vld [vmem:[%s1 + $0x1f8] sm:$0xf]
      %v494 = vld [vmem:[%s1 + $0x1fc] sm:$0xf]
      %v495 = vld [vmem:[%s1 + $0x200] sm:$0xf]
      %v496 = vld [vmem:[%s1 + $0x204] sm:$0xf]
      %v497 = vld [vmem:[%s1 + $0x208] sm:$0xf]
      %v498 = vld [vmem:[%s1 + $0x20c] sm:$0xf]
      %v499 = vld [vmem:[%s1 + $0x210] sm:$0xf]
      %v500 = vld [vmem:[%s1 + $0x214] sm:$0xf]
      %v501 = vld [vmem:[%s1 + $0x218] sm:$0xf]
      %v502 = vld [vmem:[%s1 + $0x21c] sm:$0xf]
      %v503 = vld [vmem:[%s1 + $0x220] sm:$0xf]
      %v504 = vld [vmem:[%s1 + $0x224] sm:$0xf]
      %v505 = vld [vmem:[%s1 + $0x228] sm:$0xf]
      %v506 = vld [vmem:[%s1 + $0x22c] sm:$0xf]
      %v507 = vld [vmem:[%s1 + $0x230] sm:$0xf]
      %v508 = vld [vmem:[%s1 + $0x234] sm:$0xf]
      %v509 = vld [vmem:[%s1 + $0x238] sm:$0xf]
      %v510 = vld [vmem:[%s1 + $0x23c] sm:$0xf]
      %v511 = vld [vmem:[%s1 + $0x240] sm:$0xf]
      %v512 = vld [vmem:[%s1 + $0x244] sm:$0xf]
      %v513 = vld [vmem:[%s1 + $0x248] sm:$0xf]
      %v514 = vld [vmem:[%s1 + $0x24c] sm:$0xf]
      %v515 = vld [vmem:[%s1 + $0x250] sm:$0xf]
      %v516 = vld [vmem:[%s1 + $0x254] sm:$0xf]
      %v517 = vld [vmem:[%s1 + $0x258] sm:$0xf]
      %v518 = vld [vmem:[%s1 + $0x25c] sm:$0xf]
      %v519 = vld [vmem:[%s1 + $0x260] sm:$0xf]
      %v520 = vld [vmem:[%s1 + $0x264] sm:$0xf]
      %v521 = vld [vmem:[%s1 + $0x268] sm:$0xf]
      %v522 = vld [vmem:[%s1 + $0x26c] sm:$0xf]
      %v523 = vld [vmem:[%s1 + $0x270] sm:$0xf]
      %v524 = vld [vmem:[%s1 + $0x274] sm:$0xf]
      %v525 = vld [vmem:[%s1 + $0x278] sm:$0xf]
      %v526 = vld [vmem:[%s1 + $0x27c] sm:$0xf]
      %v527 = vld [vmem:[%s1 + $0x280] sm:$0xf]
      %v528 = vld [vmem:[%s1 + $0x284] sm:$0xf]
      %v529 = vld [vmem:[%s1 + $0x288] sm:$0xf]
      %v530 = vld [vmem:[%s1 + $0x28c] sm:$0xf]
      %v531 = vld [vmem:[%s1 + $0x290] sm:$0xf]
      %v532 = vld [vmem:[%s1 + $0x294] sm:$0xf]
      %v533 = vld [vmem:[%s1 + $0x298] sm:$0xf]
      %v534 = vld [vmem:[%s1 + $0x29c] sm:$0xf]
      %v535 = vld [vmem:[%s1 + $0x2a0] sm:$0xf]
      %v536 = vld [vmem:[%s1 + $0x2a4] sm:$0xf]
      %v537 = vld [vmem:[%s1 + $0x2a8] sm:$0xf]
      %v538 = vld [vmem:[%s1 + $0x2ac] sm:$0xf]
      %v539 = vld [vmem:[%s1 + $0x2b0] sm:$0xf]
      %v540 = vld [vmem:[%s1 + $0x2b4] sm:$0xf]
      %v541 = vld [vmem:[%s1 + $0x2b8] sm:$0xf]
      %v542 = vld [vmem:[%s1 + $0x2bc] sm:$0xf]
      %v543 = vld [vmem:[%s1 + $0x2c0] sm:$0xf]
      %v544 = vld [vmem:[%s1 + $0x2c4] sm:$0xf]
      %v545 = vld [vmem:[%s1 + $0x2c8] sm:$0xf]
      %v546 = vld [vmem:[%s1 + $0x2cc] sm:$0xf]
      %v547 = vld [vmem:[%s1 + $0x2d0] sm:$0xf]
      %v548 = vld [vmem:[%s1 + $0x2d4] sm:$0xf]
      %v549 = vld [vmem:[%s1 + $0x2d8] sm:$0xf]
      %v550 = vld [vmem:[%s1 + $0x2dc] sm:$0xf]
      %v551 = vld [vmem:[%s1 + $0x2e0] sm:$0xf]
      %v552 = vld [vmem:[%s1 + $0x2e4] sm:$0xf]
      %v553 = vld [vmem:[%s1 + $0x2e8] sm:$0xf]
      %v554 = vld [vmem:[%s1 + $0x2ec] sm:$0xf]
      %v555 = vld [vmem:[%s1 + $0x2f0] sm:$0xf]
      %v556 = vld [vmem:[%s1 + $0x2f4] sm:$0xf]
      %v557 = vld [vmem:[%s1 + $0x2f8] sm:$0xf]
      %v558 = vld [vmem:[%s1 + $0x2fc] sm:$0xf]
      %v559 = vld [vmem:[%s1 + $0x300] sm:$0xf]
      %v560 = vld [vmem:[%s1 + $0x304] sm:$0xf]
      %v561 = vld [vmem:[%s1 + $0x308] sm:$0xf]
      %v562 = vld [vmem:[%s1 + $0x30c] sm:$0xf]
      %v563 = vld [vmem:[%s1 + $0x310] sm:$0xf]
      %v564 = vld [vmem:[%s1 + $0x314] sm:$0xf]
      %v565 = vld [vmem:[%s1 + $0x318] sm:$0xf]
      %v566 = vld [vmem:[%s1 + $0x31c] sm:$0xf]
      %v567 = vld [vmem:[%s1 + $0x320] sm:$0xf]
      %v568 = vld [vmem:[%s1 + $0x324] sm:$0xf]
      %v569 = vld [vmem:[%s1 + $0x328] sm:$0xf]
      %v570 = vld [vmem:[%s1 + $0x32c] sm:$0xf]
      %v571 = vld [vmem:[%s1 + $0x330] sm:$0xf]
      %v572 = vld [vmem:[%s1 + $0x334] sm:$0xf]
      %v573 = vld [vmem:[%s1 + $0x338] sm:$0xf]
      %v574 = vld [vmem:[%s1 + $0x33c] sm:$0xf]
      %v575 = vld [vmem:[%s1 + $0x340] sm:$0xf]
      %v576 = vld [vmem:[%s1 + $0x344] sm:$0xf]
      %v577 = vld [vmem:[%s1 + $0x348] sm:$0xf]
      %v578 = vld [vmem:[%s1 + $0x34c] sm:$0xf]
      %v579 = vld [vmem:[%s1 + $0x350] sm:$0xf]
      %v580 = vld [vmem:[%s1 + $0x354] sm:$0xf]
      %v581 = vld [vmem:[%s1 + $0x358] sm:$0xf]
      %v582 = vld [vmem:[%s1 + $0x35c] sm:$0xf]
      %v583 = vld [vmem:[%s1 + $0x360] sm:$0xf]
      %v584 = vld [vmem:[%s1 + $0x364] sm:$0xf]
      %v585 = vld [vmem:[%s1 + $0x368] sm:$0xf]
      %v586 = vld [vmem:[%s1 + $0x36c] sm:$0xf]
      %v587 = vld [vmem:[%s1 + $0x370] sm:$0xf]
      %v588 = vld [vmem:[%s1 + $0x374] sm:$0xf]
      %v589 = vld [vmem:[%s1 + $0x378] sm:$0xf]
      %v590 = vld [vmem:[%s1 + $0x37c] sm:$0xf]
      %v591 = vld [vmem:[%s1 + $0x380] sm:$0xf]
      %v592 = vld [vmem:[%s1 + $0x384] sm:$0xf]
      %v593 = vld [vmem:[%s1 + $0x388] sm:$0xf]
      %v594 = vld [vmem:[%s1 + $0x38c] sm:$0xf]
      %v595 = vld [vmem:[%s1 + $0x390] sm:$0xf]
      %v596 = vld [vmem:[%s1 + $0x394] sm:$0xf]
      %v597 = vld [vmem:[%s1 + $0x398] sm:$0xf]
      %v598 = vld [vmem:[%s1 + $0x39c] sm:$0xf]
      %v599 = vld [vmem:[%s1 + $0x3a0] sm:$0xf]
      %v600 = vld [vmem:[%s1 + $0x3a4] sm:$0xf]
      %v601 = vld [vmem:[%s1 + $0x3a8] sm:$0xf]
      %v602 = vld [vmem:[%s1 + $0x3ac] sm:$0xf]
      %v603 = vld [vmem:[%s1 + $0x3b0] sm:$0xf]
      %v604 = vld [vmem:[%s1 + $0x3b4] sm:$0xf]
      %v605 = vld [vmem:[%s1 + $0x3b8] sm:$0xf]
      %v606 = vld [vmem:[%s1 + $0x3bc] sm:$0xf]
      %v607 = vld [vmem:[%s1 + $0x3c0] sm:$0xf]
      %v608 = vld [vmem:[%s1 + $0x3c4] sm:$0xf]
      %v609 = vld [vmem:[%s1 + $0x3c8] sm:$0xf]
      %v610 = vld [vmem:[%s1 + $0x3cc] sm:$0xf]
      %v611 = vld [vmem:[%s1 + $0x3d0] sm:$0xf]
      %v612 = vld [vmem:[%s1 + $0x3d4] sm:$0xf]
      %v613 = vld [vmem:[%s1 + $0x3d8] sm:$0xf]
      %v614 = vld [vmem:[%s1 + $0x3dc] sm:$0xf]
      %v615 = vld [vmem:[%s1 + $0x3e0] sm:$0xf]
      %v616 = vld [vmem:[%s1 + $0x3e4] sm:$0xf]
      %v617 = vld [vmem:[%s1 + $0x3e8] sm:$0xf]
      %v618 = vld [vmem:[%s1 + $0x3ec] sm:$0xf]
      %v619 = vld [vmem:[%s1 + $0x3f0] sm:$0xf]
      %v620 = vld [vmem:[%s1 + $0x3f4] sm:$0xf]
      %v621 = vld [vmem:[%s1 + $0x3f8] sm:$0xf]
      %v622 = vld [vmem:[%s1 + $0x3fc] sm:$0xf]
      %v623 = vld [vmem:[%s1 + $0x400] sm:$0xf]
      %v624 = vld [vmem:[%s1 + $0x404] sm:$0xf]
      %v625 = vld [vmem:[%s1 + $0x408] sm:$0xf]
      %v626 = vld [vmem:[%s1 + $0x40c] sm:$0xf]
      %v627 = vld [vmem:[%s1 + $0x410] sm:$0xf]
      %v628 = vld [vmem:[%s1 + $0x414] sm:$0xf]
      %v629 = vld [vmem:[%s1 + $0x418] sm:$0xf]
      %v630 = vld [vmem:[%s1 + $0x41c] sm:$0xf]
      %v631 = vld [vmem:[%s1 + $0x420] sm:$0xf]
      %v632 = vld [vmem:[%s1 + $0x424] sm:$0xf]
      %v633 = vld [vmem:[%s1 + $0x428] sm:$0xf]
      %v634 = vld [vmem:[%s1 + $0x42c] sm:$0xf]
      %v635 = vld [vmem:[%s1 + $0x430] sm:$0xf]
      %v636 = vld [vmem:[%s1 + $0x434] sm:$0xf]
      %v637 = vld [vmem:[%s1 + $0x438] sm:$0xf]
      %v638 = vld [vmem:[%s1 + $0x43c] sm:$0xf]
      %v639 = vld [vmem:[%s1 + $0x440] sm:$0xf]
      %v640 = vld [vmem:[%s1 + $0x444] sm:$0xf]
      %v641 = vld [vmem:[%s1 + $0x448] sm:$0xf]
      %v642 = vld [vmem:[%s1 + $0x44c] sm:$0xf]
      %v643 = vld [vmem:[%s1 + $0x450] sm:$0xf]
      %v644 = vld [vmem:[%s1 + $0x454] sm:$0xf]
      %v645 = vld [vmem:[%s1 + $0x458] sm:$0xf]
      %v646 = vld [vmem:[%s1 + $0x45c] sm:$0xf]
      %v647 = vld [vmem:[%s1 + $0x460] sm:$0xf]
      %v648 = vld [vmem:[%s1 + $0x464] sm:$0xf]
      %v649 = vld [vmem:[%s1 + $0x468] sm:$0xf]
      %v650 = vld [vmem:[%s1 + $0x46c] sm:$0xf]
      %v651 = vld [vmem:[%s1 + $0x470] sm:$0xf]
      %v652 = vld [vmem:[%s1 + $0x474] sm:$0xf]
      %v653 = vld [vmem:[%s1 + $0x478] sm:$0xf]
      %v654 = vld [vmem:[%s1 + $0x47c] sm:$0xf]
      %v817 = vunpack.c.l.b16 %v205
      %v818 = vunpack.c.h.b16 %v205
      %v819 = vunpack.c.l.b16 %v206
      %v820 = vunpack.c.h.b16 %v206
      %v821 = vunpack.c.l.b16 %v207
      %v822 = vunpack.c.h.b16 %v207
      %v823 = vunpack.c.l.b16 %v208
      %v824 = vunpack.c.h.b16 %v208
      %v825 = vunpack.c.l.b16 %v209
      %v826 = vunpack.c.h.b16 %v209
      %v827 = vunpack.c.l.b16 %v210
      %v828 = vunpack.c.h.b16 %v210
      %v829 = vunpack.c.l.b16 %v211
      %v830 = vunpack.c.h.b16 %v211
      %v831 = vunpack.c.l.b16 %v212
      %v832 = vunpack.c.h.b16 %v212
      %v833 = vunpack.c.l.b16 %v213
      %v834 = vunpack.c.h.b16 %v213
      %v835 = vunpack.c.l.b16 %v214
      %v836 = vunpack.c.h.b16 %v214
      %v837 = vunpack.c.l.b16 %v215
      %v838 = vunpack.c.h.b16 %v215
      %v839 = vunpack.c.l.b16 %v216
      %v840 = vunpack.c.h.b16 %v216
      %v841 = vunpack.c.l.b16 %v217
      %v842 = vunpack.c.h.b16 %v217
      %v843 = vunpack.c.l.b16 %v218
      %v844 = vunpack.c.h.b16 %v218
      %v845 = vunpack.c.l.b16 %v219
      %v846 = vunpack.c.h.b16 %v219
      %v847 = vunpack.c.l.b16 %v220
      %v848 = vunpack.c.h.b16 %v220
      %v849 = vunpack.c.l.b16 %v221
      %v850 = vunpack.c.h.b16 %v221
      %v851 = vunpack.c.l.b16 %v222
      %v852 = vunpack.c.h.b16 %v222
      %v853 = vunpack.c.l.b16 %v223
      %v854 = vunpack.c.h.b16 %v223
      %v855 = vunpack.c.l.b16 %v224
      %v856 = vunpack.c.h.b16 %v224
      %v857 = vunpack.c.l.b16 %v225
      %v858 = vunpack.c.h.b16 %v225
      %v859 = vunpack.c.l.b16 %v226
      %v860 = vunpack.c.h.b16 %v226
      %v861 = vunpack.c.l.b16 %v227
      %v862 = vunpack.c.h.b16 %v227
      %v863 = vunpack.c.l.b16 %v228
      %v864 = vunpack.c.h.b16 %v228
      %v865 = vunpack.c.l.b16 %v229
      %v866 = vunpack.c.h.b16 %v229
      %v867 = vunpack.c.l.b16 %v230
      %v868 = vunpack.c.h.b16 %v230
      %v869 = vunpack.c.l.b16 %v231
      %v870 = vunpack.c.h.b16 %v231
      %v871 = vunpack.c.l.b16 %v232
      %v872 = vunpack.c.h.b16 %v232
      %v873 = vunpack.c.l.b16 %v233
      %v874 = vunpack.c.h.b16 %v233
      %v875 = vunpack.c.l.b16 %v234
      %v876 = vunpack.c.h.b16 %v234
      %v877 = vunpack.c.l.b16 %v235
      %v878 = vunpack.c.h.b16 %v235
      %v879 = vunpack.c.l.b16 %v236
      %v880 = vunpack.c.h.b16 %v236
      %v881 = vunpack.c.l.b16 %v237
      %v882 = vunpack.c.h.b16 %v237
      %v883 = vunpack.c.l.b16 %v238
      %v884 = vunpack.c.h.b16 %v238
      %v885 = vunpack.c.l.b16 %v239
      %v886 = vunpack.c.h.b16 %v239
      %v887 = vunpack.c.l.b16 %v240
      %v888 = vunpack.c.h.b16 %v240
      %v889 = vunpack.c.l.b16 %v241
      %v890 = vunpack.c.h.b16 %v241
      %v891 = vunpack.c.l.b16 %v242
      %v892 = vunpack.c.h.b16 %v242
      %v893 = vunpack.c.l.b16 %v243
      %v894 = vunpack.c.h.b16 %v243
      %v895 = vunpack.c.l.b16 %v244
      %v896 = vunpack.c.h.b16 %v244
      %v897 = vunpack.c.l.b16 %v245
      %v898 = vunpack.c.h.b16 %v245
      %v899 = vunpack.c.l.b16 %v246
      %v900 = vunpack.c.h.b16 %v246
      %v901 = vunpack.c.l.b16 %v247
      %v902 = vunpack.c.h.b16 %v247
      %v903 = vunpack.c.l.b16 %v248
      %v904 = vunpack.c.h.b16 %v248
      %v905 = vunpack.c.l.b16 %v249
      %v906 = vunpack.c.h.b16 %v249
      %v907 = vunpack.c.l.b16 %v250
      %v908 = vunpack.c.h.b16 %v250
      %v909 = vunpack.c.l.b16 %v251
      %v910 = vunpack.c.h.b16 %v251
      %v911 = vunpack.c.l.b16 %v252
      %v912 = vunpack.c.h.b16 %v252
      %v913 = vunpack.c.l.b16 %v253
      %v914 = vunpack.c.h.b16 %v253
      %v915 = vunpack.c.l.b16 %v254
      %v916 = vunpack.c.h.b16 %v254
      %v917 = vunpack.c.l.b16 %v255
      %v918 = vunpack.c.h.b16 %v255
      %v919 = vunpack.c.l.b16 %v256
      %v920 = vunpack.c.h.b16 %v256
      %v921 = vunpack.c.l.b16 %v257
      %v922 = vunpack.c.h.b16 %v257
      %v923 = vunpack.c.l.b16 %v258
      %v924 = vunpack.c.h.b16 %v258
      %v925 = vunpack.c.l.b16 %v259
      %v926 = vunpack.c.h.b16 %v259
      %v927 = vunpack.c.l.b16 %v260
      %v928 = vunpack.c.h.b16 %v260
      %v929 = vunpack.c.l.b16 %v261
      %v930 = vunpack.c.h.b16 %v261
      %v931 = vunpack.c.l.b16 %v262
      %v932 = vunpack.c.h.b16 %v262
      %v933 = vunpack.c.l.b16 %v263
      %v934 = vunpack.c.h.b16 %v263
      %v935 = vunpack.c.l.b16 %v264
      %v936 = vunpack.c.h.b16 %v264
      %v937 = vunpack.c.l.b16 %v265
      %v938 = vunpack.c.h.b16 %v265
      %v939 = vunpack.c.l.b16 %v266
      %v940 = vunpack.c.h.b16 %v266
      %v941 = vunpack.c.l.b16 %v267
      %v942 = vunpack.c.h.b16 %v267
      %v943 = vunpack.c.l.b16 %v268
      %v944 = vunpack.c.h.b16 %v268
      %v945 = vunpack.c.l.b16 %v269
      %v946 = vunpack.c.h.b16 %v269
      %v947 = vunpack.c.l.b16 %v270
      %v948 = vunpack.c.h.b16 %v270
      %v949 = vunpack.c.l.b16 %v271
      %v950 = vunpack.c.h.b16 %v271
      %v951 = vunpack.c.l.b16 %v272
      %v952 = vunpack.c.h.b16 %v272
      %v953 = vunpack.c.l.b16 %v273
      %v954 = vunpack.c.h.b16 %v273
      %v955 = vunpack.c.l.b16 %v274
      %v956 = vunpack.c.h.b16 %v274
      %v957 = vunpack.c.l.b16 %v275
      %v958 = vunpack.c.h.b16 %v275
      %v959 = vunpack.c.l.b16 %v276
      %v960 = vunpack.c.h.b16 %v276
      %v961 = vunpack.c.l.b16 %v277
      %v962 = vunpack.c.h.b16 %v277
      %v963 = vunpack.c.l.b16 %v278
      %v964 = vunpack.c.h.b16 %v278
      %v965 = vunpack.c.l.b16 %v279
      %v966 = vunpack.c.h.b16 %v279
      %v967 = vunpack.c.l.b16 %v280
      %v968 = vunpack.c.h.b16 %v280
      %v969 = vunpack.c.l.b16 %v281
      %v970 = vunpack.c.h.b16 %v281
      %v971 = vunpack.c.l.b16 %v282
      %v972 = vunpack.c.h.b16 %v282
      %v973 = vunpack.c.l.b16 %v283
      %v974 = vunpack.c.h.b16 %v283
      %v975 = vunpack.c.l.b16 %v284
      %v976 = vunpack.c.h.b16 %v284
      %v977 = vunpack.c.l.b16 %v285
      %v978 = vunpack.c.h.b16 %v285
      %v979 = vunpack.c.l.b16 %v286
      %v980 = vunpack.c.h.b16 %v286
      %v981 = vunpack.c.l.b16 %v287
      %v982 = vunpack.c.h.b16 %v287
      %v983 = vunpack.c.l.b16 %v288
      %v984 = vunpack.c.h.b16 %v288
      %v985 = vunpack.c.l.b16 %v289
      %v986 = vunpack.c.h.b16 %v289
      %v987 = vunpack.c.l.b16 %v290
      %v988 = vunpack.c.h.b16 %v290
      %v989 = vunpack.c.l.b16 %v291
      %v990 = vunpack.c.h.b16 %v291
      %v991 = vunpack.c.l.b16 %v292
      %v992 = vunpack.c.h.b16 %v292
      %v993 = vunpack.c.l.b16 %v293
      %v994 = vunpack.c.h.b16 %v293
      %v995 = vunpack.c.l.b16 %v294
      %v996 = vunpack.c.h.b16 %v294
      %v997 = vunpack.c.l.b16 %v295
      %v998 = vunpack.c.h.b16 %v295
      %v999 = vunpack.c.l.b16 %v296
      %v1000 = vunpack.c.h.b16 %v296
      %v1001 = vunpack.c.l.b16 %v297
      %v1002 = vunpack.c.h.b16 %v297
      %v1003 = vunpack.c.l.b16 %v298
      %v1004 = vunpack.c.h.b16 %v298
      %v1005 = vunpack.c.l.b16 %v299
      %v1006 = vunpack.c.h.b16 %v299
      %v1007 = vunpack.c.l.b16 %v300
      %v1008 = vunpack.c.h.b16 %v300
      %v1009 = vunpack.c.l.b16 %v301
      %v1010 = vunpack.c.h.b16 %v301
      %v1011 = vunpack.c.l.b16 %v302
      %v1012 = vunpack.c.h.b16 %v302
      %v1013 = vunpack.c.l.b16 %v303
      %v1014 = vunpack.c.h.b16 %v303
      %v1015 = vunpack.c.l.b16 %v304
      %v1016 = vunpack.c.h.b16 %v304
      %v1017 = vunpack.c.l.b16 %v305
      %v1018 = vunpack.c.h.b16 %v305
      %v1019 = vunpack.c.l.b16 %v306
      %v1020 = vunpack.c.h.b16 %v306
      %v1021 = vunpack.c.l.b16 %v307
      %v1022 = vunpack.c.h.b16 %v307
      %v1023 = vunpack.c.l.b16 %v308
      %v1024 = vunpack.c.h.b16 %v308
      %v1025 = vunpack.c.l.b16 %v309
      %v1026 = vunpack.c.h.b16 %v309
      %v1027 = vunpack.c.l.b16 %v310
      %v1028 = vunpack.c.h.b16 %v310
      %v1029 = vunpack.c.l.b16 %v311
      %v1030 = vunpack.c.h.b16 %v311
      %v1031 = vunpack.c.l.b16 %v312
      %v1032 = vunpack.c.h.b16 %v312
      %v1033 = vunpack.c.l.b16 %v313
      %v1034 = vunpack.c.h.b16 %v313
      %v1035 = vunpack.c.l.b16 %v314
      %v1036 = vunpack.c.h.b16 %v314
      %v1037 = vunpack.c.l.b16 %v315
      %v1038 = vunpack.c.h.b16 %v315
      %v1039 = vunpack.c.l.b16 %v316
      %v1040 = vunpack.c.h.b16 %v316
      %v1041 = vunpack.c.l.b16 %v317
      %v1042 = vunpack.c.h.b16 %v317
      %v1043 = vunpack.c.l.b16 %v318
      %v1044 = vunpack.c.h.b16 %v318
      %v1045 = vunpack.c.l.b16 %v319
      %v1046 = vunpack.c.h.b16 %v319
      %v1047 = vunpack.c.l.b16 %v320
      %v1048 = vunpack.c.h.b16 %v320
      %v1049 = vunpack.c.l.b16 %v321
      %v1050 = vunpack.c.h.b16 %v321
      %v1051 = vunpack.c.l.b16 %v322
      %v1052 = vunpack.c.h.b16 %v322
      %v1053 = vunpack.c.l.b16 %v323
      %v1054 = vunpack.c.h.b16 %v323
      %v1055 = vunpack.c.l.b16 %v324
      %v1056 = vunpack.c.h.b16 %v324
      %v1057 = vunpack.c.l.b16 %v325
      %v1058 = vunpack.c.h.b16 %v325
      %v1059 = vunpack.c.l.b16 %v326
      %v1060 = vunpack.c.h.b16 %v326
      %v1061 = vunpack.c.l.b16 %v327
      %v1062 = vunpack.c.h.b16 %v327
      %v1063 = vunpack.c.l.b16 %v328
      %v1064 = vunpack.c.h.b16 %v328
      %v1065 = vunpack.c.l.b16 %v329
      %v1066 = vunpack.c.h.b16 %v329
      %v1067 = vunpack.c.l.b16 %v330
      %v1068 = vunpack.c.h.b16 %v330
      %v1069 = vunpack.c.l.b16 %v331
      %v1070 = vunpack.c.h.b16 %v331
      %v1071 = vunpack.c.l.b16 %v332
      %v1072 = vunpack.c.h.b16 %v332
      %v1073 = vunpack.c.l.b16 %v333
      %v1074 = vunpack.c.h.b16 %v333
      %v1075 = vunpack.c.l.b16 %v334
      %v1076 = vunpack.c.h.b16 %v334
      %v1077 = vunpack.c.l.b16 %v335
      %v1078 = vunpack.c.h.b16 %v335
      %v1079 = vunpack.c.l.b16 %v336
      %v1080 = vunpack.c.h.b16 %v336
      %v1081 = vunpack.c.l.b16 %v337
      %v1082 = vunpack.c.h.b16 %v337
      %v1083 = vunpack.c.l.b16 %v338
      %v1084 = vunpack.c.h.b16 %v338
      %v1085 = vunpack.c.l.b16 %v339
      %v1086 = vunpack.c.h.b16 %v339
      %v1087 = vunpack.c.l.b16 %v340
      %v1088 = vunpack.c.h.b16 %v340
      %v1089 = vunpack.c.l.b16 %v341
      %v1090 = vunpack.c.h.b16 %v341
      %v1091 = vunpack.c.l.b16 %v342
      %v1092 = vunpack.c.h.b16 %v342
      %v1093 = vunpack.c.l.b16 %v343
      %v1094 = vunpack.c.h.b16 %v343
      %v1095 = vunpack.c.l.b16 %v344
      %v1096 = vunpack.c.h.b16 %v344
      %v1097 = vunpack.c.l.b16 %v345
      %v1098 = vunpack.c.h.b16 %v345
      %v1099 = vunpack.c.l.b16 %v346
      %v1100 = vunpack.c.h.b16 %v346
      %v1101 = vunpack.c.l.b16 %v347
      %v1102 = vunpack.c.h.b16 %v347
      %v1103 = vunpack.c.l.b16 %v348
      %v1104 = vunpack.c.h.b16 %v348
      %v1105 = vunpack.c.l.b16 %v349
      %v1106 = vunpack.c.h.b16 %v349
      %v1107 = vunpack.c.l.b16 %v350
      %v1108 = vunpack.c.h.b16 %v350
      %v1109 = vunpack.c.l.b16 %v351
      %v1110 = vunpack.c.h.b16 %v351
      %v1111 = vunpack.c.l.b16 %v352
      %v1112 = vunpack.c.h.b16 %v352
      %v1113 = vunpack.c.l.b16 %v353
      %v1114 = vunpack.c.h.b16 %v353
      %v1115 = vunpack.c.l.b16 %v354
      %v1116 = vunpack.c.h.b16 %v354
      %v1117 = vunpack.c.l.b16 %v355
      %v1118 = vunpack.c.h.b16 %v355
      %v1119 = vunpack.c.l.b16 %v356
      %v1120 = vunpack.c.h.b16 %v356
      %v1121 = vunpack.c.l.b16 %v357
      %v1122 = vunpack.c.h.b16 %v357
      %v1123 = vunpack.c.l.b16 %v358
      %v1124 = vunpack.c.h.b16 %v358
      %v1125 = vunpack.c.l.b16 %v359
      %v1126 = vunpack.c.h.b16 %v359
      %v1127 = vunpack.c.l.b16 %v360
      %v1128 = vunpack.c.h.b16 %v360
      %v1129 = vunpack.c.l.b16 %v361
      %v1130 = vunpack.c.h.b16 %v361
      %v1131 = vunpack.c.l.b16 %v362
      %v1132 = vunpack.c.h.b16 %v362
      %v1133 = vunpack.c.l.b16 %v363
      %v1134 = vunpack.c.h.b16 %v363
      %v1135 = vunpack.c.l.b16 %v364
      %v1136 = vunpack.c.h.b16 %v364
      %v1137 = vunpack.c.l.b16 %v365
      %v1138 = vunpack.c.h.b16 %v365
      %v1139 = vunpack.c.l.b16 %v366
      %v1140 = vunpack.c.h.b16 %v366
      %v1141 = vpack.c.b16 %v835, %v817
      %v1142 = vpack.c.b16 %v836, %v818
      %v1143 = vpack.c.b16 %v837, %v819
      %v1144 = vpack.c.b16 %v838, %v820
      %v1145 = vpack.c.b16 %v839, %v821
      %v1146 = vpack.c.b16 %v840, %v822
      %v1147 = vpack.c.b16 %v841, %v823
      %v1148 = vpack.c.b16 %v842, %v824
      %v1149 = vpack.c.b16 %v843, %v825
      %v1150 = vpack.c.b16 %v844, %v826
      %v1151 = vpack.c.b16 %v845, %v827
      %v1152 = vpack.c.b16 %v846, %v828
      %v1153 = vpack.c.b16 %v847, %v829
      %v1154 = vpack.c.b16 %v848, %v830
      %v1155 = vpack.c.b16 %v849, %v831
      %v1156 = vpack.c.b16 %v850, %v832
      %v1157 = vpack.c.b16 %v851, %v833
      %v1158 = vpack.c.b16 %v852, %v834
      %v1159 = vpack.c.b16 %v871, %v853
      %v1160 = vpack.c.b16 %v872, %v854
      %v1161 = vpack.c.b16 %v873, %v855
      %v1162 = vpack.c.b16 %v874, %v856
      %v1163 = vpack.c.b16 %v875, %v857
      %v1164 = vpack.c.b16 %v876, %v858
      %v1165 = vpack.c.b16 %v877, %v859
      %v1166 = vpack.c.b16 %v878, %v860
      %v1167 = vpack.c.b16 %v879, %v861
      %v1168 = vpack.c.b16 %v880, %v862
      %v1169 = vpack.c.b16 %v881, %v863
      %v1170 = vpack.c.b16 %v882, %v864
      %v1171 = vpack.c.b16 %v883, %v865
      %v1172 = vpack.c.b16 %v884, %v866
      %v1173 = vpack.c.b16 %v885, %v867
      %v1174 = vpack.c.b16 %v886, %v868
      %v1175 = vpack.c.b16 %v887, %v869
      %v1176 = vpack.c.b16 %v888, %v870
      %v1177 = vpack.c.b16 %v907, %v889
      %v1178 = vpack.c.b16 %v908, %v890
      %v1179 = vpack.c.b16 %v909, %v891
      %v1180 = vpack.c.b16 %v910, %v892
      %v1181 = vpack.c.b16 %v911, %v893
      %v1182 = vpack.c.b16 %v912, %v894
      %v1183 = vpack.c.b16 %v913, %v895
      %v1184 = vpack.c.b16 %v914, %v896
      %v1185 = vpack.c.b16 %v915, %v897
      %v1186 = vpack.c.b16 %v916, %v898
      %v1187 = vpack.c.b16 %v917, %v899
      %v1188 = vpack.c.b16 %v918, %v900
      %v1189 = vpack.c.b16 %v919, %v901
      %v1190 = vpack.c.b16 %v920, %v902
      %v1191 = vpack.c.b16 %v921, %v903
      %v1192 = vpack.c.b16 %v922, %v904
      %v1193 = vpack.c.b16 %v923, %v905
      %v1194 = vpack.c.b16 %v924, %v906
      %v1195 = vpack.c.b16 %v943, %v925
      %v1196 = vpack.c.b16 %v944, %v926
      %v1197 = vpack.c.b16 %v945, %v927
      %v1198 = vpack.c.b16 %v946, %v928
      %v1199 = vpack.c.b16 %v947, %v929
      %v1200 = vpack.c.b16 %v948, %v930
      %v1201 = vpack.c.b16 %v949, %v931
      %v1202 = vpack.c.b16 %v950, %v932
      %v1203 = vpack.c.b16 %v951, %v933
      %v1204 = vpack.c.b16 %v952, %v934
      %v1205 = vpack.c.b16 %v953, %v935
      %v1206 = vpack.c.b16 %v954, %v936
      %v1207 = vpack.c.b16 %v955, %v937
      %v1208 = vpack.c.b16 %v956, %v938
      %v1209 = vpack.c.b16 %v957, %v939
      %v1210 = vpack.c.b16 %v958, %v940
      %v1211 = vpack.c.b16 %v959, %v941
      %v1212 = vpack.c.b16 %v960, %v942
      %v1213 = vpack.c.b16 %v979, %v961
      %v1214 = vpack.c.b16 %v980, %v962
      %v1215 = vpack.c.b16 %v981, %v963
      %v1216 = vpack.c.b16 %v982, %v964
      %v1217 = vpack.c.b16 %v983, %v965
      %v1218 = vpack.c.b16 %v984, %v966
      %v1219 = vpack.c.b16 %v985, %v967
      %v1220 = vpack.c.b16 %v986, %v968
      %v1221 = vpack.c.b16 %v987, %v969
      %v1222 = vpack.c.b16 %v988, %v970
      %v1223 = vpack.c.b16 %v989, %v971
      %v1224 = vpack.c.b16 %v990, %v972
      %v1225 = vpack.c.b16 %v991, %v973
      %v1226 = vpack.c.b16 %v992, %v974
      %v1227 = vpack.c.b16 %v993, %v975
      %v1228 = vpack.c.b16 %v994, %v976
      %v1229 = vpack.c.b16 %v995, %v977
      %v1230 = vpack.c.b16 %v996, %v978
      %v1231 = vpack.c.b16 %v1015, %v997
      %v1232 = vpack.c.b16 %v1016, %v998
      %v1233 = vpack.c.b16 %v1017, %v999
      %v1234 = vpack.c.b16 %v1018, %v1000
      %v1235 = vpack.c.b16 %v1019, %v1001
      %v1236 = vpack.c.b16 %v1020, %v1002
      %v1237 = vpack.c.b16 %v1021, %v1003
      %v1238 = vpack.c.b16 %v1022, %v1004
      %v1239 = vpack.c.b16 %v1023, %v1005
      %v1240 = vpack.c.b16 %v1024, %v1006
      %v1241 = vpack.c.b16 %v1025, %v1007
      %v1242 = vpack.c.b16 %v1026, %v1008
      %v1243 = vpack.c.b16 %v1027, %v1009
      %v1244 = vpack.c.b16 %v1028, %v1010
      %v1245 = vpack.c.b16 %v1029, %v1011
      %v1246 = vpack.c.b16 %v1030, %v1012
      %v1247 = vpack.c.b16 %v1031, %v1013
      %v1248 = vpack.c.b16 %v1032, %v1014
      %v1249 = vpack.c.b16 %v1051, %v1033
      %v1250 = vpack.c.b16 %v1052, %v1034
      %v1251 = vpack.c.b16 %v1053, %v1035
      %v1252 = vpack.c.b16 %v1054, %v1036
      %v1253 = vpack.c.b16 %v1055, %v1037
      %v1254 = vpack.c.b16 %v1056, %v1038
      %v1255 = vpack.c.b16 %v1057, %v1039
      %v1256 = vpack.c.b16 %v1058, %v1040
      %v1257 = vpack.c.b16 %v1059, %v1041
      %v1258 = vpack.c.b16 %v1060, %v1042
      %v1259 = vpack.c.b16 %v1061, %v1043
      %v1260 = vpack.c.b16 %v1062, %v1044
      %v1261 = vpack.c.b16 %v1063, %v1045
      %v1262 = vpack.c.b16 %v1064, %v1046
      %v1263 = vpack.c.b16 %v1065, %v1047
      %v1264 = vpack.c.b16 %v1066, %v1048
      %v1265 = vpack.c.b16 %v1067, %v1049
      %v1266 = vpack.c.b16 %v1068, %v1050
      %v1267 = vpack.c.b16 %v1087, %v1069
      %v1268 = vpack.c.b16 %v1088, %v1070
      %v1269 = vpack.c.b16 %v1089, %v1071
      %v1270 = vpack.c.b16 %v1090, %v1072
      %v1271 = vpack.c.b16 %v1091, %v1073
      %v1272 = vpack.c.b16 %v1092, %v1074
      %v1273 = vpack.c.b16 %v1093, %v1075
      %v1274 = vpack.c.b16 %v1094, %v1076
      %v1275 = vpack.c.b16 %v1095, %v1077
      %v1276 = vpack.c.b16 %v1096, %v1078
      %v1277 = vpack.c.b16 %v1097, %v1079
      %v1278 = vpack.c.b16 %v1098, %v1080
      %v1279 = vpack.c.b16 %v1099, %v1081
      %v1280 = vpack.c.b16 %v1100, %v1082
      %v1281 = vpack.c.b16 %v1101, %v1083
      %v1282 = vpack.c.b16 %v1102, %v1084
      %v1283 = vpack.c.b16 %v1103, %v1085
      %v1284 = vpack.c.b16 %v1104, %v1086
      %v1285 = vpack.c.b16 %v1123, %v1105
      %v1286 = vpack.c.b16 %v1124, %v1106
      %v1287 = vpack.c.b16 %v1125, %v1107
      %v1288 = vpack.c.b16 %v1126, %v1108
      %v1289 = vpack.c.b16 %v1127, %v1109
      %v1290 = vpack.c.b16 %v1128, %v1110
      %v1291 = vpack.c.b16 %v1129, %v1111
      %v1292 = vpack.c.b16 %v1130, %v1112
      %v1293 = vpack.c.b16 %v1131, %v1113
      %v1294 = vpack.c.b16 %v1132, %v1114
      %v1295 = vpack.c.b16 %v1133, %v1115
      %v1296 = vpack.c.b16 %v1134, %v1116
      %v1297 = vpack.c.b16 %v1135, %v1117
      %v1298 = vpack.c.b16 %v1136, %v1118
      %v1299 = vpack.c.b16 %v1137, %v1119
      %v1300 = vpack.c.b16 %v1138, %v1120
      %v1301 = vpack.c.b16 %v1139, %v1121
      %v1302 = vpack.c.b16 %v1140, %v1122
      %v1753 = vunpack.c.l.b16 %v367
      %v1754 = vunpack.c.l.b16 %v368
      %v1755 = vunpack.c.l.b16 %v369
      %v1756 = vunpack.c.l.b16 %v370
      %v1757 = vunpack.c.l.b16 %v371
      %v1758 = vunpack.c.l.b16 %v372
      %v1759 = vunpack.c.l.b16 %v373
      %v1760 = vunpack.c.l.b16 %v374
      %v1761 = vunpack.c.l.b16 %v375
      %v1762 = vunpack.c.l.b16 %v376
      %v1763 = vunpack.c.l.b16 %v377
      %v1764 = vunpack.c.l.b16 %v378
      %v1765 = vunpack.c.l.b16 %v379
      %v1766 = vunpack.c.l.b16 %v380
      %v1767 = vunpack.c.l.b16 %v381
      %v1768 = vunpack.c.l.b16 %v382
      %v1769 = vunpack.c.l.b16 %v383
      %v1770 = vunpack.c.l.b16 %v384
      %v1771 = vunpack.c.l.b16 %v385
      %v1772 = vunpack.c.l.b16 %v386
      %v1773 = vunpack.c.l.b16 %v387
      %v1774 = vunpack.c.l.b16 %v388
      %v1775 = vunpack.c.l.b16 %v389
      %v1776 = vunpack.c.l.b16 %v390
      %v1777 = vunpack.c.l.b16 %v391
      %v1778 = vunpack.c.l.b16 %v392
      %v1779 = vunpack.c.l.b16 %v393
      %v1780 = vunpack.c.l.b16 %v394
      %v1781 = vunpack.c.l.b16 %v395
      %v1782 = vunpack.c.l.b16 %v396
      %v1783 = vunpack.c.l.b16 %v397
      %v1784 = vunpack.c.l.b16 %v398
      %v1785 = vunpack.c.l.b16 %v399
      %v1786 = vunpack.c.l.b16 %v400
      %v1787 = vunpack.c.l.b16 %v401
      %v1788 = vunpack.c.l.b16 %v402
      %v1789 = vunpack.c.l.b16 %v403
      %v1790 = vunpack.c.l.b16 %v404
      %v1791 = vunpack.c.l.b16 %v405
      %v1792 = vunpack.c.l.b16 %v406
      %v1793 = vunpack.c.l.b16 %v407
      %v1794 = vunpack.c.l.b16 %v408
      %v1795 = vunpack.c.l.b16 %v409
      %v1796 = vunpack.c.l.b16 %v410
      %v1797 = vunpack.c.l.b16 %v411
      %v1798 = vunpack.c.l.b16 %v412
      %v1799 = vunpack.c.l.b16 %v413
      %v1800 = vunpack.c.l.b16 %v414
      %v1801 = vunpack.c.l.b16 %v415
      %v1802 = vunpack.c.l.b16 %v416
      %v1803 = vunpack.c.l.b16 %v417
      %v1804 = vunpack.c.l.b16 %v418
      %v1805 = vunpack.c.l.b16 %v419
      %v1806 = vunpack.c.l.b16 %v420
      %v1807 = vunpack.c.l.b16 %v421
      %v1808 = vunpack.c.l.b16 %v422
      %v1809 = vunpack.c.l.b16 %v423
      %v1810 = vunpack.c.l.b16 %v424
      %v1811 = vunpack.c.l.b16 %v425
      %v1812 = vunpack.c.l.b16 %v426
      %v1813 = vunpack.c.l.b16 %v427
      %v1814 = vunpack.c.l.b16 %v428
      %v1815 = vunpack.c.l.b16 %v429
      %v1816 = vunpack.c.l.b16 %v430
      %v1817 = vunpack.c.l.b16 %v431
      %v1818 = vunpack.c.l.b16 %v432
      %v1819 = vunpack.c.l.b16 %v433
      %v1820 = vunpack.c.l.b16 %v434
      %v1821 = vunpack.c.l.b16 %v435
      %v1822 = vunpack.c.l.b16 %v436
      %v1823 = vunpack.c.l.b16 %v437
      %v1824 = vunpack.c.l.b16 %v438
      %v1825 = vunpack.c.l.b16 %v439
      %v1826 = vunpack.c.l.b16 %v440
      %v1827 = vunpack.c.l.b16 %v441
      %v1828 = vunpack.c.l.b16 %v442
      %v1829 = vunpack.c.l.b16 %v443
      %v1830 = vunpack.c.l.b16 %v444
      %v1831 = vunpack.c.l.b16 %v445
      %v1832 = vunpack.c.l.b16 %v446
      %v1833 = vunpack.c.l.b16 %v447
      %v1834 = vunpack.c.l.b16 %v448
      %v1835 = vunpack.c.l.b16 %v449
      %v1836 = vunpack.c.l.b16 %v450
      %v1837 = vunpack.c.l.b16 %v451
      %v1838 = vunpack.c.l.b16 %v452
      %v1839 = vunpack.c.l.b16 %v453
      %v1840 = vunpack.c.l.b16 %v454
      %v1841 = vunpack.c.l.b16 %v455
      %v1842 = vunpack.c.l.b16 %v456
      %v1843 = vunpack.c.l.b16 %v457
      %v1844 = vunpack.c.l.b16 %v458
      %v1845 = vunpack.c.l.b16 %v459
      %v1846 = vunpack.c.l.b16 %v460
      %v1847 = vunpack.c.l.b16 %v461
      %v1848 = vunpack.c.l.b16 %v462
      %v1849 = vunpack.c.l.b16 %v463
      %v1850 = vunpack.c.l.b16 %v464
      %v1851 = vunpack.c.l.b16 %v465
      %v1852 = vunpack.c.l.b16 %v466
      %v1853 = vunpack.c.l.b16 %v467
      %v1854 = vunpack.c.l.b16 %v468
      %v1855 = vunpack.c.l.b16 %v469
      %v1856 = vunpack.c.l.b16 %v470
      %v1857 = vunpack.c.l.b16 %v471
      %v1858 = vunpack.c.l.b16 %v472
      %v1859 = vunpack.c.l.b16 %v473
      %v1860 = vunpack.c.l.b16 %v474
      %v1861 = vunpack.c.l.b16 %v475
      %v1862 = vunpack.c.l.b16 %v476
      %v1863 = vunpack.c.l.b16 %v477
      %v1864 = vunpack.c.l.b16 %v478
      %v1865 = vunpack.c.l.b16 %v479
      %v1866 = vunpack.c.l.b16 %v480
      %v1867 = vunpack.c.l.b16 %v481
      %v1868 = vunpack.c.l.b16 %v482
      %v1869 = vunpack.c.l.b16 %v483
      %v1870 = vunpack.c.l.b16 %v484
      %v1871 = vunpack.c.l.b16 %v485
      %v1872 = vunpack.c.l.b16 %v486
      %v1873 = vunpack.c.l.b16 %v487
      %v1874 = vunpack.c.l.b16 %v488
      %v1875 = vunpack.c.l.b16 %v489
      %v1876 = vunpack.c.l.b16 %v490
      %v1877 = vunpack.c.l.b16 %v491
      %v1878 = vunpack.c.l.b16 %v492
      %v1879 = vunpack.c.l.b16 %v493
      %v1880 = vunpack.c.l.b16 %v494
      %v1881 = vunpack.c.l.b16 %v495
      %v1882 = vunpack.c.l.b16 %v496
      %v1883 = vunpack.c.l.b16 %v497
      %v1884 = vunpack.c.l.b16 %v498
      %v1885 = vunpack.c.l.b16 %v499
      %v1886 = vunpack.c.l.b16 %v500
      %v1887 = vunpack.c.l.b16 %v501
      %v1888 = vunpack.c.l.b16 %v502
      %v1889 = vunpack.c.l.b16 %v503
      %v1890 = vunpack.c.l.b16 %v504
      %v1891 = vunpack.c.l.b16 %v505
      %v1892 = vunpack.c.l.b16 %v506
      %v1893 = vunpack.c.l.b16 %v507
      %v1894 = vunpack.c.l.b16 %v508
      %v1895 = vunpack.c.l.b16 %v509
      %v1896 = vunpack.c.l.b16 %v510
      %v1897 = vunpack.c.l.b16 %v511
      %v1898 = vunpack.c.l.b16 %v512
      %v1899 = vunpack.c.l.b16 %v513
      %v1900 = vunpack.c.l.b16 %v514
      %v1901 = vunpack.c.l.b16 %v515
      %v1902 = vunpack.c.l.b16 %v516
      %v1903 = vunpack.c.l.b16 %v517
      %v1904 = vunpack.c.l.b16 %v518
      %v1905 = vunpack.c.l.b16 %v519
      %v1906 = vunpack.c.l.b16 %v520
      %v1907 = vunpack.c.l.b16 %v521
      %v1908 = vunpack.c.l.b16 %v522
      %v1909 = vunpack.c.l.b16 %v523
      %v1910 = vunpack.c.l.b16 %v524
      %v1911 = vunpack.c.l.b16 %v525
      %v1912 = vunpack.c.l.b16 %v526
      %v1913 = vunpack.c.l.b16 %v527
      %v1914 = vunpack.c.l.b16 %v528
      %v1915 = vunpack.c.l.b16 %v529
      %v1916 = vunpack.c.l.b16 %v530
      %v1917 = vunpack.c.l.b16 %v531
      %v1918 = vunpack.c.l.b16 %v532
      %v1919 = vunpack.c.l.b16 %v533
      %v1920 = vunpack.c.l.b16 %v534
      %v1921 = vunpack.c.l.b16 %v535
      %v1922 = vunpack.c.l.b16 %v536
      %v1923 = vunpack.c.l.b16 %v537
      %v1924 = vunpack.c.l.b16 %v538
      %v1925 = vunpack.c.l.b16 %v539
      %v1926 = vunpack.c.l.b16 %v540
      %v1927 = vunpack.c.l.b16 %v541
      %v1928 = vunpack.c.l.b16 %v542
      %v1929 = vunpack.c.l.b16 %v543
      %v1930 = vunpack.c.l.b16 %v544
      %v1931 = vunpack.c.l.b16 %v545
      %v1932 = vunpack.c.l.b16 %v546
      %v1933 = vunpack.c.l.b16 %v547
      %v1934 = vunpack.c.l.b16 %v548
      %v1935 = vunpack.c.l.b16 %v549
      %v1936 = vunpack.c.l.b16 %v550
      %v1937 = vunpack.c.l.b16 %v551
      %v1938 = vunpack.c.l.b16 %v552
      %v1939 = vunpack.c.l.b16 %v553
      %v1940 = vunpack.c.l.b16 %v554
      %v1941 = vunpack.c.l.b16 %v555
      %v1942 = vunpack.c.l.b16 %v556
      %v1943 = vunpack.c.l.b16 %v557
      %v1944 = vunpack.c.l.b16 %v558
      %v1945 = vunpack.c.l.b16 %v559
      %v1946 = vunpack.c.l.b16 %v560
      %v1947 = vunpack.c.l.b16 %v561
      %v1948 = vunpack.c.l.b16 %v562
      %v1949 = vunpack.c.l.b16 %v563
      %v1950 = vunpack.c.l.b16 %v564
      %v1951 = vunpack.c.l.b16 %v565
      %v1952 = vunpack.c.l.b16 %v566
      %v1953 = vunpack.c.l.b16 %v567
      %v1954 = vunpack.c.l.b16 %v568
      %v1955 = vunpack.c.l.b16 %v569
      %v1956 = vunpack.c.l.b16 %v570
      %v1957 = vunpack.c.l.b16 %v571
      %v1958 = vunpack.c.l.b16 %v572
      %v1959 = vunpack.c.l.b16 %v573
      %v1960 = vunpack.c.l.b16 %v574
      %v1961 = vunpack.c.l.b16 %v575
      %v1962 = vunpack.c.l.b16 %v576
      %v1963 = vunpack.c.l.b16 %v577
      %v1964 = vunpack.c.l.b16 %v578
      %v1965 = vunpack.c.l.b16 %v579
      %v1966 = vunpack.c.l.b16 %v580
      %v1967 = vunpack.c.l.b16 %v581
      %v1968 = vunpack.c.l.b16 %v582
      %v1969 = vunpack.c.l.b16 %v583
      %v1970 = vunpack.c.l.b16 %v584
      %v1971 = vunpack.c.l.b16 %v585
      %v1972 = vunpack.c.l.b16 %v586
      %v1973 = vunpack.c.l.b16 %v587
      %v1974 = vunpack.c.l.b16 %v588
      %v1975 = vunpack.c.l.b16 %v589
      %v1976 = vunpack.c.l.b16 %v590
      %v1977 = vunpack.c.l.b16 %v591
      %v1978 = vunpack.c.l.b16 %v592
      %v1979 = vunpack.c.l.b16 %v593
      %v1980 = vunpack.c.l.b16 %v594
      %v1981 = vunpack.c.l.b16 %v595
      %v1982 = vunpack.c.l.b16 %v596
      %v1983 = vunpack.c.l.b16 %v597
      %v1984 = vunpack.c.l.b16 %v598
      %v1985 = vunpack.c.l.b16 %v599
      %v1986 = vunpack.c.l.b16 %v600
      %v1987 = vunpack.c.l.b16 %v601
      %v1988 = vunpack.c.l.b16 %v602
      %v1989 = vunpack.c.l.b16 %v603
      %v1990 = vunpack.c.l.b16 %v604
      %v1991 = vunpack.c.l.b16 %v605
      %v1992 = vunpack.c.l.b16 %v606
      %v1993 = vunpack.c.l.b16 %v607
      %v1994 = vunpack.c.l.b16 %v608
      %v1995 = vunpack.c.l.b16 %v609
      %v1996 = vunpack.c.l.b16 %v610
      %v1997 = vunpack.c.l.b16 %v611
      %v1998 = vunpack.c.l.b16 %v612
      %v1999 = vunpack.c.l.b16 %v613
      %v2000 = vunpack.c.l.b16 %v614
      %v2001 = vunpack.c.l.b16 %v615
      %v2002 = vunpack.c.l.b16 %v616
      %v2003 = vunpack.c.l.b16 %v617
      %v2004 = vunpack.c.l.b16 %v618
      %v2005 = vunpack.c.l.b16 %v619
      %v2006 = vunpack.c.l.b16 %v620
      %v2007 = vunpack.c.l.b16 %v621
      %v2008 = vunpack.c.l.b16 %v622
      %v2009 = vunpack.c.l.b16 %v623
      %v2010 = vunpack.c.l.b16 %v624
      %v2011 = vunpack.c.l.b16 %v625
      %v2012 = vunpack.c.l.b16 %v626
      %v2013 = vunpack.c.l.b16 %v627
      %v2014 = vunpack.c.l.b16 %v628
      %v2015 = vunpack.c.l.b16 %v629
      %v2016 = vunpack.c.l.b16 %v630
      %v2017 = vunpack.c.l.b16 %v631
      %v2018 = vunpack.c.l.b16 %v632
      %v2019 = vunpack.c.l.b16 %v633
      %v2020 = vunpack.c.l.b16 %v634
      %v2021 = vunpack.c.l.b16 %v635
      %v2022 = vunpack.c.l.b16 %v636
      %v2023 = vunpack.c.l.b16 %v637
      %v2024 = vunpack.c.l.b16 %v638
      %v2025 = vunpack.c.l.b16 %v639
      %v2026 = vunpack.c.l.b16 %v640
      %v2027 = vunpack.c.l.b16 %v641
      %v2028 = vunpack.c.l.b16 %v642
      %v2029 = vunpack.c.l.b16 %v643
      %v2030 = vunpack.c.l.b16 %v644
      %v2031 = vunpack.c.l.b16 %v645
      %v2032 = vunpack.c.l.b16 %v646
      %v2033 = vunpack.c.l.b16 %v647
      %v2034 = vunpack.c.l.b16 %v648
      %v2035 = vunpack.c.l.b16 %v649
      %v2036 = vunpack.c.l.b16 %v650
      %v2037 = vunpack.c.l.b16 %v651
      %v2038 = vunpack.c.l.b16 %v652
      %v2039 = vunpack.c.l.b16 %v653
      %v2040 = vunpack.c.l.b16 %v654
      %v2041 = vpack.c.b16 %v1754, %v1753
      %v2042 = vpack.c.b16 %v1756, %v1755
      %v2043 = vpack.c.b16 %v1758, %v1757
      %v2044 = vpack.c.b16 %v1760, %v1759
      %v2045 = vpack.c.b16 %v1762, %v1761
      %v2046 = vpack.c.b16 %v1764, %v1763
      %v2047 = vpack.c.b16 %v1766, %v1765
      %v2048 = vpack.c.b16 %v1768, %v1767
      %v2049 = vpack.c.b16 %v1770, %v1769
      %v2050 = vpack.c.b16 %v1772, %v1771
      %v2051 = vpack.c.b16 %v1774, %v1773
      %v2052 = vpack.c.b16 %v1776, %v1775
      %v2053 = vpack.c.b16 %v1778, %v1777
      %v2054 = vpack.c.b16 %v1780, %v1779
      %v2055 = vpack.c.b16 %v1782, %v1781
      %v2056 = vpack.c.b16 %v1784, %v1783
      %v2057 = vpack.c.b16 %v1786, %v1785
      %v2058 = vpack.c.b16 %v1788, %v1787
      %v2059 = vpack.c.b16 %v1790, %v1789
      %v2060 = vpack.c.b16 %v1792, %v1791
      %v2061 = vpack.c.b16 %v1794, %v1793
      %v2062 = vpack.c.b16 %v1796, %v1795
      %v2063 = vpack.c.b16 %v1798, %v1797
      %v2064 = vpack.c.b16 %v1800, %v1799
      %v2065 = vpack.c.b16 %v1802, %v1801
      %v2066 = vpack.c.b16 %v1804, %v1803
      %v2067 = vpack.c.b16 %v1806, %v1805
      %v2068 = vpack.c.b16 %v1808, %v1807
      %v2069 = vpack.c.b16 %v1810, %v1809
      %v2070 = vpack.c.b16 %v1812, %v1811
      %v2071 = vpack.c.b16 %v1814, %v1813
      %v2072 = vpack.c.b16 %v1816, %v1815
      %v2073 = vpack.c.b16 %v1818, %v1817
      %v2074 = vpack.c.b16 %v1820, %v1819
      %v2075 = vpack.c.b16 %v1822, %v1821
      %v2076 = vpack.c.b16 %v1824, %v1823
      %v2077 = vpack.c.b16 %v1826, %v1825
      %v2078 = vpack.c.b16 %v1828, %v1827
      %v2079 = vpack.c.b16 %v1830, %v1829
      %v2080 = vpack.c.b16 %v1832, %v1831
      %v2081 = vpack.c.b16 %v1834, %v1833
      %v2082 = vpack.c.b16 %v1836, %v1835
      %v2083 = vpack.c.b16 %v1838, %v1837
      %v2084 = vpack.c.b16 %v1840, %v1839
      %v2085 = vpack.c.b16 %v1842, %v1841
      %v2086 = vpack.c.b16 %v1844, %v1843
      %v2087 = vpack.c.b16 %v1846, %v1845
      %v2088 = vpack.c.b16 %v1848, %v1847
      %v2089 = vpack.c.b16 %v1850, %v1849
      %v2090 = vpack.c.b16 %v1852, %v1851
      %v2091 = vpack.c.b16 %v1854, %v1853
      %v2092 = vpack.c.b16 %v1856, %v1855
      %v2093 = vpack.c.b16 %v1858, %v1857
      %v2094 = vpack.c.b16 %v1860, %v1859
      %v2095 = vpack.c.b16 %v1862, %v1861
      %v2096 = vpack.c.b16 %v1864, %v1863
      %v2097 = vpack.c.b16 %v1866, %v1865
      %v2098 = vpack.c.b16 %v1868, %v1867
      %v2099 = vpack.c.b16 %v1870, %v1869
      %v2100 = vpack.c.b16 %v1872, %v1871
      %v2101 = vpack.c.b16 %v1874, %v1873
      %v2102 = vpack.c.b16 %v1876, %v1875
      %v2103 = vpack.c.b16 %v1878, %v1877
      %v2104 = vpack.c.b16 %v1880, %v1879
      %v2105 = vpack.c.b16 %v1882, %v1881
      %v2106 = vpack.c.b16 %v1884, %v1883
      %v2107 = vpack.c.b16 %v1886, %v1885
      %v2108 = vpack.c.b16 %v1888, %v1887
      %v2109 = vpack.c.b16 %v1890, %v1889
      %v2110 = vpack.c.b16 %v1892, %v1891
      %v2111 = vpack.c.b16 %v1894, %v1893
      %v2112 = vpack.c.b16 %v1896, %v1895
      %v2113 = vpack.c.b16 %v1898, %v1897
      %v2114 = vpack.c.b16 %v1900, %v1899
      %v2115 = vpack.c.b16 %v1902, %v1901
      %v2116 = vpack.c.b16 %v1904, %v1903
      %v2117 = vpack.c.b16 %v1906, %v1905
      %v2118 = vpack.c.b16 %v1908, %v1907
      %v2119 = vpack.c.b16 %v1910, %v1909
      %v2120 = vpack.c.b16 %v1912, %v1911
      %v2121 = vpack.c.b16 %v1914, %v1913
      %v2122 = vpack.c.b16 %v1916, %v1915
      %v2123 = vpack.c.b16 %v1918, %v1917
      %v2124 = vpack.c.b16 %v1920, %v1919
      %v2125 = vpack.c.b16 %v1922, %v1921
      %v2126 = vpack.c.b16 %v1924, %v1923
      %v2127 = vpack.c.b16 %v1926, %v1925
      %v2128 = vpack.c.b16 %v1928, %v1927
      %v2129 = vpack.c.b16 %v1930, %v1929
      %v2130 = vpack.c.b16 %v1932, %v1931
      %v2131 = vpack.c.b16 %v1934, %v1933
      %v2132 = vpack.c.b16 %v1936, %v1935
      %v2133 = vpack.c.b16 %v1938, %v1937
      %v2134 = vpack.c.b16 %v1940, %v1939
      %v2135 = vpack.c.b16 %v1942, %v1941
      %v2136 = vpack.c.b16 %v1944, %v1943
      %v2137 = vpack.c.b16 %v1946, %v1945
      %v2138 = vpack.c.b16 %v1948, %v1947
      %v2139 = vpack.c.b16 %v1950, %v1949
      %v2140 = vpack.c.b16 %v1952, %v1951
      %v2141 = vpack.c.b16 %v1954, %v1953
      %v2142 = vpack.c.b16 %v1956, %v1955
      %v2143 = vpack.c.b16 %v1958, %v1957
      %v2144 = vpack.c.b16 %v1960, %v1959
      %v2145 = vpack.c.b16 %v1962, %v1961
      %v2146 = vpack.c.b16 %v1964, %v1963
      %v2147 = vpack.c.b16 %v1966, %v1965
      %v2148 = vpack.c.b16 %v1968, %v1967
      %v2149 = vpack.c.b16 %v1970, %v1969
      %v2150 = vpack.c.b16 %v1972, %v1971
      %v2151 = vpack.c.b16 %v1974, %v1973
      %v2152 = vpack.c.b16 %v1976, %v1975
      %v2153 = vpack.c.b16 %v1978, %v1977
      %v2154 = vpack.c.b16 %v1980, %v1979
      %v2155 = vpack.c.b16 %v1982, %v1981
      %v2156 = vpack.c.b16 %v1984, %v1983
      %v2157 = vpack.c.b16 %v1986, %v1985
      %v2158 = vpack.c.b16 %v1988, %v1987
      %v2159 = vpack.c.b16 %v1990, %v1989
      %v2160 = vpack.c.b16 %v1992, %v1991
      %v2161 = vpack.c.b16 %v1994, %v1993
      %v2162 = vpack.c.b16 %v1996, %v1995
      %v2163 = vpack.c.b16 %v1998, %v1997
      %v2164 = vpack.c.b16 %v2000, %v1999
      %v2165 = vpack.c.b16 %v2002, %v2001
      %v2166 = vpack.c.b16 %v2004, %v2003
      %v2167 = vpack.c.b16 %v2006, %v2005
      %v2168 = vpack.c.b16 %v2008, %v2007
      %v2169 = vpack.c.b16 %v2010, %v2009
      %v2170 = vpack.c.b16 %v2012, %v2011
      %v2171 = vpack.c.b16 %v2014, %v2013
      %v2172 = vpack.c.b16 %v2016, %v2015
      %v2173 = vpack.c.b16 %v2018, %v2017
      %v2174 = vpack.c.b16 %v2020, %v2019
      %v2175 = vpack.c.b16 %v2022, %v2021
      %v2176 = vpack.c.b16 %v2024, %v2023
      %v2177 = vpack.c.b16 %v2026, %v2025
      %v2178 = vpack.c.b16 %v2028, %v2027
      %v2179 = vpack.c.b16 %v2030, %v2029
      %v2180 = vpack.c.b16 %v2032, %v2031
      %v2181 = vpack.c.b16 %v2034, %v2033
      %v2182 = vpack.c.b16 %v2036, %v2035
      %v2183 = vpack.c.b16 %v2038, %v2037
      %v2184 = vpack.c.b16 %v2040, %v2039
      %2329 = vmatprep.subr.bf16.mxu0 0
      %2330 = vmatpush1.bf16.msra.mxu0 %v2041
      %2331 = vmatprep.subr.bf16.mxu0 0
      %2332 = vmatpush1.bf16.msra.mxu0 %v2042
      %2333 = vmatprep.subr.bf16.mxu0 0
      %2334 = vmatpush1.bf16.msra.mxu0 %v2043
      %2335 = vmatprep.subr.bf16.mxu0 0
      %2336 = vmatpush1.bf16.msra.mxu0 %v2044
      %2337 = vmatprep.subr.bf16.mxu0 0
      %2338 = vmatpush1.bf16.msra.mxu0 %v2045
      %2339 = vmatprep.subr.bf16.mxu0 0
      %2340 = vmatpush1.bf16.msra.mxu0 %v2046
      %2341 = vmatprep.subr.bf16.mxu0 0
      %2342 = vmatpush1.bf16.msra.mxu0 %v2047
      %2343 = vmatprep.subr.bf16.mxu0 0
      %2344 = vmatpush1.bf16.msra.mxu0 %v2048
      %2345 = vmatprep.subr.bf16.mxu0 0
      %2346 = vmatpush1.bf16.msra.mxu0 %v2049
      %2347 = vmatprep.subr.bf16.mxu0 0
      %2348 = vmatpush1.bf16.msra.mxu0 %v2050
      %2349 = vmatprep.subr.bf16.mxu0 0
      %2350 = vmatpush1.bf16.msra.mxu0 %v2051
      %2351 = vmatprep.subr.bf16.mxu0 0
      %2352 = vmatpush1.bf16.msra.mxu0 %v2052
      %2353 = vmatprep.subr.bf16.mxu0 0
      %2354 = vmatpush1.bf16.msra.mxu0 %v2053
      %2355 = vmatprep.subr.bf16.mxu0 0
      %2356 = vmatpush1.bf16.msra.mxu0 %v2054
      %2357 = vmatprep.subr.bf16.mxu0 0
      %2358 = vmatpush1.bf16.msra.mxu0 %v2055
      %2359 = vmatprep.subr.bf16.mxu0 0
      %2360 = vmatpush1.bf16.msra.mxu0 %v2056
      %2361 = vmatprep.mubr.bf16.mxu0 %v1142
      %2362 = vmatmul.mubr.bf16.gmra.mrb[0].mxu0 %v1141
      %v2363 = vpop.f32.mrb[0].mxu0
      %v2364 = vadd.f32 0.0, %v2363
      %v2365 = vpop.f32.mrb[0].mxu0
      %v2366 = vpop.f32.mrb[0].mxu0
      %v2367 = vadd.f32 0.0, %v2366
      %v2368 = vpop.f32.mrb[0].mxu0
      %2369 = vmatprep.mubr.bf16.mxu0 %v1160
      %2370 = vmatmul.mubr.bf16.gmra.mrb[0].mxu0 %v1159
      %v2371 = vpop.f32.mrb[0].mxu0
      %v2372 = vadd.f32 0.0, %v2371
      %v2373 = vpop.f32.mrb[0].mxu0
      %v2374 = vpop.f32.mrb[0].mxu0
      %v2375 = vadd.f32 0.0, %v2374
      %v2376 = vpop.f32.mrb[0].mxu0
      %2377 = vmatprep.mubr.bf16.mxu0 %v1178
      %2378 = vmatmul.mubr.bf16.gmra.mrb[0].mxu0 %v1177
      %v2379 = vpop.f32.mrb[0].mxu0
      %v2380 = vadd.f32 0.0, %v2379
      %v2381 = vpop.f32.mrb[0].mxu0
      %v2382 = vpop.f32.mrb[0].mxu0
      %v2383 = vadd.f32 0.0, %v2382
      %v2384 = vpop.f32.mrb[0].mxu0
      %2385 = vmatprep.mubr.bf16.mxu0 %v1196
      %2386 = vmatmul.mubr.bf16.gmra.mrb[0].mxu0 %v1195
      %v2387 = vpop.f32.mrb[0].mxu0
      %v2388 = vadd.f32 0.0, %v2387
      %v2389 = vpop.f32.mrb[0].mxu0
      %v2390 = vpop.f32.mrb[0].mxu0
      %v2391 = vadd.f32 0.0, %v2390
      %v2392 = vpop.f32.mrb[0].mxu0
      %2393 = vmatprep.mubr.bf16.mxu0 %v1214
      %2394 = vmatmul.mubr.bf16.gmra.mrb[0].mxu0 %v1213
      %v2395 = vpop.f32.mrb[0].mxu0
      %v2396 = vadd.f32 0.0, %v2395
      %v2397 = vpop.f32.mrb[0].mxu0
      %v2398 = vpop.f32.mrb[0].mxu0
      %v2399 = vadd.f32 0.0, %v2398
      %v2400 = vpop.f32.mrb[0].mxu0
      %2401 = vmatprep.mubr.bf16.mxu0 %v1232
      %2402 = vmatmul.mubr.bf16.gmra.mrb[0].mxu0 %v1231
      %v2403 = vpop.f32.mrb[0].mxu0
      %v2404 = vadd.f32 0.0, %v2403
      %v2405 = vpop.f32.mrb[0].mxu0
      %v2406 = vpop.f32.mrb[0].mxu0
      %v2407 = vadd.f32 0.0, %v2406
      %v2408 = vpop.f32.mrb[0].mxu0
      %2409 = vmatprep.mubr.bf16.mxu0 %v1250
      %2410 = vmatmul.mubr.bf16.gmra.mrb[0].mxu0 %v1249
      %v2411 = vpop.f32.mrb[0].mxu0
      %v2412 = vadd.f32 0.0, %v2411
      %v2413 = vpop.f32.mrb[0].mxu0
      %v2414 = vpop.f32.mrb[0].mxu0
      %v2415 = vadd.f32 0.0, %v2414
      %v2416 = vpop.f32.mrb[0].mxu0
      %2417 = vmatprep.mubr.bf16.mxu0 %v1268
      %2418 = vmatmul.mubr.bf16.gmra.mrb[0].mxu0 %v1267
      %v2419 = vpop.f32.mrb[0].mxu0
      %v2420 = vadd.f32 0.0, %v2419
      %v2421 = vpop.f32.mrb[0].mxu0
      %v2422 = vpop.f32.mrb[0].mxu0
      %v2423 = vadd.f32 0.0, %v2422
      %v2424 = vpop.f32.mrb[0].mxu0
      %2425 = vmatprep.mubr.bf16.mxu0 %v1286
      %2426 = vmatmul.mubr.bf16.gmra.mrb[0].mxu0 %v1285
      %v2427 = vpop.f32.mrb[0].mxu0
      %v2428 = vadd.f32 0.0, %v2427
      %v2429 = vpop.f32.mrb[0].mxu0
      %v2430 = vpop.f32.mrb[0].mxu0
      %v2431 = vadd.f32 0.0, %v2430
      %v2432 = vpop.f32.mrb[0].mxu0
      %2433 = vdwg.mxu0
      %2434 = vmatprep.subr.bf16.mxu0 0
      %2435 = vmatpush1.bf16.msra.mxu0 %v2057
      %2436 = vmatprep.subr.bf16.mxu0 0
      %2437 = vmatpush1.bf16.msra.mxu0 %v2058
      %2438 = vmatprep.subr.bf16.mxu0 0
      %2439 = vmatpush1.bf16.msra.mxu0 %v2059
      %2440 = vmatprep.subr.bf16.mxu0 0
      %2441 = vmatpush1.bf16.msra.mxu0 %v2060
      %2442 = vmatprep.subr.bf16.mxu0 0
      %2443 = vmatpush1.bf16.msra.mxu0 %v2061
      %2444 = vmatprep.subr.bf16.mxu0 0
      %2445 = vmatpush1.bf16.msra.mxu0 %v2062
      %2446 = vmatprep.subr.bf16.mxu0 0
      %2447 = vmatpush1.bf16.msra.mxu0 %v2063
      %2448 = vmatprep.subr.bf16.mxu0 0
      %2449 = vmatpush1.bf16.msra.mxu0 %v2064
      %2450 = vmatprep.subr.bf16.mxu0 0
      %2451 = vmatpush1.bf16.msra.mxu0 %v2065
      %2452 = vmatprep.subr.bf16.mxu0 0
      %2453 = vmatpush1.bf16.msra.mxu0 %v2066
      %2454 = vmatprep.subr.bf16.mxu0 0
      %2455 = vmatpush1.bf16.msra.mxu0 %v2067
      %2456 = vmatprep.subr.bf16.mxu0 0
      %2457 = vmatpush1.bf16.msra.mxu0 %v2068
      %2458 = vmatprep.subr.bf16.mxu0 0
      %2459 = vmatpush1.bf16.msra.mxu0 %v2069
      %2460 = vmatprep.subr.bf16.mxu0 0
      %2461 = vmatpush1.bf16.msra.mxu0 %v2070
      %2462 = vmatprep.subr.bf16.mxu0 0
      %2463 = vmatpush1.bf16.msra.mxu0 %v2071
      %2464 = vmatprep.subr.bf16.mxu0 0
      %2465 = vmatpush1.bf16.msra.mxu0 %v2072
      %2466 = vmatprep.mubr.bf16.mxu0 %v1144
      %2467 = vmatmul.mubr.bf16.gmra.mrb[0].mxu0 %v1143
      %v2468 = vpop.f32.mrb[0].mxu0
      %v2469 = vadd.f32 %v2364, %v2468
      %v2470 = vpop.f32.mrb[0].mxu0
      %v2471 = vpop.f32.mrb[0].mxu0
      %v2472 = vadd.f32 %v2367, %v2471
      %v2473 = vpop.f32.mrb[0].mxu0
      %2474 = vmatprep.mubr.bf16.mxu0 %v1162
      %2475 = vmatmul.mubr.bf16.gmra.mrb[0].mxu0 %v1161
      %v2476 = vpop.f32.mrb[0].mxu0
      %v2477 = vadd.f32 %v2372, %v2476
      %v2478 = vpop.f32.mrb[0].mxu0
      %v2479 = vpop.f32.mrb[0].mxu0
      %v2480 = vadd.f32 %v2375, %v2479
      %v2481 = vpop.f32.mrb[0].mxu0
      %2482 = vmatprep.mubr.bf16.mxu0 %v1180
      %2483 = vmatmul.mubr.bf16.gmra.mrb[0].mxu0 %v1179
      %v2484 = vpop.f32.mrb[0].mxu0
      %v2485 = vadd.f32 %v2380, %v2484
      %v2486 = vpop.f32.mrb[0].mxu0
      %v2487 = vpop.f32.mrb[0].mxu0
      %v2488 = vadd.f32 %v2383, %v2487
      %v2489 = vpop.f32.mrb[0].mxu0
      %2490 = vmatprep.mubr.bf16.mxu0 %v1198
      %2491 = vmatmul.mubr.bf16.gmra.mrb[0].mxu0 %v1197
      %v2492 = vpop.f32.mrb[0].mxu0
      %v2493 = vadd.f32 %v2388, %v2492
      %v2494 = vpop.f32.mrb[0].mxu0
      %v2495 = vpop.f32.mrb[0].mxu0
      %v2496 = vadd.f32 %v2391, %v2495
      %v2497 = vpop.f32.mrb[0].mxu0
      %2498 = vmatprep.mubr.bf16.mxu0 %v1216
      %2499 = vmatmul.mubr.bf16.gmra.mrb[0].mxu0 %v1215
      %v2500 = vpop.f32.mrb[0].mxu0
      %v2501 = vadd.f32 %v2396, %v2500
      %v2502 = vpop.f32.mrb[0].mxu0
      %v2503 = vpop.f32.mrb[0].mxu0
      %v2504 = vadd.f32 %v2399, %v2503
      %v2505 = vpop.f32.mrb[0].mxu0
      %2506 = vmatprep.mubr.bf16.mxu0 %v1234
      %2507 = vmatmul.mubr.bf16.gmra.mrb[0].mxu0 %v1233
      %v2508 = vpop.f32.mrb[0].mxu0
      %v2509 = vadd.f32 %v2404, %v2508
      %v2510 = vpop.f32.mrb[0].mxu0
      %v2511 = vpop.f32.mrb[0].mxu0
      %v2512 = vadd.f32 %v2407, %v2511
      %v2513 = vpop.f32.mrb[0].mxu0
      %2514 = vmatprep.mubr.bf16.mxu0 %v1252
      %2515 = vmatmul.mubr.bf16.gmra.mrb[0].mxu0 %v1251
      %v2516 = vpop.f32.mrb[0].mxu0
      %v2517 = vadd.f32 %v2412, %v2516
      %v2518 = vpop.f32.mrb[0].mxu0
      %v2519 = vpop.f32.mrb[0].mxu0
      %v2520 = vadd.f32 %v2415, %v2519
      %v2521 = vpop.f32.mrb[0].mxu0
      %2522 = vmatprep.mubr.bf16.mxu0 %v1270
      %2523 = vmatmul.mubr.bf16.gmra.mrb[0].mxu0 %v1269
      %v2524 = vpop.f32.mrb[0].mxu0
      %v2525 = vadd.f32 %v2420, %v2524
      %v2526 = vpop.f32.mrb[0].mxu0
      %v2527 = vpop.f32.mrb[0].mxu0
      %v2528 = vadd.f32 %v2423, %v2527
      %v2529 = vpop.f32.mrb[0].mxu0
      %2530 = vmatprep.mubr.bf16.mxu0 %v1288
      %2531 = vmatmul.mubr.bf16.gmra.mrb[0].mxu0 %v1287
      %v2532 = vpop.f32.mrb[0].mxu0
      %v2533 = vadd.f32 %v2428, %v2532
      %v2534 = vpop.f32.mrb[0].mxu0
      %v2535 = vpop.f32.mrb[0].mxu0
      %v2536 = vadd.f32 %v2431, %v2535
      %v2537 = vpop.f32.mrb[0].mxu0
      %2538 = vdwg.mxu0
      %2539 = vmatprep.subr.bf16.mxu0 0
      %2540 = vmatpush1.bf16.msra.mxu0 %v2073
      %2541 = vmatprep.subr.bf16.mxu0 0
      %2542 = vmatpush1.bf16.msra.mxu0 %v2074
      %2543 = vmatprep.subr.bf16.mxu0 0
      %2544 = vmatpush1.bf16.msra.mxu0 %v2075
      %2545 = vmatprep.subr.bf16.mxu0 0
      %2546 = vmatpush1.bf16.msra.mxu0 %v2076
      %2547 = vmatprep.subr.bf16.mxu0 0
      %2548 = vmatpush1.bf16.msra.mxu0 %v2077
      %2549 = vmatprep.subr.bf16.mxu0 0
      %2550 = vmatpush1.bf16.msra.mxu0 %v2078
      %2551 = vmatprep.subr.bf16.mxu0 0
      %2552 = vmatpush1.bf16.msra.mxu0 %v2079
      %2553 = vmatprep.subr.bf16.mxu0 0
      %2554 = vmatpush1.bf16.msra.mxu0 %v2080
      %2555 = vmatprep.subr.bf16.mxu0 0
      %2556 = vmatpush1.bf16.msra.mxu0 %v2081
      %2557 = vmatprep.subr.bf16.mxu0 0
      %2558 = vmatpush1.bf16.msra.mxu0 %v2082
      %2559 = vmatprep.subr.bf16.mxu0 0
      %2560 = vmatpush1.bf16.msra.mxu0 %v2083
      %2561 = vmatprep.subr.bf16.mxu0 0
      %2562 = vmatpush1.bf16.msra.mxu0 %v2084
      %2563 = vmatprep.subr.bf16.mxu0 0
      %2564 = vmatpush1.bf16.msra.mxu0 %v2085
      %2565 = vmatprep.subr.bf16.mxu0 0
      %2566 = vmatpush1.bf16.msra.mxu0 %v2086
      %2567 = vmatprep.subr.bf16.mxu0 0
      %2568 = vmatpush1.bf16.msra.mxu0 %v2087
      %2569 = vmatprep.subr.bf16.mxu0 0
      %2570 = vmatpush1.bf16.msra.mxu0 %v2088
      %2571 = vmatprep.mubr.bf16.mxu0 %v1146
      %2572 = vmatmul.mubr.bf16.gmra.mrb[0].mxu0 %v1145
      %v2573 = vpop.f32.mrb[0].mxu0
      %v2574 = vadd.f32 %v2469, %v2573
      %v2575 = vpop.f32.mrb[0].mxu0
      %v2576 = vpop.f32.mrb[0].mxu0
      %v2577 = vadd.f32 %v2472, %v2576
      %v2578 = vpop.f32.mrb[0].mxu0
      %2579 = vmatprep.mubr.bf16.mxu0 %v1164
      %2580 = vmatmul.mubr.bf16.gmra.mrb[0].mxu0 %v1163
      %v2581 = vpop.f32.mrb[0].mxu0
      %v2582 = vadd.f32 %v2477, %v2581
      %v2583 = vpop.f32.mrb[0].mxu0
      %v2584 = vpop.f32.mrb[0].mxu0
      %v2585 = vadd.f32 %v2480, %v2584
      %v2586 = vpop.f32.mrb[0].mxu0
      %2587 = vmatprep.mubr.bf16.mxu0 %v1182
      %2588 = vmatmul.mubr.bf16.gmra.mrb[0].mxu0 %v1181
      %v2589 = vpop.f32.mrb[0].mxu0
      %v2590 = vadd.f32 %v2485, %v2589
      %v2591 = vpop.f32.mrb[0].mxu0
      %v2592 = vpop.f32.mrb[0].mxu0
      %v2593 = vadd.f32 %v2488, %v2592
      %v2594 = vpop.f32.mrb[0].mxu0
      %2595 = vmatprep.mubr.bf16.mxu0 %v1200
      %2596 = vmatmul.mubr.bf16.gmra.mrb[0].mxu0 %v1199
      %v2597 = vpop.f32.mrb[0].mxu0
      %v2598 = vadd.f32 %v2493, %v2597
      %v2599 = vpop.f32.mrb[0].mxu0
      %v2600 = vpop.f32.mrb[0].mxu0
      %v2601 = vadd.f32 %v2496, %v2600
      %v2602 = vpop.f32.mrb[0].mxu0
      %2603 = vmatprep.mubr.bf16.mxu0 %v1218
      %2604 = vmatmul.mubr.bf16.gmra.mrb[0].mxu0 %v1217
      %v2605 = vpop.f32.mrb[0].mxu0
      %v2606 = vadd.f32 %v2501, %v2605
      %v2607 = vpop.f32.mrb[0].mxu0
      %v2608 = vpop.f32.mrb[0].mxu0
      %v2609 = vadd.f32 %v2504, %v2608
      %v2610 = vpop.f32.mrb[0].mxu0
      %2611 = vmatprep.mubr.bf16.mxu0 %v1236
      %2612 = vmatmul.mubr.bf16.gmra.mrb[0].mxu0 %v1235
      %v2613 = vpop.f32.mrb[0].mxu0
      %v2614 = vadd.f32 %v2509, %v2613
      %v2615 = vpop.f32.mrb[0].mxu0
      %v2616 = vpop.f32.mrb[0].mxu0
      %v2617 = vadd.f32 %v2512, %v2616
      %v2618 = vpop.f32.mrb[0].mxu0
      %2619 = vmatprep.mubr.bf16.mxu0 %v1254
      %2620 = vmatmul.mubr.bf16.gmra.mrb[0].mxu0 %v1253
      %v2621 = vpop.f32.mrb[0].mxu0
      %v2622 = vadd.f32 %v2517, %v2621
      %v2623 = vpop.f32.mrb[0].mxu0
      %v2624 = vpop.f32.mrb[0].mxu0
      %v2625 = vadd.f32 %v2520, %v2624
      %v2626 = vpop.f32.mrb[0].mxu0
      %2627 = vmatprep.mubr.bf16.mxu0 %v1272
      %2628 = vmatmul.mubr.bf16.gmra.mrb[0].mxu0 %v1271
      %v2629 = vpop.f32.mrb[0].mxu0
      %v2630 = vadd.f32 %v2525, %v2629
      %v2631 = vpop.f32.mrb[0].mxu0
      %v2632 = vpop.f32.mrb[0].mxu0
      %v2633 = vadd.f32 %v2528, %v2632
      %v2634 = vpop.f32.mrb[0].mxu0
      %2635 = vmatprep.mubr.bf16.mxu0 %v1290
      %2636 = vmatmul.mubr.bf16.gmra.mrb[0].mxu0 %v1289
      %v2637 = vpop.f32.mrb[0].mxu0
      %v2638 = vadd.f32 %v2533, %v2637
      %v2639 = vpop.f32.mrb[0].mxu0
      %v2640 = vpop.f32.mrb[0].mxu0
      %v2641 = vadd.f32 %v2536, %v2640
      %v2642 = vpop.f32.mrb[0].mxu0
      %2643 = vdwg.mxu0
      %2644 = vmatprep.subr.bf16.mxu0 0
      %2645 = vmatpush1.bf16.msra.mxu0 %v2089
      %2646 = vmatprep.subr.bf16.mxu0 0
      %2647 = vmatpush1.bf16.msra.mxu0 %v2090
      %2648 = vmatprep.subr.bf16.mxu0 0
      %2649 = vmatpush1.bf16.msra.mxu0 %v2091
      %2650 = vmatprep.subr.bf16.mxu0 0
      %2651 = vmatpush1.bf16.msra.mxu0 %v2092
      %2652 = vmatprep.subr.bf16.mxu0 0
      %2653 = vmatpush1.bf16.msra.mxu0 %v2093
      %2654 = vmatprep.subr.bf16.mxu0 0
      %2655 = vmatpush1.bf16.msra.mxu0 %v2094
      %2656 = vmatprep.subr.bf16.mxu0 0
      %2657 = vmatpush1.bf16.msra.mxu0 %v2095
      %2658 = vmatprep.subr.bf16.mxu0 0
      %2659 = vmatpush1.bf16.msra.mxu0 %v2096
      %2660 = vmatprep.subr.bf16.mxu0 0
      %2661 = vmatpush1.bf16.msra.mxu0 %v2097
      %2662 = vmatprep.subr.bf16.mxu0 0
      %2663 = vmatpush1.bf16.msra.mxu0 %v2098
      %2664 = vmatprep.subr.bf16.mxu0 0
      %2665 = vmatpush1.bf16.msra.mxu0 %v2099
      %2666 = vmatprep.subr.bf16.mxu0 0
      %2667 = vmatpush1.bf16.msra.mxu0 %v2100
      %2668 = vmatprep.subr.bf16.mxu0 0
      %2669 = vmatpush1.bf16.msra.mxu0 %v2101
      %2670 = vmatprep.subr.bf16.mxu0 0
      %2671 = vmatpush1.bf16.msra.mxu0 %v2102
      %2672 = vmatprep.subr.bf16.mxu0 0
      %2673 = vmatpush1.bf16.msra.mxu0 %v2103
      %2674 = vmatprep.subr.bf16.mxu0 0
      %2675 = vmatpush1.bf16.msra.mxu0 %v2104
      %2676 = vmatprep.mubr.bf16.mxu0 %v1148
      %2677 = vmatmul.mubr.bf16.gmra.mrb[0].mxu0 %v1147
      %v2678 = vpop.f32.mrb[0].mxu0
      %v2679 = vadd.f32 %v2574, %v2678
      %v2680 = vpop.f32.mrb[0].mxu0
      %v2681 = vpop.f32.mrb[0].mxu0
      %v2682 = vadd.f32 %v2577, %v2681
      %v2683 = vpop.f32.mrb[0].mxu0
      %2684 = vmatprep.mubr.bf16.mxu0 %v1166
      %2685 = vmatmul.mubr.bf16.gmra.mrb[0].mxu0 %v1165
      %v2686 = vpop.f32.mrb[0].mxu0
      %v2687 = vadd.f32 %v2582, %v2686
      %v2688 = vpop.f32.mrb[0].mxu0
      %v2689 = vpop.f32.mrb[0].mxu0
      %v2690 = vadd.f32 %v2585, %v2689
      %v2691 = vpop.f32.mrb[0].mxu0
      %2692 = vmatprep.mubr.bf16.mxu0 %v1184
      %2693 = vmatmul.mubr.bf16.gmra.mrb[0].mxu0 %v1183
      %v2694 = vpop.f32.mrb[0].mxu0
      %v2695 = vadd.f32 %v2590, %v2694
      %v2696 = vpop.f32.mrb[0].mxu0
      %v2697 = vpop.f32.mrb[0].mxu0
      %v2698 = vadd.f32 %v2593, %v2697
      %v2699 = vpop.f32.mrb[0].mxu0
      %2700 = vmatprep.mubr.bf16.mxu0 %v1202
      %2701 = vmatmul.mubr.bf16.gmra.mrb[0].mxu0 %v1201
      %v2702 = vpop.f32.mrb[0].mxu0
      %v2703 = vadd.f32 %v2598, %v2702
      %v2704 = vpop.f32.mrb[0].mxu0
      %v2705 = vpop.f32.mrb[0].mxu0
      %v2706 = vadd.f32 %v2601, %v2705
      %v2707 = vpop.f32.mrb[0].mxu0
      %2708 = vmatprep.mubr.bf16.mxu0 %v1220
      %2709 = vmatmul.mubr.bf16.gmra.mrb[0].mxu0 %v1219
      %v2710 = vpop.f32.mrb[0].mxu0
      %v2711 = vadd.f32 %v2606, %v2710
      %v2712 = vpop.f32.mrb[0].mxu0
      %v2713 = vpop.f32.mrb[0].mxu0
      %v2714 = vadd.f32 %v2609, %v2713
      %v2715 = vpop.f32.mrb[0].mxu0
      %2716 = vmatprep.mubr.bf16.mxu0 %v1238
      %2717 = vmatmul.mubr.bf16.gmra.mrb[0].mxu0 %v1237
      %v2718 = vpop.f32.mrb[0].mxu0
      %v2719 = vadd.f32 %v2614, %v2718
      %v2720 = vpop.f32.mrb[0].mxu0
      %v2721 = vpop.f32.mrb[0].mxu0
      %v2722 = vadd.f32 %v2617, %v2721
      %v2723 = vpop.f32.mrb[0].mxu0
      %2724 = vmatprep.mubr.bf16.mxu0 %v1256
      %2725 = vmatmul.mubr.bf16.gmra.mrb[0].mxu0 %v1255
      %v2726 = vpop.f32.mrb[0].mxu0
      %v2727 = vadd.f32 %v2622, %v2726
      %v2728 = vpop.f32.mrb[0].mxu0
      %v2729 = vpop.f32.mrb[0].mxu0
      %v2730 = vadd.f32 %v2625, %v2729
      %v2731 = vpop.f32.mrb[0].mxu0
      %2732 = vmatprep.mubr.bf16.mxu0 %v1274
      %2733 = vmatmul.mubr.bf16.gmra.mrb[0].mxu0 %v1273
      %v2734 = vpop.f32.mrb[0].mxu0
      %v2735 = vadd.f32 %v2630, %v2734
      %v2736 = vpop.f32.mrb[0].mxu0
      %v2737 = vpop.f32.mrb[0].mxu0
      %v2738 = vadd.f32 %v2633, %v2737
      %v2739 = vpop.f32.mrb[0].mxu0
      %2740 = vmatprep.mubr.bf16.mxu0 %v1292
      %2741 = vmatmul.mubr.bf16.gmra.mrb[0].mxu0 %v1291
      %v2742 = vpop.f32.mrb[0].mxu0
      %v2743 = vadd.f32 %v2638, %v2742
      %v2744 = vpop.f32.mrb[0].mxu0
      %v2745 = vpop.f32.mrb[0].mxu0
      %v2746 = vadd.f32 %v2641, %v2745
      %v2747 = vpop.f32.mrb[0].mxu0
      %2748 = vdwg.mxu0
      %2749 = vmatprep.subr.bf16.mxu0 0
      %2750 = vmatpush1.bf16.msra.mxu0 %v2105
      %2751 = vmatprep.subr.bf16.mxu0 0
      %2752 = vmatpush1.bf16.msra.mxu0 %v2106
      %2753 = vmatprep.subr.bf16.mxu0 0
      %2754 = vmatpush1.bf16.msra.mxu0 %v2107
      %2755 = vmatprep.subr.bf16.mxu0 0
      %2756 = vmatpush1.bf16.msra.mxu0 %v2108
      %2757 = vmatprep.subr.bf16.mxu0 0
      %2758 = vmatpush1.bf16.msra.mxu0 %v2109
      %2759 = vmatprep.subr.bf16.mxu0 0
      %2760 = vmatpush1.bf16.msra.mxu0 %v2110
      %2761 = vmatprep.subr.bf16.mxu0 0
      %2762 = vmatpush1.bf16.msra.mxu0 %v2111
      %2763 = vmatprep.subr.bf16.mxu0 0
      %2764 = vmatpush1.bf16.msra.mxu0 %v2112
      %2765 = vmatprep.subr.bf16.mxu0 0
      %2766 = vmatpush1.bf16.msra.mxu0 %v2113
      %2767 = vmatprep.subr.bf16.mxu0 0
      %2768 = vmatpush1.bf16.msra.mxu0 %v2114
      %2769 = vmatprep.subr.bf16.mxu0 0
      %2770 = vmatpush1.bf16.msra.mxu0 %v2115
      %2771 = vmatprep.subr.bf16.mxu0 0
      %2772 = vmatpush1.bf16.msra.mxu0 %v2116
      %2773 = vmatprep.subr.bf16.mxu0 0
      %2774 = vmatpush1.bf16.msra.mxu0 %v2117
      %2775 = vmatprep.subr.bf16.mxu0 0
      %2776 = vmatpush1.bf16.msra.mxu0 %v2118
      %2777 = vmatprep.subr.bf16.mxu0 0
      %2778 = vmatpush1.bf16.msra.mxu0 %v2119
      %2779 = vmatprep.subr.bf16.mxu0 0
      %2780 = vmatpush1.bf16.msra.mxu0 %v2120
      %2781 = vmatprep.mubr.bf16.mxu0 %v1150
      %2782 = vmatmul.mubr.bf16.gmra.mrb[0].mxu0 %v1149
      %v2783 = vpop.f32.mrb[0].mxu0
      %v2784 = vadd.f32 %v2679, %v2783
      %v2785 = vpop.f32.mrb[0].mxu0
      %v2786 = vpop.f32.mrb[0].mxu0
      %v2787 = vadd.f32 %v2682, %v2786
      %v2788 = vpop.f32.mrb[0].mxu0
      %2789 = vmatprep.mubr.bf16.mxu0 %v1168
      %2790 = vmatmul.mubr.bf16.gmra.mrb[0].mxu0 %v1167
      %v2791 = vpop.f32.mrb[0].mxu0
      %v2792 = vadd.f32 %v2687, %v2791
      %v2793 = vpop.f32.mrb[0].mxu0
      %v2794 = vpop.f32.mrb[0].mxu0
      %v2795 = vadd.f32 %v2690, %v2794
      %v2796 = vpop.f32.mrb[0].mxu0
      %2797 = vmatprep.mubr.bf16.mxu0 %v1186
      %2798 = vmatmul.mubr.bf16.gmra.mrb[0].mxu0 %v1185
      %v2799 = vpop.f32.mrb[0].mxu0
      %v2800 = vadd.f32 %v2695, %v2799
      %v2801 = vpop.f32.mrb[0].mxu0
      %v2802 = vpop.f32.mrb[0].mxu0
      %v2803 = vadd.f32 %v2698, %v2802
      %v2804 = vpop.f32.mrb[0].mxu0
      %2805 = vmatprep.mubr.bf16.mxu0 %v1204
      %2806 = vmatmul.mubr.bf16.gmra.mrb[0].mxu0 %v1203
      %v2807 = vpop.f32.mrb[0].mxu0
      %v2808 = vadd.f32 %v2703, %v2807
      %v2809 = vpop.f32.mrb[0].mxu0
      %v2810 = vpop.f32.mrb[0].mxu0
      %v2811 = vadd.f32 %v2706, %v2810
      %v2812 = vpop.f32.mrb[0].mxu0
      %2813 = vmatprep.mubr.bf16.mxu0 %v1222
      %2814 = vmatmul.mubr.bf16.gmra.mrb[0].mxu0 %v1221
      %v2815 = vpop.f32.mrb[0].mxu0
      %v2816 = vadd.f32 %v2711, %v2815
      %v2817 = vpop.f32.mrb[0].mxu0
      %v2818 = vpop.f32.mrb[0].mxu0
      %v2819 = vadd.f32 %v2714, %v2818
      %v2820 = vpop.f32.mrb[0].mxu0
      %2821 = vmatprep.mubr.bf16.mxu0 %v1240
      %2822 = vmatmul.mubr.bf16.gmra.mrb[0].mxu0 %v1239
      %v2823 = vpop.f32.mrb[0].mxu0
      %v2824 = vadd.f32 %v2719, %v2823
      %v2825 = vpop.f32.mrb[0].mxu0
      %v2826 = vpop.f32.mrb[0].mxu0
      %v2827 = vadd.f32 %v2722, %v2826
      %v2828 = vpop.f32.mrb[0].mxu0
      %2829 = vmatprep.mubr.bf16.mxu0 %v1258
      %2830 = vmatmul.mubr.bf16.gmra.mrb[0].mxu0 %v1257
      %v2831 = vpop.f32.mrb[0].mxu0
      %v2832 = vadd.f32 %v2727, %v2831
      %v2833 = vpop.f32.mrb[0].mxu0
      %v2834 = vpop.f32.mrb[0].mxu0
      %v2835 = vadd.f32 %v2730, %v2834
      %v2836 = vpop.f32.mrb[0].mxu0
      %2837 = vmatprep.mubr.bf16.mxu0 %v1276
      %2838 = vmatmul.mubr.bf16.gmra.mrb[0].mxu0 %v1275
      %v2839 = vpop.f32.mrb[0].mxu0
      %v2840 = vadd.f32 %v2735, %v2839
      %v2841 = vpop.f32.mrb[0].mxu0
      %v2842 = vpop.f32.mrb[0].mxu0
      %v2843 = vadd.f32 %v2738, %v2842
      %v2844 = vpop.f32.mrb[0].mxu0
      %2845 = vmatprep.mubr.bf16.mxu0 %v1294
      %2846 = vmatmul.mubr.bf16.gmra.mrb[0].mxu0 %v1293
      %v2847 = vpop.f32.mrb[0].mxu0
      %v2848 = vadd.f32 %v2743, %v2847
      %v2849 = vpop.f32.mrb[0].mxu0
      %v2850 = vpop.f32.mrb[0].mxu0
      %v2851 = vadd.f32 %v2746, %v2850
      %v2852 = vpop.f32.mrb[0].mxu0
      %2853 = vdwg.mxu0
      %2854 = vmatprep.subr.bf16.mxu0 0
      %2855 = vmatpush1.bf16.msra.mxu0 %v2121
      %2856 = vmatprep.subr.bf16.mxu0 0
      %2857 = vmatpush1.bf16.msra.mxu0 %v2122
      %2858 = vmatprep.subr.bf16.mxu0 0
      %2859 = vmatpush1.bf16.msra.mxu0 %v2123
      %2860 = vmatprep.subr.bf16.mxu0 0
      %2861 = vmatpush1.bf16.msra.mxu0 %v2124
      %2862 = vmatprep.subr.bf16.mxu0 0
      %2863 = vmatpush1.bf16.msra.mxu0 %v2125
      %2864 = vmatprep.subr.bf16.mxu0 0
      %2865 = vmatpush1.bf16.msra.mxu0 %v2126
      %2866 = vmatprep.subr.bf16.mxu0 0
      %2867 = vmatpush1.bf16.msra.mxu0 %v2127
      %2868 = vmatprep.subr.bf16.mxu0 0
      %2869 = vmatpush1.bf16.msra.mxu0 %v2128
      %2870 = vmatprep.subr.bf16.mxu0 0
      %2871 = vmatpush1.bf16.msra.mxu0 %v2129
      %2872 = vmatprep.subr.bf16.mxu0 0
      %2873 = vmatpush1.bf16.msra.mxu0 %v2130
      %2874 = vmatprep.subr.bf16.mxu0 0
      %2875 = vmatpush1.bf16.msra.mxu0 %v2131
      %2876 = vmatprep.subr.bf16.mxu0 0
      %2877 = vmatpush1.bf16.msra.mxu0 %v2132
      %2878 = vmatprep.subr.bf16.mxu0 0
      %2879 = vmatpush1.bf16.msra.mxu0 %v2133
      %2880 = vmatprep.subr.bf16.mxu0 0
      %2881 = vmatpush1.bf16.msra.mxu0 %v2134
      %2882 = vmatprep.subr.bf16.mxu0 0
      %2883 = vmatpush1.bf16.msra.mxu0 %v2135
      %2884 = vmatprep.subr.bf16.mxu0 0
      %2885 = vmatpush1.bf16.msra.mxu0 %v2136
      %2886 = vmatprep.mubr.bf16.mxu0 %v1152
      %2887 = vmatmul.mubr.bf16.gmra.mrb[0].mxu0 %v1151
      %v2888 = vpop.f32.mrb[0].mxu0
      %v2889 = vadd.f32 %v2784, %v2888
      %v2890 = vpop.f32.mrb[0].mxu0
      %v2891 = vpop.f32.mrb[0].mxu0
      %v2892 = vadd.f32 %v2787, %v2891
      %v2893 = vpop.f32.mrb[0].mxu0
      %2894 = vmatprep.mubr.bf16.mxu0 %v1170
      %2895 = vmatmul.mubr.bf16.gmra.mrb[0].mxu0 %v1169
      %v2896 = vpop.f32.mrb[0].mxu0
      %v2897 = vadd.f32 %v2792, %v2896
      %v2898 = vpop.f32.mrb[0].mxu0
      %v2899 = vpop.f32.mrb[0].mxu0
      %v2900 = vadd.f32 %v2795, %v2899
      %v2901 = vpop.f32.mrb[0].mxu0
      %2902 = vmatprep.mubr.bf16.mxu0 %v1188
      %2903 = vmatmul.mubr.bf16.gmra.mrb[0].mxu0 %v1187
      %v2904 = vpop.f32.mrb[0].mxu0
      %v2905 = vadd.f32 %v2800, %v2904
      %v2906 = vpop.f32.mrb[0].mxu0
      %v2907 = vpop.f32.mrb[0].mxu0
      %v2908 = vadd.f32 %v2803, %v2907
      %v2909 = vpop.f32.mrb[0].mxu0
      %2910 = vmatprep.mubr.bf16.mxu0 %v1206
      %2911 = vmatmul.mubr.bf16.gmra.mrb[0].mxu0 %v1205
      %v2912 = vpop.f32.mrb[0].mxu0
      %v2913 = vadd.f32 %v2808, %v2912
      %v2914 = vpop.f32.mrb[0].mxu0
      %v2915 = vpop.f32.mrb[0].mxu0
      %v2916 = vadd.f32 %v2811, %v2915
      %v2917 = vpop.f32.mrb[0].mxu0
      %2918 = vmatprep.mubr.bf16.mxu0 %v1224
      %2919 = vmatmul.mubr.bf16.gmra.mrb[0].mxu0 %v1223
      %v2920 = vpop.f32.mrb[0].mxu0
      %v2921 = vadd.f32 %v2816, %v2920
      %v2922 = vpop.f32.mrb[0].mxu0
      %v2923 = vpop.f32.mrb[0].mxu0
      %v2924 = vadd.f32 %v2819, %v2923
      %v2925 = vpop.f32.mrb[0].mxu0
      %2926 = vmatprep.mubr.bf16.mxu0 %v1242
      %2927 = vmatmul.mubr.bf16.gmra.mrb[0].mxu0 %v1241
      %v2928 = vpop.f32.mrb[0].mxu0
      %v2929 = vadd.f32 %v2824, %v2928
      %v2930 = vpop.f32.mrb[0].mxu0
      %v2931 = vpop.f32.mrb[0].mxu0
      %v2932 = vadd.f32 %v2827, %v2931
      %v2933 = vpop.f32.mrb[0].mxu0
      %2934 = vmatprep.mubr.bf16.mxu0 %v1260
      %2935 = vmatmul.mubr.bf16.gmra.mrb[0].mxu0 %v1259
      %v2936 = vpop.f32.mrb[0].mxu0
      %v2937 = vadd.f32 %v2832, %v2936
      %v2938 = vpop.f32.mrb[0].mxu0
      %v2939 = vpop.f32.mrb[0].mxu0
      %v2940 = vadd.f32 %v2835, %v2939
      %v2941 = vpop.f32.mrb[0].mxu0
      %2942 = vmatprep.mubr.bf16.mxu0 %v1278
      %2943 = vmatmul.mubr.bf16.gmra.mrb[0].mxu0 %v1277
      %v2944 = vpop.f32.mrb[0].mxu0
      %v2945 = vadd.f32 %v2840, %v2944
      %v2946 = vpop.f32.mrb[0].mxu0
      %v2947 = vpop.f32.mrb[0].mxu0
      %v2948 = vadd.f32 %v2843, %v2947
      %v2949 = vpop.f32.mrb[0].mxu0
      %2950 = vmatprep.mubr.bf16.mxu0 %v1296
      %2951 = vmatmul.mubr.bf16.gmra.mrb[0].mxu0 %v1295
      %v2952 = vpop.f32.mrb[0].mxu0
      %v2953 = vadd.f32 %v2848, %v2952
      %v2954 = vpop.f32.mrb[0].mxu0
      %v2955 = vpop.f32.mrb[0].mxu0
      %v2956 = vadd.f32 %v2851, %v2955
      %v2957 = vpop.f32.mrb[0].mxu0
      %2958 = vdwg.mxu0
      %2959 = vmatprep.subr.bf16.mxu0 0
      %2960 = vmatpush1.bf16.msra.mxu0 %v2137
      %2961 = vmatprep.subr.bf16.mxu0 0
      %2962 = vmatpush1.bf16.msra.mxu0 %v2138
      %2963 = vmatprep.subr.bf16.mxu0 0
      %2964 = vmatpush1.bf16.msra.mxu0 %v2139
      %2965 = vmatprep.subr.bf16.mxu0 0
      %2966 = vmatpush1.bf16.msra.mxu0 %v2140
      %2967 = vmatprep.subr.bf16.mxu0 0
      %2968 = vmatpush1.bf16.msra.mxu0 %v2141
      %2969 = vmatprep.subr.bf16.mxu0 0
      %2970 = vmatpush1.bf16.msra.mxu0 %v2142
      %2971 = vmatprep.subr.bf16.mxu0 0
      %2972 = vmatpush1.bf16.msra.mxu0 %v2143
      %2973 = vmatprep.subr.bf16.mxu0 0
      %2974 = vmatpush1.bf16.msra.mxu0 %v2144
      %2975 = vmatprep.subr.bf16.mxu0 0
      %2976 = vmatpush1.bf16.msra.mxu0 %v2145
      %2977 = vmatprep.subr.bf16.mxu0 0
      %2978 = vmatpush1.bf16.msra.mxu0 %v2146
      %2979 = vmatprep.subr.bf16.mxu0 0
      %2980 = vmatpush1.bf16.msra.mxu0 %v2147
      %2981 = vmatprep.subr.bf16.mxu0 0
      %2982 = vmatpush1.bf16.msra.mxu0 %v2148
      %2983 = vmatprep.subr.bf16.mxu0 0
      %2984 = vmatpush1.bf16.msra.mxu0 %v2149
      %2985 = vmatprep.subr.bf16.mxu0 0
      %2986 = vmatpush1.bf16.msra.mxu0 %v2150
      %2987 = vmatprep.subr.bf16.mxu0 0
      %2988 = vmatpush1.bf16.msra.mxu0 %v2151
      %2989 = vmatprep.subr.bf16.mxu0 0
      %2990 = vmatpush1.bf16.msra.mxu0 %v2152
      %2991 = vmatprep.mubr.bf16.mxu0 %v1154
      %2992 = vmatmul.mubr.bf16.gmra.mrb[0].mxu0 %v1153
      %v2993 = vpop.f32.mrb[0].mxu0
      %v2994 = vadd.f32 %v2889, %v2993
      %v2995 = vpop.f32.mrb[0].mxu0
      %v2996 = vpop.f32.mrb[0].mxu0
      %v2997 = vadd.f32 %v2892, %v2996
      %v2998 = vpop.f32.mrb[0].mxu0
      %2999 = vmatprep.mubr.bf16.mxu0 %v1172
      %3000 = vmatmul.mubr.bf16.gmra.mrb[0].mxu0 %v1171
      %v3001 = vpop.f32.mrb[0].mxu0
      %v3002 = vadd.f32 %v2897, %v3001
      %v3003 = vpop.f32.mrb[0].mxu0
      %v3004 = vpop.f32.mrb[0].mxu0
      %v3005 = vadd.f32 %v2900, %v3004
      %v3006 = vpop.f32.mrb[0].mxu0
      %3007 = vmatprep.mubr.bf16.mxu0 %v1190
      %3008 = vmatmul.mubr.bf16.gmra.mrb[0].mxu0 %v1189
      %v3009 = vpop.f32.mrb[0].mxu0
      %v3010 = vadd.f32 %v2905, %v3009
      %v3011 = vpop.f32.mrb[0].mxu0
      %v3012 = vpop.f32.mrb[0].mxu0
      %v3013 = vadd.f32 %v2908, %v3012
      %v3014 = vpop.f32.mrb[0].mxu0
      %3015 = vmatprep.mubr.bf16.mxu0 %v1208
      %3016 = vmatmul.mubr.bf16.gmra.mrb[0].mxu0 %v1207
      %v3017 = vpop.f32.mrb[0].mxu0
      %v3018 = vadd.f32 %v2913, %v3017
      %v3019 = vpop.f32.mrb[0].mxu0
      %v3020 = vpop.f32.mrb[0].mxu0
      %v3021 = vadd.f32 %v2916, %v3020
      %v3022 = vpop.f32.mrb[0].mxu0
      %3023 = vmatprep.mubr.bf16.mxu0 %v1226
      %3024 = vmatmul.mubr.bf16.gmra.mrb[0].mxu0 %v1225
      %v3025 = vpop.f32.mrb[0].mxu0
      %v3026 = vadd.f32 %v2921, %v3025
      %v3027 = vpop.f32.mrb[0].mxu0
      %v3028 = vpop.f32.mrb[0].mxu0
      %v3029 = vadd.f32 %v2924, %v3028
      %v3030 = vpop.f32.mrb[0].mxu0
      %3031 = vmatprep.mubr.bf16.mxu0 %v1244
      %3032 = vmatmul.mubr.bf16.gmra.mrb[0].mxu0 %v1243
      %v3033 = vpop.f32.mrb[0].mxu0
      %v3034 = vadd.f32 %v2929, %v3033
      %v3035 = vpop.f32.mrb[0].mxu0
      %v3036 = vpop.f32.mrb[0].mxu0
      %v3037 = vadd.f32 %v2932, %v3036
      %v3038 = vpop.f32.mrb[0].mxu0
      %3039 = vmatprep.mubr.bf16.mxu0 %v1262
      %3040 = vmatmul.mubr.bf16.gmra.mrb[0].mxu0 %v1261
      %v3041 = vpop.f32.mrb[0].mxu0
      %v3042 = vadd.f32 %v2937, %v3041
      %v3043 = vpop.f32.mrb[0].mxu0
      %v3044 = vpop.f32.mrb[0].mxu0
      %v3045 = vadd.f32 %v2940, %v3044
      %v3046 = vpop.f32.mrb[0].mxu0
      %3047 = vmatprep.mubr.bf16.mxu0 %v1280
      %3048 = vmatmul.mubr.bf16.gmra.mrb[0].mxu0 %v1279
      %v3049 = vpop.f32.mrb[0].mxu0
      %v3050 = vadd.f32 %v2945, %v3049
      %v3051 = vpop.f32.mrb[0].mxu0
      %v3052 = vpop.f32.mrb[0].mxu0
      %v3053 = vadd.f32 %v2948, %v3052
      %v3054 = vpop.f32.mrb[0].mxu0
      %3055 = vmatprep.mubr.bf16.mxu0 %v1298
      %3056 = vmatmul.mubr.bf16.gmra.mrb[0].mxu0 %v1297
      %v3057 = vpop.f32.mrb[0].mxu0
      %v3058 = vadd.f32 %v2953, %v3057
      %v3059 = vpop.f32.mrb[0].mxu0
      %v3060 = vpop.f32.mrb[0].mxu0
      %v3061 = vadd.f32 %v2956, %v3060
      %v3062 = vpop.f32.mrb[0].mxu0
      %3063 = vdwg.mxu0
      %3064 = vmatprep.subr.bf16.mxu0 0
      %3065 = vmatpush1.bf16.msra.mxu0 %v2153
      %3066 = vmatprep.subr.bf16.mxu0 0
      %3067 = vmatpush1.bf16.msra.mxu0 %v2154
      %3068 = vmatprep.subr.bf16.mxu0 0
      %3069 = vmatpush1.bf16.msra.mxu0 %v2155
      %3070 = vmatprep.subr.bf16.mxu0 0
      %3071 = vmatpush1.bf16.msra.mxu0 %v2156
      %3072 = vmatprep.subr.bf16.mxu0 0
      %3073 = vmatpush1.bf16.msra.mxu0 %v2157
      %3074 = vmatprep.subr.bf16.mxu0 0
      %3075 = vmatpush1.bf16.msra.mxu0 %v2158
      %3076 = vmatprep.subr.bf16.mxu0 0
      %3077 = vmatpush1.bf16.msra.mxu0 %v2159
      %3078 = vmatprep.subr.bf16.mxu0 0
      %3079 = vmatpush1.bf16.msra.mxu0 %v2160
      %3080 = vmatprep.subr.bf16.mxu0 0
      %3081 = vmatpush1.bf16.msra.mxu0 %v2161
      %3082 = vmatprep.subr.bf16.mxu0 0
      %3083 = vmatpush1.bf16.msra.mxu0 %v2162
      %3084 = vmatprep.subr.bf16.mxu0 0
      %3085 = vmatpush1.bf16.msra.mxu0 %v2163
      %3086 = vmatprep.subr.bf16.mxu0 0
      %3087 = vmatpush1.bf16.msra.mxu0 %v2164
      %3088 = vmatprep.subr.bf16.mxu0 0
      %3089 = vmatpush1.bf16.msra.mxu0 %v2165
      %3090 = vmatprep.subr.bf16.mxu0 0
      %3091 = vmatpush1.bf16.msra.mxu0 %v2166
      %3092 = vmatprep.subr.bf16.mxu0 0
      %3093 = vmatpush1.bf16.msra.mxu0 %v2167
      %3094 = vmatprep.subr.bf16.mxu0 0
      %3095 = vmatpush1.bf16.msra.mxu0 %v2168
      %3096 = vmatprep.mubr.bf16.mxu0 %v1156
      %3097 = vmatmul.mubr.bf16.gmra.mrb[0].mxu0 %v1155
      %v3098 = vpop.f32.mrb[0].mxu0
      %v3099 = vadd.f32 %v2994, %v3098
      %v3100 = vpop.f32.mrb[0].mxu0
      %v3101 = vpop.f32.mrb[0].mxu0
      %v3102 = vadd.f32 %v2997, %v3101
      %v3103 = vpop.f32.mrb[0].mxu0
      %3104 = vmatprep.mubr.bf16.mxu0 %v1174
      %3105 = vmatmul.mubr.bf16.gmra.mrb[0].mxu0 %v1173
      %v3106 = vpop.f32.mrb[0].mxu0
      %v3107 = vadd.f32 %v3002, %v3106
      %v3108 = vpop.f32.mrb[0].mxu0
      %v3109 = vpop.f32.mrb[0].mxu0
      %v3110 = vadd.f32 %v3005, %v3109
      %v3111 = vpop.f32.mrb[0].mxu0
      %3112 = vmatprep.mubr.bf16.mxu0 %v1192
      %3113 = vmatmul.mubr.bf16.gmra.mrb[0].mxu0 %v1191
      %v3114 = vpop.f32.mrb[0].mxu0
      %v3115 = vadd.f32 %v3010, %v3114
      %v3116 = vpop.f32.mrb[0].mxu0
      %v3117 = vpop.f32.mrb[0].mxu0
      %v3118 = vadd.f32 %v3013, %v3117
      %v3119 = vpop.f32.mrb[0].mxu0
      %3120 = vmatprep.mubr.bf16.mxu0 %v1210
      %3121 = vmatmul.mubr.bf16.gmra.mrb[0].mxu0 %v1209
      %v3122 = vpop.f32.mrb[0].mxu0
      %v3123 = vadd.f32 %v3018, %v3122
      %v3124 = vpop.f32.mrb[0].mxu0
      %v3125 = vpop.f32.mrb[0].mxu0
      %v3126 = vadd.f32 %v3021, %v3125
      %v3127 = vpop.f32.mrb[0].mxu0
      %3128 = vmatprep.mubr.bf16.mxu0 %v1228
      %3129 = vmatmul.mubr.bf16.gmra.mrb[0].mxu0 %v1227
      %v3130 = vpop.f32.mrb[0].mxu0
      %v3131 = vadd.f32 %v3026, %v3130
      %v3132 = vpop.f32.mrb[0].mxu0
      %v3133 = vpop.f32.mrb[0].mxu0
      %v3134 = vadd.f32 %v3029, %v3133
      %v3135 = vpop.f32.mrb[0].mxu0
      %3136 = vmatprep.mubr.bf16.mxu0 %v1246
      %3137 = vmatmul.mubr.bf16.gmra.mrb[0].mxu0 %v1245
      %v3138 = vpop.f32.mrb[0].mxu0
      %v3139 = vadd.f32 %v3034, %v3138
      %v3140 = vpop.f32.mrb[0].mxu0
      %v3141 = vpop.f32.mrb[0].mxu0
      %v3142 = vadd.f32 %v3037, %v3141
      %v3143 = vpop.f32.mrb[0].mxu0
      %3144 = vmatprep.mubr.bf16.mxu0 %v1264
      %3145 = vmatmul.mubr.bf16.gmra.mrb[0].mxu0 %v1263
      %v3146 = vpop.f32.mrb[0].mxu0
      %v3147 = vadd.f32 %v3042, %v3146
      %v3148 = vpop.f32.mrb[0].mxu0
      %v3149 = vpop.f32.mrb[0].mxu0
      %v3150 = vadd.f32 %v3045, %v3149
      %v3151 = vpop.f32.mrb[0].mxu0
      %3152 = vmatprep.mubr.bf16.mxu0 %v1282
      %3153 = vmatmul.mubr.bf16.gmra.mrb[0].mxu0 %v1281
      %v3154 = vpop.f32.mrb[0].mxu0
      %v3155 = vadd.f32 %v3050, %v3154
      %v3156 = vpop.f32.mrb[0].mxu0
      %v3157 = vpop.f32.mrb[0].mxu0
      %v3158 = vadd.f32 %v3053, %v3157
      %v3159 = vpop.f32.mrb[0].mxu0
      %3160 = vmatprep.mubr.bf16.mxu0 %v1300
      %3161 = vmatmul.mubr.bf16.gmra.mrb[0].mxu0 %v1299
      %v3162 = vpop.f32.mrb[0].mxu0
      %v3163 = vadd.f32 %v3058, %v3162
      %v3164 = vpop.f32.mrb[0].mxu0
      %v3165 = vpop.f32.mrb[0].mxu0
      %v3166 = vadd.f32 %v3061, %v3165
      %v3167 = vpop.f32.mrb[0].mxu0
      %3168 = vdwg.mxu0
      %3169 = vmatprep.subr.bf16.mxu0 0
      %3170 = vmatpush1.bf16.msra.mxu0 %v2169
      %3171 = vmatprep.subr.bf16.mxu0 0
      %3172 = vmatpush1.bf16.msra.mxu0 %v2170
      %3173 = vmatprep.subr.bf16.mxu0 0
      %3174 = vmatpush1.bf16.msra.mxu0 %v2171
      %3175 = vmatprep.subr.bf16.mxu0 0
      %3176 = vmatpush1.bf16.msra.mxu0 %v2172
      %3177 = vmatprep.subr.bf16.mxu0 0
      %3178 = vmatpush1.bf16.msra.mxu0 %v2173
      %3179 = vmatprep.subr.bf16.mxu0 0
      %3180 = vmatpush1.bf16.msra.mxu0 %v2174
      %3181 = vmatprep.subr.bf16.mxu0 0
      %3182 = vmatpush1.bf16.msra.mxu0 %v2175
      %3183 = vmatprep.subr.bf16.mxu0 0
      %3184 = vmatpush1.bf16.msra.mxu0 %v2176
      %3185 = vmatprep.subr.bf16.mxu0 0
      %3186 = vmatpush1.bf16.msra.mxu0 %v2177
      %3187 = vmatprep.subr.bf16.mxu0 0
      %3188 = vmatpush1.bf16.msra.mxu0 %v2178
      %3189 = vmatprep.subr.bf16.mxu0 0
      %3190 = vmatpush1.bf16.msra.mxu0 %v2179
      %3191 = vmatprep.subr.bf16.mxu0 0
      %3192 = vmatpush1.bf16.msra.mxu0 %v2180
      %3193 = vmatprep.subr.bf16.mxu0 0
      %3194 = vmatpush1.bf16.msra.mxu0 %v2181
      %3195 = vmatprep.subr.bf16.mxu0 0
      %3196 = vmatpush1.bf16.msra.mxu0 %v2182
      %3197 = vmatprep.subr.bf16.mxu0 0
      %3198 = vmatpush1.bf16.msra.mxu0 %v2183
      %3199 = vmatprep.subr.bf16.mxu0 0
      %3200 = vmatpush1.bf16.msra.mxu0 %v2184
      %3201 = vmatprep.mubr.bf16.mxu0 %v1158
      %3202 = vmatmul.mubr.bf16.gmra.mrb[0].mxu0 %v1157
      %v3203 = vpop.f32.mrb[0].mxu0
      %v3204 = vadd.f32 %v3099, %v3203
      %v3205 = vpop.f32.mrb[0].mxu0
      %v3206 = vpop.f32.mrb[0].mxu0
      %v3207 = vadd.f32 %v3102, %v3206
      %v3208 = vpop.f32.mrb[0].mxu0
      %3209 = vmatprep.mubr.bf16.mxu0 %v1176
      %3210 = vmatmul.mubr.bf16.gmra.mrb[0].mxu0 %v1175
      %v3211 = vpop.f32.mrb[0].mxu0
      %v3212 = vadd.f32 %v3107, %v3211
      %v3213 = vpop.f32.mrb[0].mxu0
      %v3214 = vpop.f32.mrb[0].mxu0
      %v3215 = vadd.f32 %v3110, %v3214
      %v3216 = vpop.f32.mrb[0].mxu0
      %3217 = vmatprep.mubr.bf16.mxu0 %v1194
      %3218 = vmatmul.mubr.bf16.gmra.mrb[0].mxu0 %v1193
      %v3219 = vpop.f32.mrb[0].mxu0
      %v3220 = vadd.f32 %v3115, %v3219
      %v3221 = vpop.f32.mrb[0].mxu0
      %v3222 = vpop.f32.mrb[0].mxu0
      %v3223 = vadd.f32 %v3118, %v3222
      %v3224 = vpop.f32.mrb[0].mxu0
      %3225 = vmatprep.mubr.bf16.mxu0 %v1212
      %3226 = vmatmul.mubr.bf16.gmra.mrb[0].mxu0 %v1211
      %v3227 = vpop.f32.mrb[0].mxu0
      %v3228 = vadd.f32 %v3123, %v3227
      %v3229 = vpop.f32.mrb[0].mxu0
      %v3230 = vpop.f32.mrb[0].mxu0
      %v3231 = vadd.f32 %v3126, %v3230
      %v3232 = vpop.f32.mrb[0].mxu0
      %3233 = vmatprep.mubr.bf16.mxu0 %v1230
      %3234 = vmatmul.mubr.bf16.gmra.mrb[0].mxu0 %v1229
      %v3235 = vpop.f32.mrb[0].mxu0
      %v3236 = vadd.f32 %v3131, %v3235
      %v3237 = vpop.f32.mrb[0].mxu0
      %v3238 = vpop.f32.mrb[0].mxu0
      %v3239 = vadd.f32 %v3134, %v3238
      %v3240 = vpop.f32.mrb[0].mxu0
      %3241 = vmatprep.mubr.bf16.mxu0 %v1248
      %3242 = vmatmul.mubr.bf16.gmra.mrb[0].mxu0 %v1247
      %v3243 = vpop.f32.mrb[0].mxu0
      %v3244 = vadd.f32 %v3139, %v3243
      %v3245 = vpop.f32.mrb[0].mxu0
      %v3246 = vpop.f32.mrb[0].mxu0
      %v3247 = vadd.f32 %v3142, %v3246
      %v3248 = vpop.f32.mrb[0].mxu0
      %3249 = vmatprep.mubr.bf16.mxu0 %v1266
      %3250 = vmatmul.mubr.bf16.gmra.mrb[0].mxu0 %v1265
      %v3251 = vpop.f32.mrb[0].mxu0
      %v3252 = vadd.f32 %v3147, %v3251
      %v3253 = vpop.f32.mrb[0].mxu0
      %v3254 = vpop.f32.mrb[0].mxu0
      %v3255 = vadd.f32 %v3150, %v3254
      %v3256 = vpop.f32.mrb[0].mxu0
      %3257 = vmatprep.mubr.bf16.mxu0 %v1284
      %3258 = vmatmul.mubr.bf16.gmra.mrb[0].mxu0 %v1283
      %v3259 = vpop.f32.mrb[0].mxu0
      %v3260 = vadd.f32 %v3155, %v3259
      %v3261 = vpop.f32.mrb[0].mxu0
      %v3262 = vpop.f32.mrb[0].mxu0
      %v3263 = vadd.f32 %v3158, %v3262
      %v3264 = vpop.f32.mrb[0].mxu0
      %3265 = vmatprep.mubr.bf16.mxu0 %v1302
      %3266 = vmatmul.mubr.bf16.gmra.mrb[0].mxu0 %v1301
      %v3267 = vpop.f32.mrb[0].mxu0
      %v3268 = vadd.f32 %v3163, %v3267
      %v3269 = vpop.f32.mrb[0].mxu0
      %v3270 = vpop.f32.mrb[0].mxu0
      %v3271 = vadd.f32 %v3166, %v3270
      %v3272 = vpop.f32.mrb[0].mxu0
      %3273 = vdwg.mxu0
      %v3274 = vld [vmem:[%s2] sm:$0x1]
      %v3276 = vlaneseq
      %v3277 = vshrl.u32 %v3276, 7
      %v3278 = vsub.s32 0, %v3277
      %v3279 = vrot.slane %v3274, %v3278
      %v3281 = vmul.f32 %v3204, %v3279
      %v3282 = vmul.f32 %v3207, %v3279
      %v3283 = vmul.f32 %v3212, %v3279
      %v3284 = vmul.f32 %v3215, %v3279
      %v3285 = vmul.f32 %v3220, %v3279
      %v3286 = vmul.f32 %v3223, %v3279
      %v3287 = vmul.f32 %v3228, %v3279
      %v3288 = vmul.f32 %v3231, %v3279
      %v3289 = vmul.f32 %v3236, %v3279
      %v3290 = vmul.f32 %v3239, %v3279
      %v3291 = vmul.f32 %v3244, %v3279
      %v3292 = vmul.f32 %v3247, %v3279
      %v3293 = vmul.f32 %v3252, %v3279
      %v3294 = vmul.f32 %v3255, %v3279
      %v3295 = vmul.f32 %v3260, %v3279
      %v3296 = vmul.f32 %v3263, %v3279
      %v3297 = vmul.f32 %v3268, %v3279
      %v3298 = vmul.f32 %v3271, %v3279
      %v3299 = vld [vmem:[%s3] sm:$0x1]
      %v3301 = vlaneseq
      %v3302 = vshrl.u32 %v3301, 7
      %v3303 = vsub.s32 0, %v3302
      %v3304 = vrot.slane %v3299, %v3303
      %v3306 = vadd.f32 %v3281, %v3304
      %v3307 = vadd.f32 %v3282, %v3304
      %v3308 = vadd.f32 %v3283, %v3304
      %v3309 = vadd.f32 %v3284, %v3304
      %v3310 = vadd.f32 %v3285, %v3304
      %v3311 = vadd.f32 %v3286, %v3304
      %v3312 = vadd.f32 %v3287, %v3304
      %v3313 = vadd.f32 %v3288, %v3304
      %v3314 = vadd.f32 %v3289, %v3304
      %v3315 = vadd.f32 %v3290, %v3304
      %v3316 = vadd.f32 %v3291, %v3304
      %v3317 = vadd.f32 %v3292, %v3304
      %v3318 = vadd.f32 %v3293, %v3304
      %v3319 = vadd.f32 %v3294, %v3304
      %v3320 = vadd.f32 %v3295, %v3304
      %v3321 = vadd.f32 %v3296, %v3304
      %v3322 = vadd.f32 %v3297, %v3304
      %v3323 = vadd.f32 %v3298, %v3304
      %v3324 = vmax.f32 %v3306, 0.0
      %v3325 = vmax.f32 %v3307, 0.0
      %v3326 = vmax.f32 %v3308, 0.0
      %v3327 = vmax.f32 %v3309, 0.0
      %v3328 = vmax.f32 %v3310, 0.0
      %v3329 = vmax.f32 %v3311, 0.0
      %v3330 = vmax.f32 %v3312, 0.0
      %v3331 = vmax.f32 %v3313, 0.0
      %v3332 = vmax.f32 %v3314, 0.0
      %v3333 = vmax.f32 %v3315, 0.0
      %v3334 = vmax.f32 %v3316, 0.0
      %v3335 = vmax.f32 %v3317, 0.0
      %v3336 = vmax.f32 %v3318, 0.0
      %v3337 = vmax.f32 %v3319, 0.0
      %v3338 = vmax.f32 %v3320, 0.0
      %v3339 = vmax.f32 %v3321, 0.0
      %v3340 = vmax.f32 %v3322, 0.0
      %v3341 = vmax.f32 %v3323, 0.0
      %v3342 = vpack.c.bf16 %v3325, %v3324
      %v3343 = vpack.c.bf16 %v3327, %v3326
      %v3344 = vpack.c.bf16 %v3329, %v3328
      %v3345 = vpack.c.bf16 %v3331, %v3330
      %v3346 = vpack.c.bf16 %v3333, %v3332
      %v3347 = vpack.c.bf16 %v3335, %v3334
      %v3348 = vpack.c.bf16 %v3337, %v3336
      %v3349 = vpack.c.bf16 %v3339, %v3338
      %v3350 = vpack.c.bf16 %v3341, %v3340
      %v3360 = vunpack.c.l.b16 %v3342
      %v3361 = vunpack.c.h.b16 %v3342
      %v3362 = vunpack.c.l.b16 %v3343
      %v3363 = vunpack.c.h.b16 %v3343
      %v3364 = vunpack.c.l.b16 %v3344
      %v3365 = vunpack.c.h.b16 %v3344
      %v3366 = vunpack.c.l.b16 %v3345
      %v3367 = vunpack.c.h.b16 %v3345
      %v3368 = vunpack.c.l.b16 %v3346
      %v3369 = vunpack.c.h.b16 %v3346
      %v3370 = vunpack.c.l.b16 %v3347
      %v3371 = vunpack.c.h.b16 %v3347
      %v3372 = vunpack.c.l.b16 %v3348
      %v3373 = vunpack.c.h.b16 %v3348
      %v3374 = vunpack.c.l.b16 %v3349
      %v3375 = vunpack.c.h.b16 %v3349
      %v3376 = vunpack.c.l.b16 %v3350
      %v3377 = vunpack.c.h.b16 %v3350
      %v3378 = vpack.c.b16 %v3360, %v3360
      %v3379 = vpack.c.b16 %v3361, %v3361
      %v3380 = vpack.c.b16 %v3362, %v3362
      %v3381 = vpack.c.b16 %v3363, %v3363
      %v3382 = vpack.c.b16 %v3364, %v3364
      %v3383 = vpack.c.b16 %v3365, %v3365
      %v3384 = vpack.c.b16 %v3366, %v3366
      %v3385 = vpack.c.b16 %v3367, %v3367
      %v3386 = vpack.c.b16 %v3368, %v3368
      %v3387 = vpack.c.b16 %v3369, %v3369
      %v3388 = vpack.c.b16 %v3370, %v3370
      %v3389 = vpack.c.b16 %v3371, %v3371
      %v3390 = vpack.c.b16 %v3372, %v3372
      %v3391 = vpack.c.b16 %v3373, %v3373
      %v3392 = vpack.c.b16 %v3374, %v3374
      %v3393 = vpack.c.b16 %v3375, %v3375
      %v3394 = vpack.c.b16 %v3376, %v3376
      %v3395 = vpack.c.b16 %v3377, %v3377
      %3414 = vst [vmem:[%s202] sm:$0xf] %v3378
      %3415 = vst [vmem:[%s202 + $0x4] sm:$0xf] %v3379
      %3416 = vst [vmem:[%s202 + $0x8] sm:$0xf] %v3380
      %3417 = vst [vmem:[%s202 + $0xc] sm:$0xf] %v3381
      %3418 = vst [vmem:[%s202 + $0x10] sm:$0xf] %v3382
      %3419 = vst [vmem:[%s202 + $0x14] sm:$0xf] %v3383
      %3420 = vst [vmem:[%s202 + $0x18] sm:$0xf] %v3384
      %3421 = vst [vmem:[%s202 + $0x1c] sm:$0xf] %v3385
      %3422 = vst [vmem:[%s202 + $0x20] sm:$0xf] %v3386
      %3423 = vst [vmem:[%s202 + $0x24] sm:$0xf] %v3387
      %3424 = vst [vmem:[%s202 + $0x28] sm:$0xf] %v3388
      %3425 = vst [vmem:[%s202 + $0x2c] sm:$0xf] %v3389
      %3426 = vst [vmem:[%s202 + $0x30] sm:$0xf] %v3390
      %3427 = vst [vmem:[%s202 + $0x34] sm:$0xf] %v3391
      %3428 = vst [vmem:[%s202 + $0x38] sm:$0xf] %v3392
      %3429 = vst [vmem:[%s202 + $0x3c] sm:$0xf] %v3393
      %3430 = vst [vmem:[%s202 + $0x40] sm:$0xf] %v3394
      %3431 = vst [vmem:[%s202 + $0x44] sm:$0xf] %v3395
      %s3432 = smul.u32 18, %s15
      %p3433 = scmp.lt.s32.totalorder %s3432, 35
      %s3434 = scalar_select %p3433, %s3432, 35
      %s3435 = smul.addr %s3434, 4
      %s3436 = scalar_lea.vmem %s4, %s3435
      // Predicated region
      $region37: #{psp_att_noguide_head.2} parent=35 // pred_check
        %p3437 = pneg %p122
      $region38: #{psp_att_noguide_head.2} parent=35 // pred_check_branch
        %3439 = sbr.rel (%p3437) target = $region40
      $region39: #{psp_att_noguide_head.2} parent=35 // pred_region
        %s3440 = smul.u32 18, %s15
      $region40: #{psp_att_noguide_head.2} parent=35 // pred_fallthru
        _
    $region36: #{psp_att_noguide_head.2} parent=5 // pred_fallthru
      _
    %p3441 = scmp.le.s32.totalorder 2, %s10
    // Predicated region
    $region41: #{psp_att_noguide_head.2} parent=5 // pred_check
      %p3442 = pneg %p3441
    $region42: #{psp_att_noguide_head.2} parent=5 // pred_check_branch
      %3444 = sbr.rel (%p3442) target = $region44
    $region43: #{psp_att_noguide_head.2} parent=5 // pred_region
      %s3445 = ssub.s32 %s10, 2
      // Predicated region
      $region45: #{psp_att_noguide_head.2} parent=43 // pred_check
        %p3446 = pneg %p128
      $region46: #{psp_att_noguide_head.2} parent=43 // pred_check_branch
        %3448 = sbr.rel (%p3446) target = $region48
      $region47: #{psp_att_noguide_head.2} parent=43 // pred_region
        %s3449 = smul.u32 18, %s16
        %p3450 = scmp.lt.s32.totalorder %s3449, 35
        %s3451 = scalar_select %p3450, %s3449, 35
        %s3452 = smul.addr %s3451, 4
        %s3453 = scalar_lea.vmem %s4, %s3452
      $region48: #{psp_att_noguide_head.2} parent=43 // pred_fallthru
        _
    $region44: #{psp_att_noguide_head.2} parent=5 // pred_fallthru
      _
  $region6: #{psp_att_noguide_head.2} parent=0 // loop_footer
    %s14 = sadd.s32 1, %s10
  $region7: #{psp_att_noguide_head.2} parent=0 // loop_footer_branch
    %9 = sbr.rel target = $region3
  $region8: #{psp_att_noguide_head.2} parent=0 // loop_exit
    _

</llo_original>
